<compile_context>
chip_gen: v7x
topology: tpu7x:2x2x1
jax: 0.10.0
libtpu: 0.0.40
codegen_flags: <defaults>
</compile_context>

<pallas_src>
import functools

import jax
import jax.numpy as jnp
import numpy as np
from jax.experimental import pallas as pl
from jax.experimental.pallas import tpu as pltpu

MAX_WH = 640.0   # ONNX_ORT branch (max_wh=640)
_SLAB = 128      # lane-dense packed-output width
# slab columns: 0:4 boxes(xyxy) | 4:8 nmsbox | 8 max_score | 9 category_id | pad


def _round_up(x, m):
    return (x + m - 1) // m * m


# ---------------------------------------------------------------------------
# Fused kernel: 1x1-conv head (FMA + bias + sigmoid) + ONNX_ORT pre-NMS math
# ---------------------------------------------------------------------------
def _fused_kernel(x_ref, w_ref, b_ref, out_ref, *, n_classes):
    x = x_ref[...]                        # (TM, Cin)
    w = w_ref[...]                        # (Cin, CP)  CP = 128-padded 5+nc
    b = b_ref[...]                        # (1,  CP)
    cin = x.shape[1]

    # --- detection head: 1x1 conv as K-deep broadcast-FMA (Cin tiny -> VPU) ---
    acc = b
    for c in range(cin):                  # static unroll over Cin
        acc = acc + x[:, c:c + 1] * w[c:c + 1, :]
    y = jax.nn.sigmoid(acc)               # (TM, CP), YOLO-activated outputs

    tm, cp = y.shape
    conf = y[:, 4:5]                      # (TM, 1) objectness

    # --- class max / first-argmax (padded lanes masked so they never win) ---
    if n_classes == 1:
        max_score = conf
        cat = jnp.zeros((tm, 1), jnp.int32)
    else:
        scores = y * conf                                      # (TM, CP)
        lane = jax.lax.broadcasted_iota(jnp.int32, (tm, cp), 1)
        is_cls = (lane >= 5) & (lane < 5 + n_classes)
        scores = jnp.where(is_cls, scores, -jnp.inf)
        max_score = jnp.max(scores, axis=-1, keepdims=True)    # (TM, 1)
        cand = jnp.where(scores == max_score, lane, jnp.int32(2 ** 30))
        cat = jnp.min(cand, axis=-1, keepdims=True) - 5        # first max index

    catf = cat.astype(jnp.float32)
    dis = catf * MAX_WH

    # --- cxcywh -> xyxy via VPU arithmetic (replaces (N,4)@(4,4) matmul) ---
    cx = y[:, 0:1]
    cy = y[:, 1:2]
    bw = y[:, 2:3]
    bh = y[:, 3:4]
    x1 = cx - 0.5 * bw
    y1 = cy - 0.5 * bh
    x2 = cx + 0.5 * bw
    y2 = cy + 0.5 * bh

    # --- pack everything into one lane-dense 128-wide output slab ---
    out_ref[...] = jnp.zeros_like(out_ref)
    out_ref[:, 0:1] = x1
    out_ref[:, 1:2] = y1
    out_ref[:, 2:3] = x2
    out_ref[:, 3:4] = y2
    out_ref[:, 4:5] = x1 + dis
    out_ref[:, 5:6] = y1 + dis
    out_ref[:, 6:7] = x2 + dis
    out_ref[:, 7:8] = y2 + dis
    out_ref[:, 8:9] = max_score
    out_ref[:, 9:10] = catf


# ---------------------------------------------------------------------------
# End2End forward: model(x) -> ONNX_ORT pre-NMS postprocessing (fused)
# ---------------------------------------------------------------------------
def end2end_forward(x_nchw, w, b, n_classes=80, tm=1024):
    B, cin, H, W = x_nchw.shape
    cout = 5 + n_classes
    assert w.shape == (cin, cout) and b.shape == (1, cout)

    M = B * H * W
    # NCHW -> NHWC -> (B*H*W, Cin): channels on the lane axis
    x_flat = jnp.transpose(x_nchw, (0, 2, 3, 1)).reshape(M, cin)

    tm = min(tm, _round_up(M, 8))                 # clamp tile to problem size
    m_pad = _round_up(M, tm)
    if m_pad != M:
        x_flat = jnp.pad(x_flat, ((0, m_pad - M), (0, 0)))

    cp = _round_up(cout, 128)                     # lane-align the class dim
    w_p = jnp.pad(w.astype(jnp.float32), ((0, 0), (0, cp - cout)))
    b_p = jnp.pad(b.astype(jnp.float32), ((0, 0), (0, cp - cout)))

    kernel = functools.partial(_fused_kernel, n_classes=n_classes)
    slab = pl.pallas_call(
        kernel,
        out_shape=jax.ShapeDtypeStruct((m_pad, _SLAB), jnp.float32),
        grid_spec=pltpu.PrefetchScalarGridSpec(
            num_scalar_prefetch=0,
            grid=(m_pad // tm,),
            in_specs=[
                pl.BlockSpec((tm, cin), lambda i: (i, 0)),
                pl.BlockSpec((cin, cp), lambda i: (0, 0)),
                pl.BlockSpec((1, cp), lambda i: (0, 0)),
            ],
            out_specs=pl.BlockSpec((tm, _SLAB), lambda i: (i, 0)),
        ),
        compiler_params=pltpu.CompilerParams(
            dimension_semantics=("parallel",),
        ),
    )(x_flat, w_p, b_p)

    slab = slab[:M]
    N = H * W
    boxes = slab[:, 0:4].reshape(B, N, 4)
    nmsbox = slab[:, 4:8].reshape(B, N, 4)
    max_score = slab[:, 8:9].reshape(B, N, 1)
    category_id = slab[:, 9:10].astype(jnp.int32).reshape(B, N, 1)  # exact ints
    return boxes, nmsbox, max_score, category_id


# ---------------------------------------------------------------------------
# Pure numpy (float64) reference of the same forward semantics
# ---------------------------------------------------------------------------
def _reference_np(x, w, b, n_classes=80):
    x = np.asarray(x, np.float64)
    w = np.asarray(w, np.float64)
    b = np.asarray(b, np.float64)
    B, cin, H, W = x.shape
    xf = x.transpose(0, 2, 3, 1).reshape(B * H * W, cin)
    preds = 1.0 / (1.0 + np.exp(-(xf @ w + b)))
    preds = preds.reshape(B, H * W, 5 + n_classes)
    boxes = preds[:, :, :4]
    conf = preds[:, :, 4:5]
    scores = conf if n_classes == 1 else preds[:, :, 5:] * conf
    cm = np.array([[1, 0, 1, 0], [0, 1, 0, 1],
                   [-0.5, 0, 0.5, 0], [0, -0.5, 0, 0.5]], np.float64)
    boxes = boxes @ cm
    max_score = scores.max(-1, keepdims=True)
    cat = scores.argmax(-1)[..., None].astype(np.int32)
    nmsbox = boxes + cat.astype(np.float64) * MAX_WH
    return boxes, nmsbox, max_score, cat


if __name__ == "__main__":
    B, C_in, H, W = 2, 4, 16, 16
    n_classes = 80
    C_out = 5 + n_classes

    key = jax.random.PRNGKey(0)
    kx, kw, kb = jax.random.split(key, 3)
    x = jax.random.normal(kx, (B, C_in, H, W), jnp.float32)      # NCHW like torch
    w = jax.random.normal(kw, (C_in, C_out), jnp.float32) * 0.1  # 1x1 conv weight
    b = jax.random.normal(kb, (1, C_out), jnp.float32) * 0.1     # bias

    boxes, nmsbox, max_score, category_id = end2end_forward(
        x, w, b, n_classes=n_classes)
    jax.block_until_ready((boxes, nmsbox, max_score, category_id))

    assert boxes.shape == (B, H * W, 4)
    assert nmsbox.shape == (B, H * W, 4)
    assert max_score.shape == (B, H * W, 1)
    assert category_id.shape == (B, H * W, 1)

    rb, rn, rs, rc = _reference_np(x, w, b, n_classes=n_classes)
    np.testing.assert_allclose(np.asarray(boxes), rb, rtol=1e-5, atol=1e-5)
    np.testing.assert_allclose(np.asarray(nmsbox), rn, rtol=1e-5, atol=1e-4)
    np.testing.assert_allclose(np.asarray(max_score), rs, rtol=1e-5, atol=1e-5)
    assert np.array_equal(np.asarray(category_id), rc)

    print("KERNEL_OK")
</pallas_src>

<mosaic_0001>
module attributes {stable_mosaic.version = 11 : i64} {
  func.func @_fused_kernel(%arg0: i32, %arg1: memref<512x4xf32, #tpu.memory_space<vmem>>, %arg2: memref<4x128xf32, #tpu.memory_space<vmem>>, %arg3: memref<1x128xf32, #tpu.memory_space<vmem>>, %arg4: memref<512x128xf32, #tpu.memory_space<vmem>>) attributes {dimension_semantics = [#tpu.dimension_semantics<parallel>], iteration_bounds = array<i64: 1>, scalar_prefetch = 0 : i64, scratch_operands = 0 : i64, tpu.core_type = #tpu.core_type<tc>, window_params = [{transform_indices = @transform_0, window_bounds = array<i64: 512, 4>}, {pipeline_mode = #tpu.pipeline_mode<synchronous>, transform_indices = @transform_1, window_bounds = array<i64: 4, 128>}, {pipeline_mode = #tpu.pipeline_mode<synchronous>, transform_indices = @transform_2, window_bounds = array<i64: 1, 128>}, {transform_indices = @transform_3, window_bounds = array<i64: 512, 128>}]} {
    %c0 = arith.constant 0 : index
    %c0_0 = arith.constant 0 : index
    %0 = vector.load %arg1[%c0, %c0_0] : memref<512x4xf32, #tpu.memory_space<vmem>>, vector<512x4xf32>
    %c0_1 = arith.constant 0 : index
    %c0_2 = arith.constant 0 : index
    %1 = vector.load %arg2[%c0_1, %c0_2] : memref<4x128xf32, #tpu.memory_space<vmem>>, vector<4x128xf32>
    %c0_3 = arith.constant 0 : index
    %c0_4 = arith.constant 0 : index
    %2 = vector.load %arg3[%c0_3, %c0_4] : memref<1x128xf32, #tpu.memory_space<vmem>>, vector<1x128xf32>
    %3 = vector.extract_strided_slice %0 {offsets = [0, 0], sizes = [512, 1], strides = [1, 1]} : vector<512x4xf32> to vector<512x1xf32>
    %4 = vector.extract_strided_slice %1 {offsets = [0, 0], sizes = [1, 128], strides = [1, 1]} : vector<4x128xf32> to vector<1x128xf32>
    %5 = vector.broadcast %3 : vector<512x1xf32> to vector<512x128xf32>
    %6 = vector.broadcast %4 : vector<1x128xf32> to vector<512x128xf32>
    %7 = arith.mulf %5, %6 : vector<512x128xf32>
    %8 = vector.broadcast %2 : vector<1x128xf32> to vector<512x128xf32>
    %9 = arith.addf %8, %7 : vector<512x128xf32>
    %10 = vector.extract_strided_slice %0 {offsets = [0, 1], sizes = [512, 1], strides = [1, 1]} : vector<512x4xf32> to vector<512x1xf32>
    %11 = vector.extract_strided_slice %1 {offsets = [1, 0], sizes = [1, 128], strides = [1, 1]} : vector<4x128xf32> to vector<1x128xf32>
    %12 = vector.broadcast %10 : vector<512x1xf32> to vector<512x128xf32>
    %13 = vector.broadcast %11 : vector<1x128xf32> to vector<512x128xf32>
    %14 = arith.mulf %12, %13 : vector<512x128xf32>
    %15 = arith.addf %9, %14 : vector<512x128xf32>
    %16 = vector.extract_strided_slice %0 {offsets = [0, 2], sizes = [512, 1], strides = [1, 1]} : vector<512x4xf32> to vector<512x1xf32>
    %17 = vector.extract_strided_slice %1 {offsets = [2, 0], sizes = [1, 128], strides = [1, 1]} : vector<4x128xf32> to vector<1x128xf32>
    %18 = vector.broadcast %16 : vector<512x1xf32> to vector<512x128xf32>
    %19 = vector.broadcast %17 : vector<1x128xf32> to vector<512x128xf32>
    %20 = arith.mulf %18, %19 : vector<512x128xf32>
    %21 = arith.addf %15, %20 : vector<512x128xf32>
    %22 = vector.extract_strided_slice %0 {offsets = [0, 3], sizes = [512, 1], strides = [1, 1]} : vector<512x4xf32> to vector<512x1xf32>
    %23 = vector.extract_strided_slice %1 {offsets = [3, 0], sizes = [1, 128], strides = [1, 1]} : vector<4x128xf32> to vector<1x128xf32>
    %24 = vector.broadcast %22 : vector<512x1xf32> to vector<512x128xf32>
    %25 = vector.broadcast %23 : vector<1x128xf32> to vector<512x128xf32>
    %26 = arith.mulf %24, %25 : vector<512x128xf32>
    %27 = arith.addf %21, %26 : vector<512x128xf32>
    %28 = arith.negf %27 : vector<512x128xf32>
    %29 = math.exp %28 : vector<512x128xf32>
    %cst = arith.constant 1.000000e+00 : f32
    %30 = vector.broadcast %cst : f32 to vector<512x128xf32>
    %31 = arith.addf %30, %29 : vector<512x128xf32>
    %32 = arith.divf %30, %31 : vector<512x128xf32>
    %33 = vector.extract_strided_slice %32 {offsets = [0, 4], sizes = [512, 1], strides = [1, 1]} : vector<512x128xf32> to vector<512x1xf32>
    %34 = vector.broadcast %33 : vector<512x1xf32> to vector<512x128xf32>
    %35 = arith.mulf %32, %34 : vector<512x128xf32>
    %36 = tpu.iota {dimensions = array<i32: 1>} : vector<512x128xi32>
    %c5_i32 = arith.constant 5 : i32
    %37 = vector.broadcast %c5_i32 : i32 to vector<512x128xi32>
    %38 = arith.cmpi sge, %36, %37 : vector<512x128xi32>
    %c85_i32 = arith.constant 85 : i32
    %39 = vector.broadcast %c85_i32 : i32 to vector<512x128xi32>
    %40 = arith.cmpi slt, %36, %39 : vector<512x128xi32>
    %41 = arith.andi %38, %40 : vector<512x128xi1>
    %cst_5 = arith.constant 0xFF800000 : f32
    %42 = vector.broadcast %cst_5 : f32 to vector<512x128xf32>
    %43 = arith.select %41, %35, %42 : vector<512x128xi1>, vector<512x128xf32>
    %cst_6 = arith.constant dense<0xFF800000> : vector<512xf32>
    %44 = vector.multi_reduction <maximumf>, %43, %cst_6 [1] : vector<512x128xf32> to vector<512xf32>
    %45 = vector.shape_cast %44 : vector<512xf32> to vector<512x1xf32>
    %46 = vector.broadcast %45 : vector<512x1xf32> to vector<512x128xf32>
    %47 = arith.cmpf oeq, %43, %46 : vector<512x128xf32>
    %c1073741824_i32 = arith.constant 1073741824 : i32
    %48 = vector.broadcast %c1073741824_i32 : i32 to vector<512x128xi32>
    %49 = arith.select %47, %36, %48 : vector<512x128xi1>, vector<512x128xi32>
    %cst_7 = arith.constant dense<2147483647> : vector<512xi32>
    %50 = vector.multi_reduction <minsi>, %49, %cst_7 [1] : vector<512x128xi32> to vector<512xi32>
    %51 = vector.shape_cast %50 : vector<512xi32> to vector<512x1xi32>
    %c5_i32_8 = arith.constant 5 : i32
    %52 = vector.broadcast %c5_i32_8 : i32 to vector<512x1xi32>
    %53 = arith.subi %51, %52 : vector<512x1xi32>
    %54 = arith.sitofp %53 : vector<512x1xi32> to vector<512x1xf32>
    %cst_9 = arith.constant 6.400000e+02 : f32
    %55 = vector.broadcast %cst_9 : f32 to vector<512x1xf32>
    %56 = arith.mulf %54, %55 : vector<512x1xf32>
    %57 = vector.extract_strided_slice %32 {offsets = [0, 0], sizes = [512, 1], strides = [1, 1]} : vector<512x128xf32> to vector<512x1xf32>
    %58 = vector.extract_strided_slice %32 {offsets = [0, 1], sizes = [512, 1], strides = [1, 1]} : vector<512x128xf32> to vector<512x1xf32>
    %59 = vector.extract_strided_slice %32 {offsets = [0, 2], sizes = [512, 1], strides = [1, 1]} : vector<512x128xf32> to vector<512x1xf32>
    %60 = vector.extract_strided_slice %32 {offsets = [0, 3], sizes = [512, 1], strides = [1, 1]} : vector<512x128xf32> to vector<512x1xf32>
    %cst_10 = arith.constant 5.000000e-01 : f32
    %61 = vector.broadcast %cst_10 : f32 to vector<512x1xf32>
    %62 = arith.mulf %61, %59 : vector<512x1xf32>
    %63 = arith.subf %57, %62 : vector<512x1xf32>
    %cst_11 = arith.constant 5.000000e-01 : f32
    %64 = vector.broadcast %cst_11 : f32 to vector<512x1xf32>
    %65 = arith.mulf %64, %60 : vector<512x1xf32>
    %66 = arith.subf %58, %65 : vector<512x1xf32>
    %cst_12 = arith.constant 5.000000e-01 : f32
    %67 = vector.broadcast %cst_12 : f32 to vector<512x1xf32>
    %68 = arith.mulf %67, %59 : vector<512x1xf32>
    %69 = arith.addf %57, %68 : vector<512x1xf32>
    %cst_13 = arith.constant 5.000000e-01 : f32
    %70 = vector.broadcast %cst_13 : f32 to vector<512x1xf32>
    %71 = arith.mulf %70, %60 : vector<512x1xf32>
    %72 = arith.addf %58, %71 : vector<512x1xf32>
    %cst_14 = arith.constant 0.000000e+00 : f32
    %73 = vector.broadcast %cst_14 : f32 to vector<512x128xf32>
    %c0_15 = arith.constant 0 : index
    %c0_16 = arith.constant 0 : index
    %74 = vector.load %arg4[%c0_15, %c0_16] : memref<512x128xf32, #tpu.memory_space<vmem>>, vector<512x128xf32>
    tpu.vector_store %arg4[%c0_15, %c0_16], %73 {strides = array<i32>} : memref<512x128xf32, #tpu.memory_space<vmem>>, vector<512x128xf32>,
    %c0_17 = arith.constant 0 : index
    %c0_18 = arith.constant 0 : index
    %75 = vector.load %arg4[%c0_17, %c0_18] : memref<512x128xf32, #tpu.memory_space<vmem>>, vector<512x1xf32>
    tpu.vector_store %arg4[%c0_17, %c0_18], %63 {strides = array<i32>} : memref<512x128xf32, #tpu.memory_space<vmem>>, vector<512x1xf32>,
    %c0_19 = arith.constant 0 : index
    %c1 = arith.constant 1 : index
    %76 = vector.load %arg4[%c0_19, %c1] : memref<512x128xf32, #tpu.memory_space<vmem>>, vector<512x1xf32>
    tpu.vector_store %arg4[%c0_19, %c1], %66 {strides = array<i32>} : memref<512x128xf32, #tpu.memory_space<vmem>>, vector<512x1xf32>,
    %c0_20 = arith.constant 0 : index
    %c2 = arith.constant 2 : index
    %77 = vector.load %arg4[%c0_20, %c2] : memref<512x128xf32, #tpu.memory_space<vmem>>, vector<512x1xf32>
    tpu.vector_store %arg4[%c0_20, %c2], %69 {strides = array<i32>} : memref<512x128xf32, #tpu.memory_space<vmem>>, vector<512x1xf32>,
    %c0_21 = arith.constant 0 : index
    %c3 = arith.constant 3 : index
    %78 = vector.load %arg4[%c0_21, %c3] : memref<512x128xf32, #tpu.memory_space<vmem>>, vector<512x1xf32>
    tpu.vector_store %arg4[%c0_21, %c3], %72 {strides = array<i32>} : memref<512x128xf32, #tpu.memory_space<vmem>>, vector<512x1xf32>,
    %79 = arith.addf %63, %56 : vector<512x1xf32>
    %c0_22 = arith.constant 0 : index
    %c4 = arith.constant 4 : index
    %80 = vector.load %arg4[%c0_22, %c4] : memref<512x128xf32, #tpu.memory_space<vmem>>, vector<512x1xf32>
    tpu.vector_store %arg4[%c0_22, %c4], %79 {strides = array<i32>} : memref<512x128xf32, #tpu.memory_space<vmem>>, vector<512x1xf32>,
    %81 = arith.addf %66, %56 : vector<512x1xf32>
    %c0_23 = arith.constant 0 : index
    %c5 = arith.constant 5 : index
    %82 = vector.load %arg4[%c0_23, %c5] : memref<512x128xf32, #tpu.memory_space<vmem>>, vector<512x1xf32>
    tpu.vector_store %arg4[%c0_23, %c5], %81 {strides = array<i32>} : memref<512x128xf32, #tpu.memory_space<vmem>>, vector<512x1xf32>,
    %83 = arith.addf %69, %56 : vector<512x1xf32>
    %c0_24 = arith.constant 0 : index
    %c6 = arith.constant 6 : index
    %84 = vector.load %arg4[%c0_24, %c6] : memref<512x128xf32, #tpu.memory_space<vmem>>, vector<512x1xf32>
    tpu.vector_store %arg4[%c0_24, %c6], %83 {strides = array<i32>} : memref<512x128xf32, #tpu.memory_space<vmem>>, vector<512x1xf32>,
    %85 = arith.addf %72, %56 : vector<512x1xf32>
    %c0_25 = arith.constant 0 : index
    %c7 = arith.constant 7 : index
    %86 = vector.load %arg4[%c0_25, %c7] : memref<512x128xf32, #tpu.memory_space<vmem>>, vector<512x1xf32>
    tpu.vector_store %arg4[%c0_25, %c7], %85 {strides = array<i32>} : memref<512x128xf32, #tpu.memory_space<vmem>>, vector<512x1xf32>,
    %c0_26 = arith.constant 0 : index
    %c8 = arith.constant 8 : index
    %87 = vector.load %arg4[%c0_26, %c8] : memref<512x128xf32, #tpu.memory_space<vmem>>, vector<512x1xf32>
    tpu.vector_store %arg4[%c0_26, %c8], %45 {strides = array<i32>} : memref<512x128xf32, #tpu.memory_space<vmem>>, vector<512x1xf32>,
    %c0_27 = arith.constant 0 : index
    %c9 = arith.constant 9 : index
    %88 = vector.load %arg4[%c0_27, %c9] : memref<512x128xf32, #tpu.memory_space<vmem>>, vector<512x1xf32>
    tpu.vector_store %arg4[%c0_27, %c9], %54 {strides = array<i32>} : memref<512x128xf32, #tpu.memory_space<vmem>>, vector<512x1xf32>,
    return
  }
  func.func @transform_0(%arg0: i32) -> (i32, i32) {
    %c0_i32 = arith.constant 0 : i32
    %c0_i32_0 = arith.constant 0 : i32
    return %arg0, %c0_i32 : i32, i32
  }
  func.func @transform_1(%arg0: i32) -> (i32, i32) {
    %c0_i32 = arith.constant 0 : i32
    %c0_i32_0 = arith.constant 0 : i32
    %c0_i32_1 = arith.constant 0 : i32
    return %c0_i32, %c0_i32_0 : i32, i32
  }
  func.func @transform_2(%arg0: i32) -> (i32, i32) {
    %c0_i32 = arith.constant 0 : i32
    %c0_i32_0 = arith.constant 0 : i32
    %c0_i32_1 = arith.constant 0 : i32
    return %c0_i32, %c0_i32_0 : i32, i32
  }
  func.func @transform_3(%arg0: i32) -> (i32, i32) {
    %c0_i32 = arith.constant 0 : i32
    %c0_i32_0 = arith.constant 0 : i32
    return %arg0, %c0_i32 : i32, i32
  }
}

</mosaic_0001>

<llo_original>
// kernel: tpu_custom_call.1
$region0: #{tpu_custom_call.1}
  #allocation0 [shape = 'u32[]', space=smem, size = 0x4, offset = 0x4, fixed_abs, tag = 'smem constant byte address 0x4 - core index']
  #allocation1 [shape = 'u32[144,128]{1,0:T(1,128)}', space=vmem, size = 0x12000, scoped, tag = 'internal scratch']
  %s0 = inlined_call_operand.vmem [shape: f32[512,4], index: 0, kind: input, shape index: {}]
  %s1 = inlined_call_operand.vmem [shape: f32[4,128], index: 1, kind: input, shape index: {}]
  %s2 = inlined_call_operand.vmem [shape: f32[1,128], index: 2, kind: input, shape index: {}]
  %s3 = inlined_call_operand.hbm [shape: f32[512,128], index: 3, kind: output, shape index: {}]
  %s4 = sld [smem:[#allocation0]]
  $region22: #{tpu_custom_call.1} parent=0
    _
  %s6 = ssub.s32 1, %s4
  %s7 = scalar_select 0, %s6, %s4
  $region1: #{tpu_custom_call.1} parent=0
    #allocation2 [shape = 'u8[262144]{0}', space=vmem, size = 0x40000, scoped, tag = 'output window, operand 0, single buffered']
    #allocation3 [shape = 's32[1]{0}', space=sflag, size = 0x4, scoped, tag = 'scoped memory for tpu_custom_call.1']
    %8 = vsyncpa [#allocation3], 0
    // Predicated region
    $region2: #{tpu_custom_call.1} parent=1 // pred_check
      _
    $region3: #{tpu_custom_call.1} parent=1 // pred_check_branch
      %10 = sbr.rel (0) target = $region5
    $region4: #{tpu_custom_call.1} parent=1 // pred_region
      _
    $region5: #{tpu_custom_call.1} parent=1 // pred_fallthru
      _
    // Predicated region
    $region6: #{tpu_custom_call.1} parent=1 // pred_check
      _
    $region7: #{tpu_custom_call.1} parent=1 // pred_check_branch
      %12 = sbr.rel (0) target = $region9
    $region8: #{tpu_custom_call.1} parent=1 // pred_region
      _
    $region9: #{tpu_custom_call.1} parent=1 // pred_fallthru
      _
    // Predicated region
    $region10: #{tpu_custom_call.1} parent=1 // pred_check
      _
    $region11: #{tpu_custom_call.1} parent=1 // pred_check_branch
      %14 = sbr.rel (0) target = $region13
    $region12: #{tpu_custom_call.1} parent=1 // pred_region
      _
    $region13: #{tpu_custom_call.1} parent=1 // pred_fallthru
      _
    %v15 = vld [vmem:[%s0] sm:$0xff]
    %v16 = vld [vmem:[%s0 + $0x8] sm:$0xff]
    %v17 = vld [vmem:[%s0 + $0x10] sm:$0xff]
    %v18 = vld [vmem:[%s0 + $0x18] sm:$0xff]
    %v19 = vld [vmem:[%s0 + $0x20] sm:$0xff]
    %v20 = vld [vmem:[%s0 + $0x28] sm:$0xff]
    %v21 = vld [vmem:[%s0 + $0x30] sm:$0xff]
    %v22 = vld [vmem:[%s0 + $0x38] sm:$0xff]
    %v23 = vld [vmem:[%s0 + $0x40] sm:$0xff]
    %v24 = vld [vmem:[%s0 + $0x48] sm:$0xff]
    %v25 = vld [vmem:[%s0 + $0x50] sm:$0xff]
    %v26 = vld [vmem:[%s0 + $0x58] sm:$0xff]
    %v27 = vld [vmem:[%s0 + $0x60] sm:$0xff]
    %v28 = vld [vmem:[%s0 + $0x68] sm:$0xff]
    %v29 = vld [vmem:[%s0 + $0x70] sm:$0xff]
    %v30 = vld [vmem:[%s0 + $0x78] sm:$0xff]
    %v31 = vld [vmem:[%s0 + $0x80] sm:$0xff]
    %v32 = vld [vmem:[%s0 + $0x88] sm:$0xff]
    %v33 = vld [vmem:[%s0 + $0x90] sm:$0xff]
    %v34 = vld [vmem:[%s0 + $0x98] sm:$0xff]
    %v35 = vld [vmem:[%s0 + $0xa0] sm:$0xff]
    %v36 = vld [vmem:[%s0 + $0xa8] sm:$0xff]
    %v37 = vld [vmem:[%s0 + $0xb0] sm:$0xff]
    %v38 = vld [vmem:[%s0 + $0xb8] sm:$0xff]
    %v39 = vld [vmem:[%s0 + $0xc0] sm:$0xff]
    %v40 = vld [vmem:[%s0 + $0xc8] sm:$0xff]
    %v41 = vld [vmem:[%s0 + $0xd0] sm:$0xff]
    %v42 = vld [vmem:[%s0 + $0xd8] sm:$0xff]
    %v43 = vld [vmem:[%s0 + $0xe0] sm:$0xff]
    %v44 = vld [vmem:[%s0 + $0xe8] sm:$0xff]
    %v45 = vld [vmem:[%s0 + $0xf0] sm:$0xff]
    %v46 = vld [vmem:[%s0 + $0xf8] sm:$0xff]
    %v47 = vld [vmem:[%s0 + $0x100] sm:$0xff]
    %v48 = vld [vmem:[%s0 + $0x108] sm:$0xff]
    %v49 = vld [vmem:[%s0 + $0x110] sm:$0xff]
    %v50 = vld [vmem:[%s0 + $0x118] sm:$0xff]
    %v51 = vld [vmem:[%s0 + $0x120] sm:$0xff]
    %v52 = vld [vmem:[%s0 + $0x128] sm:$0xff]
    %v53 = vld [vmem:[%s0 + $0x130] sm:$0xff]
    %v54 = vld [vmem:[%s0 + $0x138] sm:$0xff]
    %v55 = vld [vmem:[%s0 + $0x140] sm:$0xff]
    %v56 = vld [vmem:[%s0 + $0x148] sm:$0xff]
    %v57 = vld [vmem:[%s0 + $0x150] sm:$0xff]
    %v58 = vld [vmem:[%s0 + $0x158] sm:$0xff]
    %v59 = vld [vmem:[%s0 + $0x160] sm:$0xff]
    %v60 = vld [vmem:[%s0 + $0x168] sm:$0xff]
    %v61 = vld [vmem:[%s0 + $0x170] sm:$0xff]
    %v62 = vld [vmem:[%s0 + $0x178] sm:$0xff]
    %v63 = vld [vmem:[%s0 + $0x180] sm:$0xff]
    %v64 = vld [vmem:[%s0 + $0x188] sm:$0xff]
    %v65 = vld [vmem:[%s0 + $0x190] sm:$0xff]
    %v66 = vld [vmem:[%s0 + $0x198] sm:$0xff]
    %v67 = vld [vmem:[%s0 + $0x1a0] sm:$0xff]
    %v68 = vld [vmem:[%s0 + $0x1a8] sm:$0xff]
    %v69 = vld [vmem:[%s0 + $0x1b0] sm:$0xff]
    %v70 = vld [vmem:[%s0 + $0x1b8] sm:$0xff]
    %v71 = vld [vmem:[%s0 + $0x1c0] sm:$0xff]
    %v72 = vld [vmem:[%s0 + $0x1c8] sm:$0xff]
    %v73 = vld [vmem:[%s0 + $0x1d0] sm:$0xff]
    %v74 = vld [vmem:[%s0 + $0x1d8] sm:$0xff]
    %v75 = vld [vmem:[%s0 + $0x1e0] sm:$0xff]
    %v76 = vld [vmem:[%s0 + $0x1e8] sm:$0xff]
    %v77 = vld [vmem:[%s0 + $0x1f0] sm:$0xff]
    %v78 = vld [vmem:[%s0 + $0x1f8] sm:$0xff]
    %v79 = vld [vmem:[%s1] sm:$0xf]
    %v80 = vld [vmem:[%s2] sm:$0x1]
    %82 = vset.pattern.permute.xlu0 0
    %83 = vperm.xlu0 %82, %v15
    %v84 = vpop.permute.xlu0 %83
    %87 = vset.pattern.permute.xlu0 0
    %88 = vperm.xlu0 %87, %v16
    %v89 = vpop.permute.xlu0 %88
    %92 = vset.pattern.permute.xlu0 0
    %93 = vperm.xlu0 %92, %v17
    %v94 = vpop.permute.xlu0 %93
    %97 = vset.pattern.permute.xlu0 0
    %98 = vperm.xlu0 %97, %v18
    %v99 = vpop.permute.xlu0 %98
    %102 = vset.pattern.permute.xlu0 0
    %103 = vperm.xlu0 %102, %v19
    %v104 = vpop.permute.xlu0 %103
    %107 = vset.pattern.permute.xlu0 0
    %108 = vperm.xlu0 %107, %v20
    %v109 = vpop.permute.xlu0 %108
    %112 = vset.pattern.permute.xlu0 0
    %113 = vperm.xlu0 %112, %v21
    %v114 = vpop.permute.xlu0 %113
    %117 = vset.pattern.permute.xlu0 0
    %118 = vperm.xlu0 %117, %v22
    %v119 = vpop.permute.xlu0 %118
    %122 = vset.pattern.permute.xlu0 0
    %123 = vperm.xlu0 %122, %v23
    %v124 = vpop.permute.xlu0 %123
    %127 = vset.pattern.permute.xlu0 0
    %128 = vperm.xlu0 %127, %v24
    %v129 = vpop.permute.xlu0 %128
    %132 = vset.pattern.permute.xlu0 0
    %133 = vperm.xlu0 %132, %v25
    %v134 = vpop.permute.xlu0 %133
    %137 = vset.pattern.permute.xlu0 0
    %138 = vperm.xlu0 %137, %v26
    %v139 = vpop.permute.xlu0 %138
    %142 = vset.pattern.permute.xlu0 0
    %143 = vperm.xlu0 %142, %v27
    %v144 = vpop.permute.xlu0 %143
    %147 = vset.pattern.permute.xlu0 0
    %148 = vperm.xlu0 %147, %v28
    %v149 = vpop.permute.xlu0 %148
    %152 = vset.pattern.permute.xlu0 0
    %153 = vperm.xlu0 %152, %v29
    %v154 = vpop.permute.xlu0 %153
    %157 = vset.pattern.permute.xlu0 0
    %158 = vperm.xlu0 %157, %v30
    %v159 = vpop.permute.xlu0 %158
    %162 = vset.pattern.permute.xlu0 0
    %163 = vperm.xlu0 %162, %v31
    %v164 = vpop.permute.xlu0 %163
    %167 = vset.pattern.permute.xlu0 0
    %168 = vperm.xlu0 %167, %v32
    %v169 = vpop.permute.xlu0 %168
    %172 = vset.pattern.permute.xlu0 0
    %173 = vperm.xlu0 %172, %v33
    %v174 = vpop.permute.xlu0 %173
    %177 = vset.pattern.permute.xlu0 0
    %178 = vperm.xlu0 %177, %v34
    %v179 = vpop.permute.xlu0 %178
    %182 = vset.pattern.permute.xlu0 0
    %183 = vperm.xlu0 %182, %v35
    %v184 = vpop.permute.xlu0 %183
    %187 = vset.pattern.permute.xlu0 0
    %188 = vperm.xlu0 %187, %v36
    %v189 = vpop.permute.xlu0 %188
    %192 = vset.pattern.permute.xlu0 0
    %193 = vperm.xlu0 %192, %v37
    %v194 = vpop.permute.xlu0 %193
    %197 = vset.pattern.permute.xlu0 0
    %198 = vperm.xlu0 %197, %v38
    %v199 = vpop.permute.xlu0 %198
    %202 = vset.pattern.permute.xlu0 0
    %203 = vperm.xlu0 %202, %v39
    %v204 = vpop.permute.xlu0 %203
    %207 = vset.pattern.permute.xlu0 0
    %208 = vperm.xlu0 %207, %v40
    %v209 = vpop.permute.xlu0 %208
    %212 = vset.pattern.permute.xlu0 0
    %213 = vperm.xlu0 %212, %v41
    %v214 = vpop.permute.xlu0 %213
    %217 = vset.pattern.permute.xlu0 0
    %218 = vperm.xlu0 %217, %v42
    %v219 = vpop.permute.xlu0 %218
    %222 = vset.pattern.permute.xlu0 0
    %223 = vperm.xlu0 %222, %v43
    %v224 = vpop.permute.xlu0 %223
    %227 = vset.pattern.permute.xlu0 0
    %228 = vperm.xlu0 %227, %v44
    %v229 = vpop.permute.xlu0 %228
    %232 = vset.pattern.permute.xlu0 0
    %233 = vperm.xlu0 %232, %v45
    %v234 = vpop.permute.xlu0 %233
    %237 = vset.pattern.permute.xlu0 0
    %238 = vperm.xlu0 %237, %v46
    %v239 = vpop.permute.xlu0 %238
    %242 = vset.pattern.permute.xlu0 0
    %243 = vperm.xlu0 %242, %v47
    %v244 = vpop.permute.xlu0 %243
    %247 = vset.pattern.permute.xlu0 0
    %248 = vperm.xlu0 %247, %v48
    %v249 = vpop.permute.xlu0 %248
    %252 = vset.pattern.permute.xlu0 0
    %253 = vperm.xlu0 %252, %v49
    %v254 = vpop.permute.xlu0 %253
    %257 = vset.pattern.permute.xlu0 0
    %258 = vperm.xlu0 %257, %v50
    %v259 = vpop.permute.xlu0 %258
    %262 = vset.pattern.permute.xlu0 0
    %263 = vperm.xlu0 %262, %v51
    %v264 = vpop.permute.xlu0 %263
    %267 = vset.pattern.permute.xlu0 0
    %268 = vperm.xlu0 %267, %v52
    %v269 = vpop.permute.xlu0 %268
    %272 = vset.pattern.permute.xlu0 0
    %273 = vperm.xlu0 %272, %v53
    %v274 = vpop.permute.xlu0 %273
    %277 = vset.pattern.permute.xlu0 0
    %278 = vperm.xlu0 %277, %v54
    %v279 = vpop.permute.xlu0 %278
    %282 = vset.pattern.permute.xlu0 0
    %283 = vperm.xlu0 %282, %v55
    %v284 = vpop.permute.xlu0 %283
    %287 = vset.pattern.permute.xlu0 0
    %288 = vperm.xlu0 %287, %v56
    %v289 = vpop.permute.xlu0 %288
    %292 = vset.pattern.permute.xlu0 0
    %293 = vperm.xlu0 %292, %v57
    %v294 = vpop.permute.xlu0 %293
    %297 = vset.pattern.permute.xlu0 0
    %298 = vperm.xlu0 %297, %v58
    %v299 = vpop.permute.xlu0 %298
    %302 = vset.pattern.permute.xlu0 0
    %303 = vperm.xlu0 %302, %v59
    %v304 = vpop.permute.xlu0 %303
    %307 = vset.pattern.permute.xlu0 0
    %308 = vperm.xlu0 %307, %v60
    %v309 = vpop.permute.xlu0 %308
    %312 = vset.pattern.permute.xlu0 0
    %313 = vperm.xlu0 %312, %v61
    %v314 = vpop.permute.xlu0 %313
    %317 = vset.pattern.permute.xlu0 0
    %318 = vperm.xlu0 %317, %v62
    %v319 = vpop.permute.xlu0 %318
    %322 = vset.pattern.permute.xlu0 0
    %323 = vperm.xlu0 %322, %v63
    %v324 = vpop.permute.xlu0 %323
    %327 = vset.pattern.permute.xlu0 0
    %328 = vperm.xlu0 %327, %v64
    %v329 = vpop.permute.xlu0 %328
    %332 = vset.pattern.permute.xlu0 0
    %333 = vperm.xlu0 %332, %v65
    %v334 = vpop.permute.xlu0 %333
    %337 = vset.pattern.permute.xlu0 0
    %338 = vperm.xlu0 %337, %v66
    %v339 = vpop.permute.xlu0 %338
    %342 = vset.pattern.permute.xlu0 0
    %343 = vperm.xlu0 %342, %v67
    %v344 = vpop.permute.xlu0 %343
    %347 = vset.pattern.permute.xlu0 0
    %348 = vperm.xlu0 %347, %v68
    %v349 = vpop.permute.xlu0 %348
    %352 = vset.pattern.permute.xlu0 0
    %353 = vperm.xlu0 %352, %v69
    %v354 = vpop.permute.xlu0 %353
    %357 = vset.pattern.permute.xlu0 0
    %358 = vperm.xlu0 %357, %v70
    %v359 = vpop.permute.xlu0 %358
    %362 = vset.pattern.permute.xlu0 0
    %363 = vperm.xlu0 %362, %v71
    %v364 = vpop.permute.xlu0 %363
    %367 = vset.pattern.permute.xlu0 0
    %368 = vperm.xlu0 %367, %v72
    %v369 = vpop.permute.xlu0 %368
    %372 = vset.pattern.permute.xlu0 0
    %373 = vperm.xlu0 %372, %v73
    %v374 = vpop.permute.xlu0 %373
    %377 = vset.pattern.permute.xlu0 0
    %378 = vperm.xlu0 %377, %v74
    %v379 = vpop.permute.xlu0 %378
    %382 = vset.pattern.permute.xlu0 0
    %383 = vperm.xlu0 %382, %v75
    %v384 = vpop.permute.xlu0 %383
    %387 = vset.pattern.permute.xlu0 0
    %388 = vperm.xlu0 %387, %v76
    %v389 = vpop.permute.xlu0 %388
    %392 = vset.pattern.permute.xlu0 0
    %393 = vperm.xlu0 %392, %v77
    %v394 = vpop.permute.xlu0 %393
    %397 = vset.pattern.permute.xlu0 0
    %398 = vperm.xlu0 %397, %v78
    %v399 = vpop.permute.xlu0 %398
    %v401 = vlaneseq
    %v402 = vshrl.u32 %v401, 7
    %v403 = vsub.s32 0, %v402
    %v404 = vrot.slane %v79, %v403
    %v405 = vmul.f32 %v84, %v404
    %v406 = vmul.f32 %v89, %v404
    %v407 = vmul.f32 %v94, %v404
    %v408 = vmul.f32 %v99, %v404
    %v409 = vmul.f32 %v104, %v404
    %v410 = vmul.f32 %v109, %v404
    %v411 = vmul.f32 %v114, %v404
    %v412 = vmul.f32 %v119, %v404
    %v413 = vmul.f32 %v124, %v404
    %v414 = vmul.f32 %v129, %v404
    %v415 = vmul.f32 %v134, %v404
    %v416 = vmul.f32 %v139, %v404
    %v417 = vmul.f32 %v144, %v404
    %v418 = vmul.f32 %v149, %v404
    %v419 = vmul.f32 %v154, %v404
    %v420 = vmul.f32 %v159, %v404
    %v421 = vmul.f32 %v164, %v404
    %v422 = vmul.f32 %v169, %v404
    %v423 = vmul.f32 %v174, %v404
    %v424 = vmul.f32 %v179, %v404
    %v425 = vmul.f32 %v184, %v404
    %v426 = vmul.f32 %v189, %v404
    %v427 = vmul.f32 %v194, %v404
    %v428 = vmul.f32 %v199, %v404
    %v429 = vmul.f32 %v204, %v404
    %v430 = vmul.f32 %v209, %v404
    %v431 = vmul.f32 %v214, %v404
    %v432 = vmul.f32 %v219, %v404
    %v433 = vmul.f32 %v224, %v404
    %v434 = vmul.f32 %v229, %v404
    %v435 = vmul.f32 %v234, %v404
    %v436 = vmul.f32 %v239, %v404
    %v437 = vmul.f32 %v244, %v404
    %v438 = vmul.f32 %v249, %v404
    %v439 = vmul.f32 %v254, %v404
    %v440 = vmul.f32 %v259, %v404
    %v441 = vmul.f32 %v264, %v404
    %v442 = vmul.f32 %v269, %v404
    %v443 = vmul.f32 %v274, %v404
    %v444 = vmul.f32 %v279, %v404
    %v445 = vmul.f32 %v284, %v404
    %v446 = vmul.f32 %v289, %v404
    %v447 = vmul.f32 %v294, %v404
    %v448 = vmul.f32 %v299, %v404
    %v449 = vmul.f32 %v304, %v404
    %v450 = vmul.f32 %v309, %v404
    %v451 = vmul.f32 %v314, %v404
    %v452 = vmul.f32 %v319, %v404
    %v453 = vmul.f32 %v324, %v404
    %v454 = vmul.f32 %v329, %v404
    %v455 = vmul.f32 %v334, %v404
    %v456 = vmul.f32 %v339, %v404
    %v457 = vmul.f32 %v344, %v404
    %v458 = vmul.f32 %v349, %v404
    %v459 = vmul.f32 %v354, %v404
    %v460 = vmul.f32 %v359, %v404
    %v461 = vmul.f32 %v364, %v404
    %v462 = vmul.f32 %v369, %v404
    %v463 = vmul.f32 %v374, %v404
    %v464 = vmul.f32 %v379, %v404
    %v465 = vmul.f32 %v384, %v404
    %v466 = vmul.f32 %v389, %v404
    %v467 = vmul.f32 %v394, %v404
    %v468 = vmul.f32 %v399, %v404
    %v470 = vlaneseq
    %v471 = vshrl.u32 %v470, 7
    %v472 = vsub.s32 0, %v471
    %v473 = vrot.slane %v80, %v472
    %v475 = vadd.f32 %v473, %v405
    %v476 = vadd.f32 %v473, %v406
    %v477 = vadd.f32 %v473, %v407
    %v478 = vadd.f32 %v473, %v408
    %v479 = vadd.f32 %v473, %v409
    %v480 = vadd.f32 %v473, %v410
    %v481 = vadd.f32 %v473, %v411
    %v482 = vadd.f32 %v473, %v412
    %v483 = vadd.f32 %v473, %v413
    %v484 = vadd.f32 %v473, %v414
    %v485 = vadd.f32 %v473, %v415
    %v486 = vadd.f32 %v473, %v416
    %v487 = vadd.f32 %v473, %v417
    %v488 = vadd.f32 %v473, %v418
    %v489 = vadd.f32 %v473, %v419
    %v490 = vadd.f32 %v473, %v420
    %v491 = vadd.f32 %v473, %v421
    %v492 = vadd.f32 %v473, %v422
    %v493 = vadd.f32 %v473, %v423
    %v494 = vadd.f32 %v473, %v424
    %v495 = vadd.f32 %v473, %v425
    %v496 = vadd.f32 %v473, %v426
    %v497 = vadd.f32 %v473, %v427
    %v498 = vadd.f32 %v473, %v428
    %v499 = vadd.f32 %v473, %v429
    %v500 = vadd.f32 %v473, %v430
    %v501 = vadd.f32 %v473, %v431
    %v502 = vadd.f32 %v473, %v432
    %v503 = vadd.f32 %v473, %v433
    %v504 = vadd.f32 %v473, %v434
    %v505 = vadd.f32 %v473, %v435
    %v506 = vadd.f32 %v473, %v436
    %v507 = vadd.f32 %v473, %v437
    %v508 = vadd.f32 %v473, %v438
    %v509 = vadd.f32 %v473, %v439
    %v510 = vadd.f32 %v473, %v440
    %v511 = vadd.f32 %v473, %v441
    %v512 = vadd.f32 %v473, %v442
    %v513 = vadd.f32 %v473, %v443
    %v514 = vadd.f32 %v473, %v444
    %v515 = vadd.f32 %v473, %v445
    %v516 = vadd.f32 %v473, %v446
    %v517 = vadd.f32 %v473, %v447
    %v518 = vadd.f32 %v473, %v448
    %v519 = vadd.f32 %v473, %v449
    %v520 = vadd.f32 %v473, %v450
    %v521 = vadd.f32 %v473, %v451
    %v522 = vadd.f32 %v473, %v452
    %v523 = vadd.f32 %v473, %v453
    %v524 = vadd.f32 %v473, %v454
    %v525 = vadd.f32 %v473, %v455
    %v526 = vadd.f32 %v473, %v456
    %v527 = vadd.f32 %v473, %v457
    %v528 = vadd.f32 %v473, %v458
    %v529 = vadd.f32 %v473, %v459
    %v530 = vadd.f32 %v473, %v460
    %v531 = vadd.f32 %v473, %v461
    %v532 = vadd.f32 %v473, %v462
    %v533 = vadd.f32 %v473, %v463
    %v534 = vadd.f32 %v473, %v464
    %v535 = vadd.f32 %v473, %v465
    %v536 = vadd.f32 %v473, %v466
    %v537 = vadd.f32 %v473, %v467
    %v538 = vadd.f32 %v473, %v468
    %539 = vset.pattern.permute.xlu0 1
    %540 = vperm.xlu0 %539, %v15
    %v541 = vpop.permute.xlu0 %540
    %543 = vset.pattern.permute.xlu0 1
    %544 = vperm.xlu0 %543, %v16
    %v545 = vpop.permute.xlu0 %544
    %547 = vset.pattern.permute.xlu0 1
    %548 = vperm.xlu0 %547, %v17
    %v549 = vpop.permute.xlu0 %548
    %551 = vset.pattern.permute.xlu0 1
    %552 = vperm.xlu0 %551, %v18
    %v553 = vpop.permute.xlu0 %552
    %555 = vset.pattern.permute.xlu0 1
    %556 = vperm.xlu0 %555, %v19
    %v557 = vpop.permute.xlu0 %556
    %559 = vset.pattern.permute.xlu0 1
    %560 = vperm.xlu0 %559, %v20
    %v561 = vpop.permute.xlu0 %560
    %563 = vset.pattern.permute.xlu0 1
    %564 = vperm.xlu0 %563, %v21
    %v565 = vpop.permute.xlu0 %564
    %567 = vset.pattern.permute.xlu0 1
    %568 = vperm.xlu0 %567, %v22
    %v569 = vpop.permute.xlu0 %568
    %571 = vset.pattern.permute.xlu0 1
    %572 = vperm.xlu0 %571, %v23
    %v573 = vpop.permute.xlu0 %572
    %575 = vset.pattern.permute.xlu0 1
    %576 = vperm.xlu0 %575, %v24
    %v577 = vpop.permute.xlu0 %576
    %579 = vset.pattern.permute.xlu0 1
    %580 = vperm.xlu0 %579, %v25
    %v581 = vpop.permute.xlu0 %580
    %583 = vset.pattern.permute.xlu0 1
    %584 = vperm.xlu0 %583, %v26
    %v585 = vpop.permute.xlu0 %584
    %587 = vset.pattern.permute.xlu0 1
    %588 = vperm.xlu0 %587, %v27
    %v589 = vpop.permute.xlu0 %588
    %591 = vset.pattern.permute.xlu0 1
    %592 = vperm.xlu0 %591, %v28
    %v593 = vpop.permute.xlu0 %592
    %595 = vset.pattern.permute.xlu0 1
    %596 = vperm.xlu0 %595, %v29
    %v597 = vpop.permute.xlu0 %596
    %599 = vset.pattern.permute.xlu0 1
    %600 = vperm.xlu0 %599, %v30
    %v601 = vpop.permute.xlu0 %600
    %603 = vset.pattern.permute.xlu0 1
    %604 = vperm.xlu0 %603, %v31
    %v605 = vpop.permute.xlu0 %604
    %607 = vset.pattern.permute.xlu0 1
    %608 = vperm.xlu0 %607, %v32
    %v609 = vpop.permute.xlu0 %608
    %611 = vset.pattern.permute.xlu0 1
    %612 = vperm.xlu0 %611, %v33
    %v613 = vpop.permute.xlu0 %612
    %615 = vset.pattern.permute.xlu0 1
    %616 = vperm.xlu0 %615, %v34
    %v617 = vpop.permute.xlu0 %616
    %619 = vset.pattern.permute.xlu0 1
    %620 = vperm.xlu0 %619, %v35
    %v621 = vpop.permute.xlu0 %620
    %623 = vset.pattern.permute.xlu0 1
    %624 = vperm.xlu0 %623, %v36
    %v625 = vpop.permute.xlu0 %624
    %627 = vset.pattern.permute.xlu0 1
    %628 = vperm.xlu0 %627, %v37
    %v629 = vpop.permute.xlu0 %628
    %631 = vset.pattern.permute.xlu0 1
    %632 = vperm.xlu0 %631, %v38
    %v633 = vpop.permute.xlu0 %632
    %635 = vset.pattern.permute.xlu0 1
    %636 = vperm.xlu0 %635, %v39
    %v637 = vpop.permute.xlu0 %636
    %639 = vset.pattern.permute.xlu0 1
    %640 = vperm.xlu0 %639, %v40
    %v641 = vpop.permute.xlu0 %640
    %643 = vset.pattern.permute.xlu0 1
    %644 = vperm.xlu0 %643, %v41
    %v645 = vpop.permute.xlu0 %644
    %647 = vset.pattern.permute.xlu0 1
    %648 = vperm.xlu0 %647, %v42
    %v649 = vpop.permute.xlu0 %648
    %651 = vset.pattern.permute.xlu0 1
    %652 = vperm.xlu0 %651, %v43
    %v653 = vpop.permute.xlu0 %652
    %655 = vset.pattern.permute.xlu0 1
    %656 = vperm.xlu0 %655, %v44
    %v657 = vpop.permute.xlu0 %656
    %659 = vset.pattern.permute.xlu0 1
    %660 = vperm.xlu0 %659, %v45
    %v661 = vpop.permute.xlu0 %660
    %663 = vset.pattern.permute.xlu0 1
    %664 = vperm.xlu0 %663, %v46
    %v665 = vpop.permute.xlu0 %664
    %667 = vset.pattern.permute.xlu0 1
    %668 = vperm.xlu0 %667, %v47
    %v669 = vpop.permute.xlu0 %668
    %671 = vset.pattern.permute.xlu0 1
    %672 = vperm.xlu0 %671, %v48
    %v673 = vpop.permute.xlu0 %672
    %675 = vset.pattern.permute.xlu0 1
    %676 = vperm.xlu0 %675, %v49
    %v677 = vpop.permute.xlu0 %676
    %679 = vset.pattern.permute.xlu0 1
    %680 = vperm.xlu0 %679, %v50
    %v681 = vpop.permute.xlu0 %680
    %683 = vset.pattern.permute.xlu0 1
    %684 = vperm.xlu0 %683, %v51
    %v685 = vpop.permute.xlu0 %684
    %687 = vset.pattern.permute.xlu0 1
    %688 = vperm.xlu0 %687, %v52
    %v689 = vpop.permute.xlu0 %688
    %691 = vset.pattern.permute.xlu0 1
    %692 = vperm.xlu0 %691, %v53
    %v693 = vpop.permute.xlu0 %692
    %695 = vset.pattern.permute.xlu0 1
    %696 = vperm.xlu0 %695, %v54
    %v697 = vpop.permute.xlu0 %696
    %699 = vset.pattern.permute.xlu0 1
    %700 = vperm.xlu0 %699, %v55
    %v701 = vpop.permute.xlu0 %700
    %703 = vset.pattern.permute.xlu0 1
    %704 = vperm.xlu0 %703, %v56
    %v705 = vpop.permute.xlu0 %704
    %707 = vset.pattern.permute.xlu0 1
    %708 = vperm.xlu0 %707, %v57
    %v709 = vpop.permute.xlu0 %708
    %711 = vset.pattern.permute.xlu0 1
    %712 = vperm.xlu0 %711, %v58
    %v713 = vpop.permute.xlu0 %712
    %715 = vset.pattern.permute.xlu0 1
    %716 = vperm.xlu0 %715, %v59
    %v717 = vpop.permute.xlu0 %716
    %719 = vset.pattern.permute.xlu0 1
    %720 = vperm.xlu0 %719, %v60
    %v721 = vpop.permute.xlu0 %720
    %723 = vset.pattern.permute.xlu0 1
    %724 = vperm.xlu0 %723, %v61
    %v725 = vpop.permute.xlu0 %724
    %727 = vset.pattern.permute.xlu0 1
    %728 = vperm.xlu0 %727, %v62
    %v729 = vpop.permute.xlu0 %728
    %731 = vset.pattern.permute.xlu0 1
    %732 = vperm.xlu0 %731, %v63
    %v733 = vpop.permute.xlu0 %732
    %735 = vset.pattern.permute.xlu0 1
    %736 = vperm.xlu0 %735, %v64
    %v737 = vpop.permute.xlu0 %736
    %739 = vset.pattern.permute.xlu0 1
    %740 = vperm.xlu0 %739, %v65
    %v741 = vpop.permute.xlu0 %740
    %743 = vset.pattern.permute.xlu0 1
    %744 = vperm.xlu0 %743, %v66
    %v745 = vpop.permute.xlu0 %744
    %747 = vset.pattern.permute.xlu0 1
    %748 = vperm.xlu0 %747, %v67
    %v749 = vpop.permute.xlu0 %748
    %751 = vset.pattern.permute.xlu0 1
    %752 = vperm.xlu0 %751, %v68
    %v753 = vpop.permute.xlu0 %752
    %755 = vset.pattern.permute.xlu0 1
    %756 = vperm.xlu0 %755, %v69
    %v757 = vpop.permute.xlu0 %756
    %759 = vset.pattern.permute.xlu0 1
    %760 = vperm.xlu0 %759, %v70
    %v761 = vpop.permute.xlu0 %760
    %763 = vset.pattern.permute.xlu0 1
    %764 = vperm.xlu0 %763, %v71
    %v765 = vpop.permute.xlu0 %764
    %767 = vset.pattern.permute.xlu0 1
    %768 = vperm.xlu0 %767, %v72
    %v769 = vpop.permute.xlu0 %768
    %771 = vset.pattern.permute.xlu0 1
    %772 = vperm.xlu0 %771, %v73
    %v773 = vpop.permute.xlu0 %772
    %775 = vset.pattern.permute.xlu0 1
    %776 = vperm.xlu0 %775, %v74
    %v777 = vpop.permute.xlu0 %776
    %779 = vset.pattern.permute.xlu0 1
    %780 = vperm.xlu0 %779, %v75
    %v781 = vpop.permute.xlu0 %780
    %783 = vset.pattern.permute.xlu0 1
    %784 = vperm.xlu0 %783, %v76
    %v785 = vpop.permute.xlu0 %784
    %787 = vset.pattern.permute.xlu0 1
    %788 = vperm.xlu0 %787, %v77
    %v789 = vpop.permute.xlu0 %788
    %791 = vset.pattern.permute.xlu0 1
    %792 = vperm.xlu0 %791, %v78
    %v793 = vpop.permute.xlu0 %792
    %v795 = vlaneseq
    %v796 = vshrl.u32 %v795, 7
    %v797 = vsub.s32 1, %v796
    %v798 = vrot.slane %v79, %v797
    %v799 = vmul.f32 %v541, %v798
    %v800 = vmul.f32 %v545, %v798
    %v801 = vmul.f32 %v549, %v798
    %v802 = vmul.f32 %v553, %v798
    %v803 = vmul.f32 %v557, %v798
    %v804 = vmul.f32 %v561, %v798
    %v805 = vmul.f32 %v565, %v798
    %v806 = vmul.f32 %v569, %v798
    %v807 = vmul.f32 %v573, %v798
    %v808 = vmul.f32 %v577, %v798
    %v809 = vmul.f32 %v581, %v798
    %v810 = vmul.f32 %v585, %v798
    %v811 = vmul.f32 %v589, %v798
    %v812 = vmul.f32 %v593, %v798
    %v813 = vmul.f32 %v597, %v798
    %v814 = vmul.f32 %v601, %v798
    %v815 = vmul.f32 %v605, %v798
    %v816 = vmul.f32 %v609, %v798
    %v817 = vmul.f32 %v613, %v798
    %v818 = vmul.f32 %v617, %v798
    %v819 = vmul.f32 %v621, %v798
    %v820 = vmul.f32 %v625, %v798
    %v821 = vmul.f32 %v629, %v798
    %v822 = vmul.f32 %v633, %v798
    %v823 = vmul.f32 %v637, %v798
    %v824 = vmul.f32 %v641, %v798
    %v825 = vmul.f32 %v645, %v798
    %v826 = vmul.f32 %v649, %v798
    %v827 = vmul.f32 %v653, %v798
    %v828 = vmul.f32 %v657, %v798
    %v829 = vmul.f32 %v661, %v798
    %v830 = vmul.f32 %v665, %v798
    %v831 = vmul.f32 %v669, %v798
    %v832 = vmul.f32 %v673, %v798
    %v833 = vmul.f32 %v677, %v798
    %v834 = vmul.f32 %v681, %v798
    %v835 = vmul.f32 %v685, %v798
    %v836 = vmul.f32 %v689, %v798
    %v837 = vmul.f32 %v693, %v798
    %v838 = vmul.f32 %v697, %v798
    %v839 = vmul.f32 %v701, %v798
    %v840 = vmul.f32 %v705, %v798
    %v841 = vmul.f32 %v709, %v798
    %v842 = vmul.f32 %v713, %v798
    %v843 = vmul.f32 %v717, %v798
    %v844 = vmul.f32 %v721, %v798
    %v845 = vmul.f32 %v725, %v798
    %v846 = vmul.f32 %v729, %v798
    %v847 = vmul.f32 %v733, %v798
    %v848 = vmul.f32 %v737, %v798
    %v849 = vmul.f32 %v741, %v798
    %v850 = vmul.f32 %v745, %v798
    %v851 = vmul.f32 %v749, %v798
    %v852 = vmul.f32 %v753, %v798
    %v853 = vmul.f32 %v757, %v798
    %v854 = vmul.f32 %v761, %v798
    %v855 = vmul.f32 %v765, %v798
    %v856 = vmul.f32 %v769, %v798
    %v857 = vmul.f32 %v773, %v798
    %v858 = vmul.f32 %v777, %v798
    %v859 = vmul.f32 %v781, %v798
    %v860 = vmul.f32 %v785, %v798
    %v861 = vmul.f32 %v789, %v798
    %v862 = vmul.f32 %v793, %v798
    %v863 = vadd.f32 %v475, %v799
    %v864 = vadd.f32 %v476, %v800
    %v865 = vadd.f32 %v477, %v801
    %v866 = vadd.f32 %v478, %v802
    %v867 = vadd.f32 %v479, %v803
    %v868 = vadd.f32 %v480, %v804
    %v869 = vadd.f32 %v481, %v805
    %v870 = vadd.f32 %v482, %v806
    %v871 = vadd.f32 %v483, %v807
    %v872 = vadd.f32 %v484, %v808
    %v873 = vadd.f32 %v485, %v809
    %v874 = vadd.f32 %v486, %v810
    %v875 = vadd.f32 %v487, %v811
    %v876 = vadd.f32 %v488, %v812
    %v877 = vadd.f32 %v489, %v813
    %v878 = vadd.f32 %v490, %v814
    %v879 = vadd.f32 %v491, %v815
    %v880 = vadd.f32 %v492, %v816
    %v881 = vadd.f32 %v493, %v817
    %v882 = vadd.f32 %v494, %v818
    %v883 = vadd.f32 %v495, %v819
    %v884 = vadd.f32 %v496, %v820
    %v885 = vadd.f32 %v497, %v821
    %v886 = vadd.f32 %v498, %v822
    %v887 = vadd.f32 %v499, %v823
    %v888 = vadd.f32 %v500, %v824
    %v889 = vadd.f32 %v501, %v825
    %v890 = vadd.f32 %v502, %v826
    %v891 = vadd.f32 %v503, %v827
    %v892 = vadd.f32 %v504, %v828
    %v893 = vadd.f32 %v505, %v829
    %v894 = vadd.f32 %v506, %v830
    %v895 = vadd.f32 %v507, %v831
    %v896 = vadd.f32 %v508, %v832
    %v897 = vadd.f32 %v509, %v833
    %v898 = vadd.f32 %v510, %v834
    %v899 = vadd.f32 %v511, %v835
    %v900 = vadd.f32 %v512, %v836
    %v901 = vadd.f32 %v513, %v837
    %v902 = vadd.f32 %v514, %v838
    %v903 = vadd.f32 %v515, %v839
    %v904 = vadd.f32 %v516, %v840
    %v905 = vadd.f32 %v517, %v841
    %v906 = vadd.f32 %v518, %v842
    %v907 = vadd.f32 %v519, %v843
    %v908 = vadd.f32 %v520, %v844
    %v909 = vadd.f32 %v521, %v845
    %v910 = vadd.f32 %v522, %v846
    %v911 = vadd.f32 %v523, %v847
    %v912 = vadd.f32 %v524, %v848
    %v913 = vadd.f32 %v525, %v849
    %v914 = vadd.f32 %v526, %v850
    %v915 = vadd.f32 %v527, %v851
    %v916 = vadd.f32 %v528, %v852
    %v917 = vadd.f32 %v529, %v853
    %v918 = vadd.f32 %v530, %v854
    %v919 = vadd.f32 %v531, %v855
    %v920 = vadd.f32 %v532, %v856
    %v921 = vadd.f32 %v533, %v857
    %v922 = vadd.f32 %v534, %v858
    %v923 = vadd.f32 %v535, %v859
    %v924 = vadd.f32 %v536, %v860
    %v925 = vadd.f32 %v537, %v861
    %v926 = vadd.f32 %v538, %v862
    %927 = vset.pattern.permute.xlu0 2
    %928 = vperm.xlu0 %927, %v15
    %v929 = vpop.permute.xlu0 %928
    %931 = vset.pattern.permute.xlu0 2
    %932 = vperm.xlu0 %931, %v16
    %v933 = vpop.permute.xlu0 %932
    %935 = vset.pattern.permute.xlu0 2
    %936 = vperm.xlu0 %935, %v17
    %v937 = vpop.permute.xlu0 %936
    %939 = vset.pattern.permute.xlu0 2
    %940 = vperm.xlu0 %939, %v18
    %v941 = vpop.permute.xlu0 %940
    %943 = vset.pattern.permute.xlu0 2
    %944 = vperm.xlu0 %943, %v19
    %v945 = vpop.permute.xlu0 %944
    %947 = vset.pattern.permute.xlu0 2
    %948 = vperm.xlu0 %947, %v20
    %v949 = vpop.permute.xlu0 %948
    %951 = vset.pattern.permute.xlu0 2
    %952 = vperm.xlu0 %951, %v21
    %v953 = vpop.permute.xlu0 %952
    %955 = vset.pattern.permute.xlu0 2
    %956 = vperm.xlu0 %955, %v22
    %v957 = vpop.permute.xlu0 %956
    %959 = vset.pattern.permute.xlu0 2
    %960 = vperm.xlu0 %959, %v23
    %v961 = vpop.permute.xlu0 %960
    %963 = vset.pattern.permute.xlu0 2
    %964 = vperm.xlu0 %963, %v24
    %v965 = vpop.permute.xlu0 %964
    %967 = vset.pattern.permute.xlu0 2
    %968 = vperm.xlu0 %967, %v25
    %v969 = vpop.permute.xlu0 %968
    %971 = vset.pattern.permute.xlu0 2
    %972 = vperm.xlu0 %971, %v26
    %v973 = vpop.permute.xlu0 %972
    %975 = vset.pattern.permute.xlu0 2
    %976 = vperm.xlu0 %975, %v27
    %v977 = vpop.permute.xlu0 %976
    %979 = vset.pattern.permute.xlu0 2
    %980 = vperm.xlu0 %979, %v28
    %v981 = vpop.permute.xlu0 %980
    %983 = vset.pattern.permute.xlu0 2
    %984 = vperm.xlu0 %983, %v29
    %v985 = vpop.permute.xlu0 %984
    %987 = vset.pattern.permute.xlu0 2
    %988 = vperm.xlu0 %987, %v30
    %v989 = vpop.permute.xlu0 %988
    %991 = vset.pattern.permute.xlu0 2
    %992 = vperm.xlu0 %991, %v31
    %v993 = vpop.permute.xlu0 %992
    %995 = vset.pattern.permute.xlu0 2
    %996 = vperm.xlu0 %995, %v32
    %v997 = vpop.permute.xlu0 %996
    %999 = vset.pattern.permute.xlu0 2
    %1000 = vperm.xlu0 %999, %v33
    %v1001 = vpop.permute.xlu0 %1000
    %1003 = vset.pattern.permute.xlu0 2
    %1004 = vperm.xlu0 %1003, %v34
    %v1005 = vpop.permute.xlu0 %1004
    %1007 = vset.pattern.permute.xlu0 2
    %1008 = vperm.xlu0 %1007, %v35
    %v1009 = vpop.permute.xlu0 %1008
    %1011 = vset.pattern.permute.xlu0 2
    %1012 = vperm.xlu0 %1011, %v36
    %v1013 = vpop.permute.xlu0 %1012
    %1015 = vset.pattern.permute.xlu0 2
    %1016 = vperm.xlu0 %1015, %v37
    %v1017 = vpop.permute.xlu0 %1016
    %1019 = vset.pattern.permute.xlu0 2
    %1020 = vperm.xlu0 %1019, %v38
    %v1021 = vpop.permute.xlu0 %1020
    %1023 = vset.pattern.permute.xlu0 2
    %1024 = vperm.xlu0 %1023, %v39
    %v1025 = vpop.permute.xlu0 %1024
    %1027 = vset.pattern.permute.xlu0 2
    %1028 = vperm.xlu0 %1027, %v40
    %v1029 = vpop.permute.xlu0 %1028
    %1031 = vset.pattern.permute.xlu0 2
    %1032 = vperm.xlu0 %1031, %v41
    %v1033 = vpop.permute.xlu0 %1032
    %1035 = vset.pattern.permute.xlu0 2
    %1036 = vperm.xlu0 %1035, %v42
    %v1037 = vpop.permute.xlu0 %1036
    %1039 = vset.pattern.permute.xlu0 2
    %1040 = vperm.xlu0 %1039, %v43
    %v1041 = vpop.permute.xlu0 %1040
    %1043 = vset.pattern.permute.xlu0 2
    %1044 = vperm.xlu0 %1043, %v44
    %v1045 = vpop.permute.xlu0 %1044
    %1047 = vset.pattern.permute.xlu0 2
    %1048 = vperm.xlu0 %1047, %v45
    %v1049 = vpop.permute.xlu0 %1048
    %1051 = vset.pattern.permute.xlu0 2
    %1052 = vperm.xlu0 %1051, %v46
    %v1053 = vpop.permute.xlu0 %1052
    %1055 = vset.pattern.permute.xlu0 2
    %1056 = vperm.xlu0 %1055, %v47
    %v1057 = vpop.permute.xlu0 %1056
    %1059 = vset.pattern.permute.xlu0 2
    %1060 = vperm.xlu0 %1059, %v48
    %v1061 = vpop.permute.xlu0 %1060
    %1063 = vset.pattern.permute.xlu0 2
    %1064 = vperm.xlu0 %1063, %v49
    %v1065 = vpop.permute.xlu0 %1064
    %1067 = vset.pattern.permute.xlu0 2
    %1068 = vperm.xlu0 %1067, %v50
    %v1069 = vpop.permute.xlu0 %1068
    %1071 = vset.pattern.permute.xlu0 2
    %1072 = vperm.xlu0 %1071, %v51
    %v1073 = vpop.permute.xlu0 %1072
    %1075 = vset.pattern.permute.xlu0 2
    %1076 = vperm.xlu0 %1075, %v52
    %v1077 = vpop.permute.xlu0 %1076
    %1079 = vset.pattern.permute.xlu0 2
    %1080 = vperm.xlu0 %1079, %v53
    %v1081 = vpop.permute.xlu0 %1080
    %1083 = vset.pattern.permute.xlu0 2
    %1084 = vperm.xlu0 %1083, %v54
    %v1085 = vpop.permute.xlu0 %1084
    %1087 = vset.pattern.permute.xlu0 2
    %1088 = vperm.xlu0 %1087, %v55
    %v1089 = vpop.permute.xlu0 %1088
    %1091 = vset.pattern.permute.xlu0 2
    %1092 = vperm.xlu0 %1091, %v56
    %v1093 = vpop.permute.xlu0 %1092
    %1095 = vset.pattern.permute.xlu0 2
    %1096 = vperm.xlu0 %1095, %v57
    %v1097 = vpop.permute.xlu0 %1096
    %1099 = vset.pattern.permute.xlu0 2
    %1100 = vperm.xlu0 %1099, %v58
    %v1101 = vpop.permute.xlu0 %1100
    %1103 = vset.pattern.permute.xlu0 2
    %1104 = vperm.xlu0 %1103, %v59
    %v1105 = vpop.permute.xlu0 %1104
    %1107 = vset.pattern.permute.xlu0 2
    %1108 = vperm.xlu0 %1107, %v60
    %v1109 = vpop.permute.xlu0 %1108
    %1111 = vset.pattern.permute.xlu0 2
    %1112 = vperm.xlu0 %1111, %v61
    %v1113 = vpop.permute.xlu0 %1112
    %1115 = vset.pattern.permute.xlu0 2
    %1116 = vperm.xlu0 %1115, %v62
    %v1117 = vpop.permute.xlu0 %1116
    %1119 = vset.pattern.permute.xlu0 2
    %1120 = vperm.xlu0 %1119, %v63
    %v1121 = vpop.permute.xlu0 %1120
    %1123 = vset.pattern.permute.xlu0 2
    %1124 = vperm.xlu0 %1123, %v64
    %v1125 = vpop.permute.xlu0 %1124
    %1127 = vset.pattern.permute.xlu0 2
    %1128 = vperm.xlu0 %1127, %v65
    %v1129 = vpop.permute.xlu0 %1128
    %1131 = vset.pattern.permute.xlu0 2
    %1132 = vperm.xlu0 %1131, %v66
    %v1133 = vpop.permute.xlu0 %1132
    %1135 = vset.pattern.permute.xlu0 2
    %1136 = vperm.xlu0 %1135, %v67
    %v1137 = vpop.permute.xlu0 %1136
    %1139 = vset.pattern.permute.xlu0 2
    %1140 = vperm.xlu0 %1139, %v68
    %v1141 = vpop.permute.xlu0 %1140
    %1143 = vset.pattern.permute.xlu0 2
    %1144 = vperm.xlu0 %1143, %v69
    %v1145 = vpop.permute.xlu0 %1144
    %1147 = vset.pattern.permute.xlu0 2
    %1148 = vperm.xlu0 %1147, %v70
    %v1149 = vpop.permute.xlu0 %1148
    %1151 = vset.pattern.permute.xlu0 2
    %1152 = vperm.xlu0 %1151, %v71
    %v1153 = vpop.permute.xlu0 %1152
    %1155 = vset.pattern.permute.xlu0 2
    %1156 = vperm.xlu0 %1155, %v72
    %v1157 = vpop.permute.xlu0 %1156
    %1159 = vset.pattern.permute.xlu0 2
    %1160 = vperm.xlu0 %1159, %v73
    %v1161 = vpop.permute.xlu0 %1160
    %1163 = vset.pattern.permute.xlu0 2
    %1164 = vperm.xlu0 %1163, %v74
    %v1165 = vpop.permute.xlu0 %1164
    %1167 = vset.pattern.permute.xlu0 2
    %1168 = vperm.xlu0 %1167, %v75
    %v1169 = vpop.permute.xlu0 %1168
    %1171 = vset.pattern.permute.xlu0 2
    %1172 = vperm.xlu0 %1171, %v76
    %v1173 = vpop.permute.xlu0 %1172
    %1175 = vset.pattern.permute.xlu0 2
    %1176 = vperm.xlu0 %1175, %v77
    %v1177 = vpop.permute.xlu0 %1176
    %1179 = vset.pattern.permute.xlu0 2
    %1180 = vperm.xlu0 %1179, %v78
    %v1181 = vpop.permute.xlu0 %1180
    %v1183 = vlaneseq
    %v1184 = vshrl.u32 %v1183, 7
    %v1185 = vsub.s32 2, %v1184
    %v1186 = vrot.slane %v79, %v1185
    %v1187 = vmul.f32 %v929, %v1186
    %v1188 = vmul.f32 %v933, %v1186
    %v1189 = vmul.f32 %v937, %v1186
    %v1190 = vmul.f32 %v941, %v1186
    %v1191 = vmul.f32 %v945, %v1186
    %v1192 = vmul.f32 %v949, %v1186
    %v1193 = vmul.f32 %v953, %v1186
    %v1194 = vmul.f32 %v957, %v1186
    %v1195 = vmul.f32 %v961, %v1186
    %v1196 = vmul.f32 %v965, %v1186
    %v1197 = vmul.f32 %v969, %v1186
    %v1198 = vmul.f32 %v973, %v1186
    %v1199 = vmul.f32 %v977, %v1186
    %v1200 = vmul.f32 %v981, %v1186
    %v1201 = vmul.f32 %v985, %v1186
    %v1202 = vmul.f32 %v989, %v1186
    %v1203 = vmul.f32 %v993, %v1186
    %v1204 = vmul.f32 %v997, %v1186
    %v1205 = vmul.f32 %v1001, %v1186
    %v1206 = vmul.f32 %v1005, %v1186
    %v1207 = vmul.f32 %v1009, %v1186
    %v1208 = vmul.f32 %v1013, %v1186
    %v1209 = vmul.f32 %v1017, %v1186
    %v1210 = vmul.f32 %v1021, %v1186
    %v1211 = vmul.f32 %v1025, %v1186
    %v1212 = vmul.f32 %v1029, %v1186
    %v1213 = vmul.f32 %v1033, %v1186
    %v1214 = vmul.f32 %v1037, %v1186
    %v1215 = vmul.f32 %v1041, %v1186
    %v1216 = vmul.f32 %v1045, %v1186
    %v1217 = vmul.f32 %v1049, %v1186
    %v1218 = vmul.f32 %v1053, %v1186
    %v1219 = vmul.f32 %v1057, %v1186
    %v1220 = vmul.f32 %v1061, %v1186
    %v1221 = vmul.f32 %v1065, %v1186
    %v1222 = vmul.f32 %v1069, %v1186
    %v1223 = vmul.f32 %v1073, %v1186
    %v1224 = vmul.f32 %v1077, %v1186
    %v1225 = vmul.f32 %v1081, %v1186
    %v1226 = vmul.f32 %v1085, %v1186
    %v1227 = vmul.f32 %v1089, %v1186
    %v1228 = vmul.f32 %v1093, %v1186
    %v1229 = vmul.f32 %v1097, %v1186
    %v1230 = vmul.f32 %v1101, %v1186
    %v1231 = vmul.f32 %v1105, %v1186
    %v1232 = vmul.f32 %v1109, %v1186
    %v1233 = vmul.f32 %v1113, %v1186
    %v1234 = vmul.f32 %v1117, %v1186
    %v1235 = vmul.f32 %v1121, %v1186
    %v1236 = vmul.f32 %v1125, %v1186
    %v1237 = vmul.f32 %v1129, %v1186
    %v1238 = vmul.f32 %v1133, %v1186
    %v1239 = vmul.f32 %v1137, %v1186
    %v1240 = vmul.f32 %v1141, %v1186
    %v1241 = vmul.f32 %v1145, %v1186
    %v1242 = vmul.f32 %v1149, %v1186
    %v1243 = vmul.f32 %v1153, %v1186
    %v1244 = vmul.f32 %v1157, %v1186
    %v1245 = vmul.f32 %v1161, %v1186
    %v1246 = vmul.f32 %v1165, %v1186
    %v1247 = vmul.f32 %v1169, %v1186
    %v1248 = vmul.f32 %v1173, %v1186
    %v1249 = vmul.f32 %v1177, %v1186
    %v1250 = vmul.f32 %v1181, %v1186
    %v1251 = vadd.f32 %v863, %v1187
    %v1252 = vadd.f32 %v864, %v1188
    %v1253 = vadd.f32 %v865, %v1189
    %v1254 = vadd.f32 %v866, %v1190
    %v1255 = vadd.f32 %v867, %v1191
    %v1256 = vadd.f32 %v868, %v1192
    %v1257 = vadd.f32 %v869, %v1193
    %v1258 = vadd.f32 %v870, %v1194
    %v1259 = vadd.f32 %v871, %v1195
    %v1260 = vadd.f32 %v872, %v1196
    %v1261 = vadd.f32 %v873, %v1197
    %v1262 = vadd.f32 %v874, %v1198
    %v1263 = vadd.f32 %v875, %v1199
    %v1264 = vadd.f32 %v876, %v1200
    %v1265 = vadd.f32 %v877, %v1201
    %v1266 = vadd.f32 %v878, %v1202
    %v1267 = vadd.f32 %v879, %v1203
    %v1268 = vadd.f32 %v880, %v1204
    %v1269 = vadd.f32 %v881, %v1205
    %v1270 = vadd.f32 %v882, %v1206
    %v1271 = vadd.f32 %v883, %v1207
    %v1272 = vadd.f32 %v884, %v1208
    %v1273 = vadd.f32 %v885, %v1209
    %v1274 = vadd.f32 %v886, %v1210
    %v1275 = vadd.f32 %v887, %v1211
    %v1276 = vadd.f32 %v888, %v1212
    %v1277 = vadd.f32 %v889, %v1213
    %v1278 = vadd.f32 %v890, %v1214
    %v1279 = vadd.f32 %v891, %v1215
    %v1280 = vadd.f32 %v892, %v1216
    %v1281 = vadd.f32 %v893, %v1217
    %v1282 = vadd.f32 %v894, %v1218
    %v1283 = vadd.f32 %v895, %v1219
    %v1284 = vadd.f32 %v896, %v1220
    %v1285 = vadd.f32 %v897, %v1221
    %v1286 = vadd.f32 %v898, %v1222
    %v1287 = vadd.f32 %v899, %v1223
    %v1288 = vadd.f32 %v900, %v1224
    %v1289 = vadd.f32 %v901, %v1225
    %v1290 = vadd.f32 %v902, %v1226
    %v1291 = vadd.f32 %v903, %v1227
    %v1292 = vadd.f32 %v904, %v1228
    %v1293 = vadd.f32 %v905, %v1229
    %v1294 = vadd.f32 %v906, %v1230
    %v1295 = vadd.f32 %v907, %v1231
    %v1296 = vadd.f32 %v908, %v1232
    %v1297 = vadd.f32 %v909, %v1233
    %v1298 = vadd.f32 %v910, %v1234
    %v1299 = vadd.f32 %v911, %v1235
    %v1300 = vadd.f32 %v912, %v1236
    %v1301 = vadd.f32 %v913, %v1237
    %v1302 = vadd.f32 %v914, %v1238
    %v1303 = vadd.f32 %v915, %v1239
    %v1304 = vadd.f32 %v916, %v1240
    %v1305 = vadd.f32 %v917, %v1241
    %v1306 = vadd.f32 %v918, %v1242
    %v1307 = vadd.f32 %v919, %v1243
    %v1308 = vadd.f32 %v920, %v1244
    %v1309 = vadd.f32 %v921, %v1245
    %v1310 = vadd.f32 %v922, %v1246
    %v1311 = vadd.f32 %v923, %v1247
    %v1312 = vadd.f32 %v924, %v1248
    %v1313 = vadd.f32 %v925, %v1249
    %v1314 = vadd.f32 %v926, %v1250
    %1315 = vset.pattern.permute.xlu0 3
    %1316 = vperm.xlu0 %1315, %v15
    %v1317 = vpop.permute.xlu0 %1316
    %1319 = vset.pattern.permute.xlu0 3
    %1320 = vperm.xlu0 %1319, %v16
    %v1321 = vpop.permute.xlu0 %1320
    %1323 = vset.pattern.permute.xlu0 3
    %1324 = vperm.xlu0 %1323, %v17
    %v1325 = vpop.permute.xlu0 %1324
    %1327 = vset.pattern.permute.xlu0 3
    %1328 = vperm.xlu0 %1327, %v18
    %v1329 = vpop.permute.xlu0 %1328
    %1331 = vset.pattern.permute.xlu0 3
    %1332 = vperm.xlu0 %1331, %v19
    %v1333 = vpop.permute.xlu0 %1332
    %1335 = vset.pattern.permute.xlu0 3
    %1336 = vperm.xlu0 %1335, %v20
    %v1337 = vpop.permute.xlu0 %1336
    %1339 = vset.pattern.permute.xlu0 3
    %1340 = vperm.xlu0 %1339, %v21
    %v1341 = vpop.permute.xlu0 %1340
    %1343 = vset.pattern.permute.xlu0 3
    %1344 = vperm.xlu0 %1343, %v22
    %v1345 = vpop.permute.xlu0 %1344
    %1347 = vset.pattern.permute.xlu0 3
    %1348 = vperm.xlu0 %1347, %v23
    %v1349 = vpop.permute.xlu0 %1348
    %1351 = vset.pattern.permute.xlu0 3
    %1352 = vperm.xlu0 %1351, %v24
    %v1353 = vpop.permute.xlu0 %1352
    %1355 = vset.pattern.permute.xlu0 3
    %1356 = vperm.xlu0 %1355, %v25
    %v1357 = vpop.permute.xlu0 %1356
    %1359 = vset.pattern.permute.xlu0 3
    %1360 = vperm.xlu0 %1359, %v26
    %v1361 = vpop.permute.xlu0 %1360
    %1363 = vset.pattern.permute.xlu0 3
    %1364 = vperm.xlu0 %1363, %v27
    %v1365 = vpop.permute.xlu0 %1364
    %1367 = vset.pattern.permute.xlu0 3
    %1368 = vperm.xlu0 %1367, %v28
    %v1369 = vpop.permute.xlu0 %1368
    %1371 = vset.pattern.permute.xlu0 3
    %1372 = vperm.xlu0 %1371, %v29
    %v1373 = vpop.permute.xlu0 %1372
    %1375 = vset.pattern.permute.xlu0 3
    %1376 = vperm.xlu0 %1375, %v30
    %v1377 = vpop.permute.xlu0 %1376
    %1379 = vset.pattern.permute.xlu0 3
    %1380 = vperm.xlu0 %1379, %v31
    %v1381 = vpop.permute.xlu0 %1380
    %1383 = vset.pattern.permute.xlu0 3
    %1384 = vperm.xlu0 %1383, %v32
    %v1385 = vpop.permute.xlu0 %1384
    %1387 = vset.pattern.permute.xlu0 3
    %1388 = vperm.xlu0 %1387, %v33
    %v1389 = vpop.permute.xlu0 %1388
    %1391 = vset.pattern.permute.xlu0 3
    %1392 = vperm.xlu0 %1391, %v34
    %v1393 = vpop.permute.xlu0 %1392
    %1395 = vset.pattern.permute.xlu0 3
    %1396 = vperm.xlu0 %1395, %v35
    %v1397 = vpop.permute.xlu0 %1396
    %1399 = vset.pattern.permute.xlu0 3
    %1400 = vperm.xlu0 %1399, %v36
    %v1401 = vpop.permute.xlu0 %1400
    %1403 = vset.pattern.permute.xlu0 3
    %1404 = vperm.xlu0 %1403, %v37
    %v1405 = vpop.permute.xlu0 %1404
    %1407 = vset.pattern.permute.xlu0 3
    %1408 = vperm.xlu0 %1407, %v38
    %v1409 = vpop.permute.xlu0 %1408
    %1411 = vset.pattern.permute.xlu0 3
    %1412 = vperm.xlu0 %1411, %v39
    %v1413 = vpop.permute.xlu0 %1412
    %1415 = vset.pattern.permute.xlu0 3
    %1416 = vperm.xlu0 %1415, %v40
    %v1417 = vpop.permute.xlu0 %1416
    %1419 = vset.pattern.permute.xlu0 3
    %1420 = vperm.xlu0 %1419, %v41
    %v1421 = vpop.permute.xlu0 %1420
    %1423 = vset.pattern.permute.xlu0 3
    %1424 = vperm.xlu0 %1423, %v42
    %v1425 = vpop.permute.xlu0 %1424
    %1427 = vset.pattern.permute.xlu0 3
    %1428 = vperm.xlu0 %1427, %v43
    %v1429 = vpop.permute.xlu0 %1428
    %1431 = vset.pattern.permute.xlu0 3
    %1432 = vperm.xlu0 %1431, %v44
    %v1433 = vpop.permute.xlu0 %1432
    %1435 = vset.pattern.permute.xlu0 3
    %1436 = vperm.xlu0 %1435, %v45
    %v1437 = vpop.permute.xlu0 %1436
    %1439 = vset.pattern.permute.xlu0 3
    %1440 = vperm.xlu0 %1439, %v46
    %v1441 = vpop.permute.xlu0 %1440
    %1443 = vset.pattern.permute.xlu0 3
    %1444 = vperm.xlu0 %1443, %v47
    %v1445 = vpop.permute.xlu0 %1444
    %1447 = vset.pattern.permute.xlu0 3
    %1448 = vperm.xlu0 %1447, %v48
    %v1449 = vpop.permute.xlu0 %1448
    %1451 = vset.pattern.permute.xlu0 3
    %1452 = vperm.xlu0 %1451, %v49
    %v1453 = vpop.permute.xlu0 %1452
    %1455 = vset.pattern.permute.xlu0 3
    %1456 = vperm.xlu0 %1455, %v50
    %v1457 = vpop.permute.xlu0 %1456
    %1459 = vset.pattern.permute.xlu0 3
    %1460 = vperm.xlu0 %1459, %v51
    %v1461 = vpop.permute.xlu0 %1460
    %1463 = vset.pattern.permute.xlu0 3
    %1464 = vperm.xlu0 %1463, %v52
    %v1465 = vpop.permute.xlu0 %1464
    %1467 = vset.pattern.permute.xlu0 3
    %1468 = vperm.xlu0 %1467, %v53
    %v1469 = vpop.permute.xlu0 %1468
    %1471 = vset.pattern.permute.xlu0 3
    %1472 = vperm.xlu0 %1471, %v54
    %v1473 = vpop.permute.xlu0 %1472
    %1475 = vset.pattern.permute.xlu0 3
    %1476 = vperm.xlu0 %1475, %v55
    %v1477 = vpop.permute.xlu0 %1476
    %1479 = vset.pattern.permute.xlu0 3
    %1480 = vperm.xlu0 %1479, %v56
    %v1481 = vpop.permute.xlu0 %1480
    %1483 = vset.pattern.permute.xlu0 3
    %1484 = vperm.xlu0 %1483, %v57
    %v1485 = vpop.permute.xlu0 %1484
    %1487 = vset.pattern.permute.xlu0 3
    %1488 = vperm.xlu0 %1487, %v58
    %v1489 = vpop.permute.xlu0 %1488
    %1491 = vset.pattern.permute.xlu0 3
    %1492 = vperm.xlu0 %1491, %v59
    %v1493 = vpop.permute.xlu0 %1492
    %1495 = vset.pattern.permute.xlu0 3
    %1496 = vperm.xlu0 %1495, %v60
    %v1497 = vpop.permute.xlu0 %1496
    %1499 = vset.pattern.permute.xlu0 3
    %1500 = vperm.xlu0 %1499, %v61
    %v1501 = vpop.permute.xlu0 %1500
    %1503 = vset.pattern.permute.xlu0 3
    %1504 = vperm.xlu0 %1503, %v62
    %v1505 = vpop.permute.xlu0 %1504
    %1507 = vset.pattern.permute.xlu0 3
    %1508 = vperm.xlu0 %1507, %v63
    %v1509 = vpop.permute.xlu0 %1508
    %1511 = vset.pattern.permute.xlu0 3
    %1512 = vperm.xlu0 %1511, %v64
    %v1513 = vpop.permute.xlu0 %1512
    %1515 = vset.pattern.permute.xlu0 3
    %1516 = vperm.xlu0 %1515, %v65
    %v1517 = vpop.permute.xlu0 %1516
    %1519 = vset.pattern.permute.xlu0 3
    %1520 = vperm.xlu0 %1519, %v66
    %v1521 = vpop.permute.xlu0 %1520
    %1523 = vset.pattern.permute.xlu0 3
    %1524 = vperm.xlu0 %1523, %v67
    %v1525 = vpop.permute.xlu0 %1524
    %1527 = vset.pattern.permute.xlu0 3
    %1528 = vperm.xlu0 %1527, %v68
    %v1529 = vpop.permute.xlu0 %1528
    %1531 = vset.pattern.permute.xlu0 3
    %1532 = vperm.xlu0 %1531, %v69
    %v1533 = vpop.permute.xlu0 %1532
    %1535 = vset.pattern.permute.xlu0 3
    %1536 = vperm.xlu0 %1535, %v70
    %v1537 = vpop.permute.xlu0 %1536
    %1539 = vset.pattern.permute.xlu0 3
    %1540 = vperm.xlu0 %1539, %v71
    %v1541 = vpop.permute.xlu0 %1540
    %1543 = vset.pattern.permute.xlu0 3
    %1544 = vperm.xlu0 %1543, %v72
    %v1545 = vpop.permute.xlu0 %1544
    %1547 = vset.pattern.permute.xlu0 3
    %1548 = vperm.xlu0 %1547, %v73
    %v1549 = vpop.permute.xlu0 %1548
    %1551 = vset.pattern.permute.xlu0 3
    %1552 = vperm.xlu0 %1551, %v74
    %v1553 = vpop.permute.xlu0 %1552
    %1555 = vset.pattern.permute.xlu0 3
    %1556 = vperm.xlu0 %1555, %v75
    %v1557 = vpop.permute.xlu0 %1556
    %1559 = vset.pattern.permute.xlu0 3
    %1560 = vperm.xlu0 %1559, %v76
    %v1561 = vpop.permute.xlu0 %1560
    %1563 = vset.pattern.permute.xlu0 3
    %1564 = vperm.xlu0 %1563, %v77
    %v1565 = vpop.permute.xlu0 %1564
    %1567 = vset.pattern.permute.xlu0 3
    %1568 = vperm.xlu0 %1567, %v78
    %v1569 = vpop.permute.xlu0 %1568
    %v1571 = vlaneseq
    %v1572 = vshrl.u32 %v1571, 7
    %v1573 = vsub.s32 3, %v1572
    %v1574 = vrot.slane %v79, %v1573
    %v1575 = vmul.f32 %v1317, %v1574
    %v1576 = vmul.f32 %v1321, %v1574
    %v1577 = vmul.f32 %v1325, %v1574
    %v1578 = vmul.f32 %v1329, %v1574
    %v1579 = vmul.f32 %v1333, %v1574
    %v1580 = vmul.f32 %v1337, %v1574
    %v1581 = vmul.f32 %v1341, %v1574
    %v1582 = vmul.f32 %v1345, %v1574
    %v1583 = vmul.f32 %v1349, %v1574
    %v1584 = vmul.f32 %v1353, %v1574
    %v1585 = vmul.f32 %v1357, %v1574
    %v1586 = vmul.f32 %v1361, %v1574
    %v1587 = vmul.f32 %v1365, %v1574
    %v1588 = vmul.f32 %v1369, %v1574
    %v1589 = vmul.f32 %v1373, %v1574
    %v1590 = vmul.f32 %v1377, %v1574
    %v1591 = vmul.f32 %v1381, %v1574
    %v1592 = vmul.f32 %v1385, %v1574
    %v1593 = vmul.f32 %v1389, %v1574
    %v1594 = vmul.f32 %v1393, %v1574
    %v1595 = vmul.f32 %v1397, %v1574
    %v1596 = vmul.f32 %v1401, %v1574
    %v1597 = vmul.f32 %v1405, %v1574
    %v1598 = vmul.f32 %v1409, %v1574
    %v1599 = vmul.f32 %v1413, %v1574
    %v1600 = vmul.f32 %v1417, %v1574
    %v1601 = vmul.f32 %v1421, %v1574
    %v1602 = vmul.f32 %v1425, %v1574
    %v1603 = vmul.f32 %v1429, %v1574
    %v1604 = vmul.f32 %v1433, %v1574
    %v1605 = vmul.f32 %v1437, %v1574
    %v1606 = vmul.f32 %v1441, %v1574
    %v1607 = vmul.f32 %v1445, %v1574
    %v1608 = vmul.f32 %v1449, %v1574
    %v1609 = vmul.f32 %v1453, %v1574
    %v1610 = vmul.f32 %v1457, %v1574
    %v1611 = vmul.f32 %v1461, %v1574
    %v1612 = vmul.f32 %v1465, %v1574
    %v1613 = vmul.f32 %v1469, %v1574
    %v1614 = vmul.f32 %v1473, %v1574
    %v1615 = vmul.f32 %v1477, %v1574
    %v1616 = vmul.f32 %v1481, %v1574
    %v1617 = vmul.f32 %v1485, %v1574
    %v1618 = vmul.f32 %v1489, %v1574
    %v1619 = vmul.f32 %v1493, %v1574
    %v1620 = vmul.f32 %v1497, %v1574
    %v1621 = vmul.f32 %v1501, %v1574
    %v1622 = vmul.f32 %v1505, %v1574
    %v1623 = vmul.f32 %v1509, %v1574
    %v1624 = vmul.f32 %v1513, %v1574
    %v1625 = vmul.f32 %v1517, %v1574
    %v1626 = vmul.f32 %v1521, %v1574
    %v1627 = vmul.f32 %v1525, %v1574
    %v1628 = vmul.f32 %v1529, %v1574
    %v1629 = vmul.f32 %v1533, %v1574
    %v1630 = vmul.f32 %v1537, %v1574
    %v1631 = vmul.f32 %v1541, %v1574
    %v1632 = vmul.f32 %v1545, %v1574
    %v1633 = vmul.f32 %v1549, %v1574
    %v1634 = vmul.f32 %v1553, %v1574
    %v1635 = vmul.f32 %v1557, %v1574
    %v1636 = vmul.f32 %v1561, %v1574
    %v1637 = vmul.f32 %v1565, %v1574
    %v1638 = vmul.f32 %v1569, %v1574
    %v1639 = vadd.f32 %v1251, %v1575
    %v1640 = vadd.f32 %v1252, %v1576
    %v1641 = vadd.f32 %v1253, %v1577
    %v1642 = vadd.f32 %v1254, %v1578
    %v1643 = vadd.f32 %v1255, %v1579
    %v1644 = vadd.f32 %v1256, %v1580
    %v1645 = vadd.f32 %v1257, %v1581
    %v1646 = vadd.f32 %v1258, %v1582
    %v1647 = vadd.f32 %v1259, %v1583
    %v1648 = vadd.f32 %v1260, %v1584
    %v1649 = vadd.f32 %v1261, %v1585
    %v1650 = vadd.f32 %v1262, %v1586
    %v1651 = vadd.f32 %v1263, %v1587
    %v1652 = vadd.f32 %v1264, %v1588
    %v1653 = vadd.f32 %v1265, %v1589
    %v1654 = vadd.f32 %v1266, %v1590
    %v1655 = vadd.f32 %v1267, %v1591
    %v1656 = vadd.f32 %v1268, %v1592
    %v1657 = vadd.f32 %v1269, %v1593
    %v1658 = vadd.f32 %v1270, %v1594
    %v1659 = vadd.f32 %v1271, %v1595
    %v1660 = vadd.f32 %v1272, %v1596
    %v1661 = vadd.f32 %v1273, %v1597
    %v1662 = vadd.f32 %v1274, %v1598
    %v1663 = vadd.f32 %v1275, %v1599
    %v1664 = vadd.f32 %v1276, %v1600
    %v1665 = vadd.f32 %v1277, %v1601
    %v1666 = vadd.f32 %v1278, %v1602
    %v1667 = vadd.f32 %v1279, %v1603
    %v1668 = vadd.f32 %v1280, %v1604
    %v1669 = vadd.f32 %v1281, %v1605
    %v1670 = vadd.f32 %v1282, %v1606
    %v1671 = vadd.f32 %v1283, %v1607
    %v1672 = vadd.f32 %v1284, %v1608
    %v1673 = vadd.f32 %v1285, %v1609
    %v1674 = vadd.f32 %v1286, %v1610
    %v1675 = vadd.f32 %v1287, %v1611
    %v1676 = vadd.f32 %v1288, %v1612
    %v1677 = vadd.f32 %v1289, %v1613
    %v1678 = vadd.f32 %v1290, %v1614
    %v1679 = vadd.f32 %v1291, %v1615
    %v1680 = vadd.f32 %v1292, %v1616
    %v1681 = vadd.f32 %v1293, %v1617
    %v1682 = vadd.f32 %v1294, %v1618
    %v1683 = vadd.f32 %v1295, %v1619
    %v1684 = vadd.f32 %v1296, %v1620
    %v1685 = vadd.f32 %v1297, %v1621
    %v1686 = vadd.f32 %v1298, %v1622
    %v1687 = vadd.f32 %v1299, %v1623
    %v1688 = vadd.f32 %v1300, %v1624
    %v1689 = vadd.f32 %v1301, %v1625
    %v1690 = vadd.f32 %v1302, %v1626
    %v1691 = vadd.f32 %v1303, %v1627
    %v1692 = vadd.f32 %v1304, %v1628
    %v1693 = vadd.f32 %v1305, %v1629
    %v1694 = vadd.f32 %v1306, %v1630
    %v1695 = vadd.f32 %v1307, %v1631
    %v1696 = vadd.f32 %v1308, %v1632
    %v1697 = vadd.f32 %v1309, %v1633
    %v1698 = vadd.f32 %v1310, %v1634
    %v1699 = vadd.f32 %v1311, %v1635
    %v1700 = vadd.f32 %v1312, %v1636
    %v1701 = vadd.f32 %v1313, %v1637
    %v1702 = vadd.f32 %v1314, %v1638
    %v1703 = vxor.u32 %v1639, 2147483648
    %v1704 = vxor.u32 %v1640, 2147483648
    %v1705 = vxor.u32 %v1641, 2147483648
    %v1706 = vxor.u32 %v1642, 2147483648
    %v1707 = vxor.u32 %v1643, 2147483648
    %v1708 = vxor.u32 %v1644, 2147483648
    %v1709 = vxor.u32 %v1645, 2147483648
    %v1710 = vxor.u32 %v1646, 2147483648
    %v1711 = vxor.u32 %v1647, 2147483648
    %v1712 = vxor.u32 %v1648, 2147483648
    %v1713 = vxor.u32 %v1649, 2147483648
    %v1714 = vxor.u32 %v1650, 2147483648
    %v1715 = vxor.u32 %v1651, 2147483648
    %v1716 = vxor.u32 %v1652, 2147483648
    %v1717 = vxor.u32 %v1653, 2147483648
    %v1718 = vxor.u32 %v1654, 2147483648
    %v1719 = vxor.u32 %v1655, 2147483648
    %v1720 = vxor.u32 %v1656, 2147483648
    %v1721 = vxor.u32 %v1657, 2147483648
    %v1722 = vxor.u32 %v1658, 2147483648
    %v1723 = vxor.u32 %v1659, 2147483648
    %v1724 = vxor.u32 %v1660, 2147483648
    %v1725 = vxor.u32 %v1661, 2147483648
    %v1726 = vxor.u32 %v1662, 2147483648
    %v1727 = vxor.u32 %v1663, 2147483648
    %v1728 = vxor.u32 %v1664, 2147483648
    %v1729 = vxor.u32 %v1665, 2147483648
    %v1730 = vxor.u32 %v1666, 2147483648
    %v1731 = vxor.u32 %v1667, 2147483648
    %v1732 = vxor.u32 %v1668, 2147483648
    %v1733 = vxor.u32 %v1669, 2147483648
    %v1734 = vxor.u32 %v1670, 2147483648
    %v1735 = vxor.u32 %v1671, 2147483648
    %v1736 = vxor.u32 %v1672, 2147483648
    %v1737 = vxor.u32 %v1673, 2147483648
    %v1738 = vxor.u32 %v1674, 2147483648
    %v1739 = vxor.u32 %v1675, 2147483648
    %v1740 = vxor.u32 %v1676, 2147483648
    %v1741 = vxor.u32 %v1677, 2147483648
    %v1742 = vxor.u32 %v1678, 2147483648
    %v1743 = vxor.u32 %v1679, 2147483648
    %v1744 = vxor.u32 %v1680, 2147483648
    %v1745 = vxor.u32 %v1681, 2147483648
    %v1746 = vxor.u32 %v1682, 2147483648
    %v1747 = vxor.u32 %v1683, 2147483648
    %v1748 = vxor.u32 %v1684, 2147483648
    %v1749 = vxor.u32 %v1685, 2147483648
    %v1750 = vxor.u32 %v1686, 2147483648
    %v1751 = vxor.u32 %v1687, 2147483648
    %v1752 = vxor.u32 %v1688, 2147483648
    %v1753 = vxor.u32 %v1689, 2147483648
    %v1754 = vxor.u32 %v1690, 2147483648
    %v1755 = vxor.u32 %v1691, 2147483648
    %v1756 = vxor.u32 %v1692, 2147483648
    %v1757 = vxor.u32 %v1693, 2147483648
    %v1758 = vxor.u32 %v1694, 2147483648
    %v1759 = vxor.u32 %v1695, 2147483648
    %v1760 = vxor.u32 %v1696, 2147483648
    %v1761 = vxor.u32 %v1697, 2147483648
    %v1762 = vxor.u32 %v1698, 2147483648
    %v1763 = vxor.u32 %v1699, 2147483648
    %v1764 = vxor.u32 %v1700, 2147483648
    %v1765 = vxor.u32 %v1701, 2147483648
    %v1766 = vxor.u32 %v1702, 2147483648
    %v1767 = vmul.f32 %v1703, 1.442695
    %v1768 = vpow.pop %v1767
    %v1769 = vmul.f32 %v1704, 1.442695
    %v1770 = vpow.pop %v1769
    %v1771 = vmul.f32 %v1705, 1.442695
    %v1772 = vpow.pop %v1771
    %v1773 = vmul.f32 %v1706, 1.442695
    %v1774 = vpow.pop %v1773
    %v1775 = vmul.f32 %v1707, 1.442695
    %v1776 = vpow.pop %v1775
    %v1777 = vmul.f32 %v1708, 1.442695
    %v1778 = vpow.pop %v1777
    %v1779 = vmul.f32 %v1709, 1.442695
    %v1780 = vpow.pop %v1779
    %v1781 = vmul.f32 %v1710, 1.442695
    %v1782 = vpow.pop %v1781
    %v1783 = vmul.f32 %v1711, 1.442695
    %v1784 = vpow.pop %v1783
    %v1785 = vmul.f32 %v1712, 1.442695
    %v1786 = vpow.pop %v1785
    %v1787 = vmul.f32 %v1713, 1.442695
    %v1788 = vpow.pop %v1787
    %v1789 = vmul.f32 %v1714, 1.442695
    %v1790 = vpow.pop %v1789
    %v1791 = vmul.f32 %v1715, 1.442695
    %v1792 = vpow.pop %v1791
    %v1793 = vmul.f32 %v1716, 1.442695
    %v1794 = vpow.pop %v1793
    %v1795 = vmul.f32 %v1717, 1.442695
    %v1796 = vpow.pop %v1795
    %v1797 = vmul.f32 %v1718, 1.442695
    %v1798 = vpow.pop %v1797
    %v1799 = vmul.f32 %v1719, 1.442695
    %v1800 = vpow.pop %v1799
    %v1801 = vmul.f32 %v1720, 1.442695
    %v1802 = vpow.pop %v1801
    %v1803 = vmul.f32 %v1721, 1.442695
    %v1804 = vpow.pop %v1803
    %v1805 = vmul.f32 %v1722, 1.442695
    %v1806 = vpow.pop %v1805
    %v1807 = vmul.f32 %v1723, 1.442695
    %v1808 = vpow.pop %v1807
    %v1809 = vmul.f32 %v1724, 1.442695
    %v1810 = vpow.pop %v1809
    %v1811 = vmul.f32 %v1725, 1.442695
    %v1812 = vpow.pop %v1811
    %v1813 = vmul.f32 %v1726, 1.442695
    %v1814 = vpow.pop %v1813
    %v1815 = vmul.f32 %v1727, 1.442695
    %v1816 = vpow.pop %v1815
    %v1817 = vmul.f32 %v1728, 1.442695
    %v1818 = vpow.pop %v1817
    %v1819 = vmul.f32 %v1729, 1.442695
    %v1820 = vpow.pop %v1819
    %v1821 = vmul.f32 %v1730, 1.442695
    %v1822 = vpow.pop %v1821
    %v1823 = vmul.f32 %v1731, 1.442695
    %v1824 = vpow.pop %v1823
    %v1825 = vmul.f32 %v1732, 1.442695
    %v1826 = vpow.pop %v1825
    %v1827 = vmul.f32 %v1733, 1.442695
    %v1828 = vpow.pop %v1827
    %v1829 = vmul.f32 %v1734, 1.442695
    %v1830 = vpow.pop %v1829
    %v1831 = vmul.f32 %v1735, 1.442695
    %v1832 = vpow.pop %v1831
    %v1833 = vmul.f32 %v1736, 1.442695
    %v1834 = vpow.pop %v1833
    %v1835 = vmul.f32 %v1737, 1.442695
    %v1836 = vpow.pop %v1835
    %v1837 = vmul.f32 %v1738, 1.442695
    %v1838 = vpow.pop %v1837
    %v1839 = vmul.f32 %v1739, 1.442695
    %v1840 = vpow.pop %v1839
    %v1841 = vmul.f32 %v1740, 1.442695
    %v1842 = vpow.pop %v1841
    %v1843 = vmul.f32 %v1741, 1.442695
    %v1844 = vpow.pop %v1843
    %v1845 = vmul.f32 %v1742, 1.442695
    %v1846 = vpow.pop %v1845
    %v1847 = vmul.f32 %v1743, 1.442695
    %v1848 = vpow.pop %v1847
    %v1849 = vmul.f32 %v1744, 1.442695
    %v1850 = vpow.pop %v1849
    %v1851 = vmul.f32 %v1745, 1.442695
    %v1852 = vpow.pop %v1851
    %v1853 = vmul.f32 %v1746, 1.442695
    %v1854 = vpow.pop %v1853
    %v1855 = vmul.f32 %v1747, 1.442695
    %v1856 = vpow.pop %v1855
    %v1857 = vmul.f32 %v1748, 1.442695
    %v1858 = vpow.pop %v1857
    %v1859 = vmul.f32 %v1749, 1.442695
    %v1860 = vpow.pop %v1859
    %v1861 = vmul.f32 %v1750, 1.442695
    %v1862 = vpow.pop %v1861
    %v1863 = vmul.f32 %v1751, 1.442695
    %v1864 = vpow.pop %v1863
    %v1865 = vmul.f32 %v1752, 1.442695
    %v1866 = vpow.pop %v1865
    %v1867 = vmul.f32 %v1753, 1.442695
    %v1868 = vpow.pop %v1867
    %v1869 = vmul.f32 %v1754, 1.442695
    %v1870 = vpow.pop %v1869
    %v1871 = vmul.f32 %v1755, 1.442695
    %v1872 = vpow.pop %v1871
    %v1873 = vmul.f32 %v1756, 1.442695
    %v1874 = vpow.pop %v1873
    %v1875 = vmul.f32 %v1757, 1.442695
    %v1876 = vpow.pop %v1875
    %v1877 = vmul.f32 %v1758, 1.442695
    %v1878 = vpow.pop %v1877
    %v1879 = vmul.f32 %v1759, 1.442695
    %v1880 = vpow.pop %v1879
    %v1881 = vmul.f32 %v1760, 1.442695
    %v1882 = vpow.pop %v1881
    %v1883 = vmul.f32 %v1761, 1.442695
    %v1884 = vpow.pop %v1883
    %v1885 = vmul.f32 %v1762, 1.442695
    %v1886 = vpow.pop %v1885
    %v1887 = vmul.f32 %v1763, 1.442695
    %v1888 = vpow.pop %v1887
    %v1889 = vmul.f32 %v1764, 1.442695
    %v1890 = vpow.pop %v1889
    %v1891 = vmul.f32 %v1765, 1.442695
    %v1892 = vpow.pop %v1891
    %v1893 = vmul.f32 %v1766, 1.442695
    %v1894 = vpow.pop %v1893
    %v1895 = vadd.f32 %v1768, 1.0
    %v1896 = vadd.f32 %v1770, 1.0
    %v1897 = vadd.f32 %v1772, 1.0
    %v1898 = vadd.f32 %v1774, 1.0
    %v1899 = vadd.f32 %v1776, 1.0
    %v1900 = vadd.f32 %v1778, 1.0
    %v1901 = vadd.f32 %v1780, 1.0
    %v1902 = vadd.f32 %v1782, 1.0
    %v1903 = vadd.f32 %v1784, 1.0
    %v1904 = vadd.f32 %v1786, 1.0
    %v1905 = vadd.f32 %v1788, 1.0
    %v1906 = vadd.f32 %v1790, 1.0
    %v1907 = vadd.f32 %v1792, 1.0
    %v1908 = vadd.f32 %v1794, 1.0
    %v1909 = vadd.f32 %v1796, 1.0
    %v1910 = vadd.f32 %v1798, 1.0
    %v1911 = vadd.f32 %v1800, 1.0
    %v1912 = vadd.f32 %v1802, 1.0
    %v1913 = vadd.f32 %v1804, 1.0
    %v1914 = vadd.f32 %v1806, 1.0
    %v1915 = vadd.f32 %v1808, 1.0
    %v1916 = vadd.f32 %v1810, 1.0
    %v1917 = vadd.f32 %v1812, 1.0
    %v1918 = vadd.f32 %v1814, 1.0
    %v1919 = vadd.f32 %v1816, 1.0
    %v1920 = vadd.f32 %v1818, 1.0
    %v1921 = vadd.f32 %v1820, 1.0
    %v1922 = vadd.f32 %v1822, 1.0
    %v1923 = vadd.f32 %v1824, 1.0
    %v1924 = vadd.f32 %v1826, 1.0
    %v1925 = vadd.f32 %v1828, 1.0
    %v1926 = vadd.f32 %v1830, 1.0
    %v1927 = vadd.f32 %v1832, 1.0
    %v1928 = vadd.f32 %v1834, 1.0
    %v1929 = vadd.f32 %v1836, 1.0
    %v1930 = vadd.f32 %v1838, 1.0
    %v1931 = vadd.f32 %v1840, 1.0
    %v1932 = vadd.f32 %v1842, 1.0
    %v1933 = vadd.f32 %v1844, 1.0
    %v1934 = vadd.f32 %v1846, 1.0
    %v1935 = vadd.f32 %v1848, 1.0
    %v1936 = vadd.f32 %v1850, 1.0
    %v1937 = vadd.f32 %v1852, 1.0
    %v1938 = vadd.f32 %v1854, 1.0
    %v1939 = vadd.f32 %v1856, 1.0
    %v1940 = vadd.f32 %v1858, 1.0
    %v1941 = vadd.f32 %v1860, 1.0
    %v1942 = vadd.f32 %v1862, 1.0
    %v1943 = vadd.f32 %v1864, 1.0
    %v1944 = vadd.f32 %v1866, 1.0
    %v1945 = vadd.f32 %v1868, 1.0
    %v1946 = vadd.f32 %v1870, 1.0
    %v1947 = vadd.f32 %v1872, 1.0
    %v1948 = vadd.f32 %v1874, 1.0
    %v1949 = vadd.f32 %v1876, 1.0
    %v1950 = vadd.f32 %v1878, 1.0
    %v1951 = vadd.f32 %v1880, 1.0
    %v1952 = vadd.f32 %v1882, 1.0
    %v1953 = vadd.f32 %v1884, 1.0
    %v1954 = vadd.f32 %v1886, 1.0
    %v1955 = vadd.f32 %v1888, 1.0
    %v1956 = vadd.f32 %v1890, 1.0
    %v1957 = vadd.f32 %v1892, 1.0
    %v1958 = vadd.f32 %v1894, 1.0
    %v1959 = vrcp.pop %v1895
    %v1960 = vmul.f32 1.0, %v1959
    %v1961 = vrcp.pop %v1896
    %v1962 = vmul.f32 1.0, %v1961
    %v1963 = vrcp.pop %v1897
    %v1964 = vmul.f32 1.0, %v1963
    %v1965 = vrcp.pop %v1898
    %v1966 = vmul.f32 1.0, %v1965
    %v1967 = vrcp.pop %v1899
    %v1968 = vmul.f32 1.0, %v1967
    %v1969 = vrcp.pop %v1900
    %v1970 = vmul.f32 1.0, %v1969
    %v1971 = vrcp.pop %v1901
    %v1972 = vmul.f32 1.0, %v1971
    %v1973 = vrcp.pop %v1902
    %v1974 = vmul.f32 1.0, %v1973
    %v1975 = vrcp.pop %v1903
    %v1976 = vmul.f32 1.0, %v1975
    %v1977 = vrcp.pop %v1904
    %v1978 = vmul.f32 1.0, %v1977
    %v1979 = vrcp.pop %v1905
    %v1980 = vmul.f32 1.0, %v1979
    %v1981 = vrcp.pop %v1906
    %v1982 = vmul.f32 1.0, %v1981
    %v1983 = vrcp.pop %v1907
    %v1984 = vmul.f32 1.0, %v1983
    %v1985 = vrcp.pop %v1908
    %v1986 = vmul.f32 1.0, %v1985
    %v1987 = vrcp.pop %v1909
    %v1988 = vmul.f32 1.0, %v1987
    %v1989 = vrcp.pop %v1910
    %v1990 = vmul.f32 1.0, %v1989
    %v1991 = vrcp.pop %v1911
    %v1992 = vmul.f32 1.0, %v1991
    %v1993 = vrcp.pop %v1912
    %v1994 = vmul.f32 1.0, %v1993
    %v1995 = vrcp.pop %v1913
    %v1996 = vmul.f32 1.0, %v1995
    %v1997 = vrcp.pop %v1914
    %v1998 = vmul.f32 1.0, %v1997
    %v1999 = vrcp.pop %v1915
    %v2000 = vmul.f32 1.0, %v1999
    %v2001 = vrcp.pop %v1916
    %v2002 = vmul.f32 1.0, %v2001
    %v2003 = vrcp.pop %v1917
    %v2004 = vmul.f32 1.0, %v2003
    %v2005 = vrcp.pop %v1918
    %v2006 = vmul.f32 1.0, %v2005
    %v2007 = vrcp.pop %v1919
    %v2008 = vmul.f32 1.0, %v2007
    %v2009 = vrcp.pop %v1920
    %v2010 = vmul.f32 1.0, %v2009
    %v2011 = vrcp.pop %v1921
    %v2012 = vmul.f32 1.0, %v2011
    %v2013 = vrcp.pop %v1922
    %v2014 = vmul.f32 1.0, %v2013
    %v2015 = vrcp.pop %v1923
    %v2016 = vmul.f32 1.0, %v2015
    %v2017 = vrcp.pop %v1924
    %v2018 = vmul.f32 1.0, %v2017
    %v2019 = vrcp.pop %v1925
    %v2020 = vmul.f32 1.0, %v2019
    %v2021 = vrcp.pop %v1926
    %v2022 = vmul.f32 1.0, %v2021
    %v2023 = vrcp.pop %v1927
    %v2024 = vmul.f32 1.0, %v2023
    %v2025 = vrcp.pop %v1928
    %v2026 = vmul.f32 1.0, %v2025
    %v2027 = vrcp.pop %v1929
    %v2028 = vmul.f32 1.0, %v2027
    %v2029 = vrcp.pop %v1930
    %v2030 = vmul.f32 1.0, %v2029
    %v2031 = vrcp.pop %v1931
    %v2032 = vmul.f32 1.0, %v2031
    %v2033 = vrcp.pop %v1932
    %v2034 = vmul.f32 1.0, %v2033
    %v2035 = vrcp.pop %v1933
    %v2036 = vmul.f32 1.0, %v2035
    %v2037 = vrcp.pop %v1934
    %v2038 = vmul.f32 1.0, %v2037
    %v2039 = vrcp.pop %v1935
    %v2040 = vmul.f32 1.0, %v2039
    %v2041 = vrcp.pop %v1936
    %v2042 = vmul.f32 1.0, %v2041
    %v2043 = vrcp.pop %v1937
    %v2044 = vmul.f32 1.0, %v2043
    %v2045 = vrcp.pop %v1938
    %v2046 = vmul.f32 1.0, %v2045
    %v2047 = vrcp.pop %v1939
    %v2048 = vmul.f32 1.0, %v2047
    %v2049 = vrcp.pop %v1940
    %v2050 = vmul.f32 1.0, %v2049
    %v2051 = vrcp.pop %v1941
    %v2052 = vmul.f32 1.0, %v2051
    %v2053 = vrcp.pop %v1942
    %v2054 = vmul.f32 1.0, %v2053
    %v2055 = vrcp.pop %v1943
    %v2056 = vmul.f32 1.0, %v2055
    %v2057 = vrcp.pop %v1944
    %v2058 = vmul.f32 1.0, %v2057
    %v2059 = vrcp.pop %v1945
    %v2060 = vmul.f32 1.0, %v2059
    %v2061 = vrcp.pop %v1946
    %v2062 = vmul.f32 1.0, %v2061
    %v2063 = vrcp.pop %v1947
    %v2064 = vmul.f32 1.0, %v2063
    %v2065 = vrcp.pop %v1948
    %v2066 = vmul.f32 1.0, %v2065
    %v2067 = vrcp.pop %v1949
    %v2068 = vmul.f32 1.0, %v2067
    %v2069 = vrcp.pop %v1950
    %v2070 = vmul.f32 1.0, %v2069
    %v2071 = vrcp.pop %v1951
    %v2072 = vmul.f32 1.0, %v2071
    %v2073 = vrcp.pop %v1952
    %v2074 = vmul.f32 1.0, %v2073
    %v2075 = vrcp.pop %v1953
    %v2076 = vmul.f32 1.0, %v2075
    %v2077 = vrcp.pop %v1954
    %v2078 = vmul.f32 1.0, %v2077
    %v2079 = vrcp.pop %v1955
    %v2080 = vmul.f32 1.0, %v2079
    %v2081 = vrcp.pop %v1956
    %v2082 = vmul.f32 1.0, %v2081
    %v2083 = vrcp.pop %v1957
    %v2084 = vmul.f32 1.0, %v2083
    %v2085 = vrcp.pop %v1958
    %v2086 = vmul.f32 1.0, %v2085
    %2088 = vset.pattern.permute.xlu0 4
    %2089 = vperm.xlu0 %2088, %v1960
    %v2090 = vpop.permute.xlu0 %2089
    %2093 = vset.pattern.permute.xlu0 4
    %2094 = vperm.xlu0 %2093, %v1962
    %v2095 = vpop.permute.xlu0 %2094
    %2098 = vset.pattern.permute.xlu0 4
    %2099 = vperm.xlu0 %2098, %v1964
    %v2100 = vpop.permute.xlu0 %2099
    %2103 = vset.pattern.permute.xlu0 4
    %2104 = vperm.xlu0 %2103, %v1966
    %v2105 = vpop.permute.xlu0 %2104
    %2108 = vset.pattern.permute.xlu0 4
    %2109 = vperm.xlu0 %2108, %v1968
    %v2110 = vpop.permute.xlu0 %2109
    %2113 = vset.pattern.permute.xlu0 4
    %2114 = vperm.xlu0 %2113, %v1970
    %v2115 = vpop.permute.xlu0 %2114
    %2118 = vset.pattern.permute.xlu0 4
    %2119 = vperm.xlu0 %2118, %v1972
    %v2120 = vpop.permute.xlu0 %2119
    %2123 = vset.pattern.permute.xlu0 4
    %2124 = vperm.xlu0 %2123, %v1974
    %v2125 = vpop.permute.xlu0 %2124
    %2128 = vset.pattern.permute.xlu0 4
    %2129 = vperm.xlu0 %2128, %v1976
    %v2130 = vpop.permute.xlu0 %2129
    %2133 = vset.pattern.permute.xlu0 4
    %2134 = vperm.xlu0 %2133, %v1978
    %v2135 = vpop.permute.xlu0 %2134
    %2138 = vset.pattern.permute.xlu0 4
    %2139 = vperm.xlu0 %2138, %v1980
    %v2140 = vpop.permute.xlu0 %2139
    %2143 = vset.pattern.permute.xlu0 4
    %2144 = vperm.xlu0 %2143, %v1982
    %v2145 = vpop.permute.xlu0 %2144
    %2148 = vset.pattern.permute.xlu0 4
    %2149 = vperm.xlu0 %2148, %v1984
    %v2150 = vpop.permute.xlu0 %2149
    %2153 = vset.pattern.permute.xlu0 4
    %2154 = vperm.xlu0 %2153, %v1986
    %v2155 = vpop.permute.xlu0 %2154
    %2158 = vset.pattern.permute.xlu0 4
    %2159 = vperm.xlu0 %2158, %v1988
    %v2160 = vpop.permute.xlu0 %2159
    %2163 = vset.pattern.permute.xlu0 4
    %2164 = vperm.xlu0 %2163, %v1990
    %v2165 = vpop.permute.xlu0 %2164
    %2168 = vset.pattern.permute.xlu0 4
    %2169 = vperm.xlu0 %2168, %v1992
    %v2170 = vpop.permute.xlu0 %2169
    %2173 = vset.pattern.permute.xlu0 4
    %2174 = vperm.xlu0 %2173, %v1994
    %v2175 = vpop.permute.xlu0 %2174
    %2178 = vset.pattern.permute.xlu0 4
    %2179 = vperm.xlu0 %2178, %v1996
    %v2180 = vpop.permute.xlu0 %2179
    %2183 = vset.pattern.permute.xlu0 4
    %2184 = vperm.xlu0 %2183, %v1998
    %v2185 = vpop.permute.xlu0 %2184
    %2188 = vset.pattern.permute.xlu0 4
    %2189 = vperm.xlu0 %2188, %v2000
    %v2190 = vpop.permute.xlu0 %2189
    %2193 = vset.pattern.permute.xlu0 4
    %2194 = vperm.xlu0 %2193, %v2002
    %v2195 = vpop.permute.xlu0 %2194
    %2198 = vset.pattern.permute.xlu0 4
    %2199 = vperm.xlu0 %2198, %v2004
    %v2200 = vpop.permute.xlu0 %2199
    %2203 = vset.pattern.permute.xlu0 4
    %2204 = vperm.xlu0 %2203, %v2006
    %v2205 = vpop.permute.xlu0 %2204
    %2208 = vset.pattern.permute.xlu0 4
    %2209 = vperm.xlu0 %2208, %v2008
    %v2210 = vpop.permute.xlu0 %2209
    %2213 = vset.pattern.permute.xlu0 4
    %2214 = vperm.xlu0 %2213, %v2010
    %v2215 = vpop.permute.xlu0 %2214
    %2218 = vset.pattern.permute.xlu0 4
    %2219 = vperm.xlu0 %2218, %v2012
    %v2220 = vpop.permute.xlu0 %2219
    %2223 = vset.pattern.permute.xlu0 4
    %2224 = vperm.xlu0 %2223, %v2014
    %v2225 = vpop.permute.xlu0 %2224
    %2228 = vset.pattern.permute.xlu0 4
    %2229 = vperm.xlu0 %2228, %v2016
    %v2230 = vpop.permute.xlu0 %2229
    %2233 = vset.pattern.permute.xlu0 4
    %2234 = vperm.xlu0 %2233, %v2018
    %v2235 = vpop.permute.xlu0 %2234
    %2238 = vset.pattern.permute.xlu0 4
    %2239 = vperm.xlu0 %2238, %v2020
    %v2240 = vpop.permute.xlu0 %2239
    %2243 = vset.pattern.permute.xlu0 4
    %2244 = vperm.xlu0 %2243, %v2022
    %v2245 = vpop.permute.xlu0 %2244
    %2248 = vset.pattern.permute.xlu0 4
    %2249 = vperm.xlu0 %2248, %v2024
    %v2250 = vpop.permute.xlu0 %2249
    %2253 = vset.pattern.permute.xlu0 4
    %2254 = vperm.xlu0 %2253, %v2026
    %v2255 = vpop.permute.xlu0 %2254
    %2258 = vset.pattern.permute.xlu0 4
    %2259 = vperm.xlu0 %2258, %v2028
    %v2260 = vpop.permute.xlu0 %2259
    %2263 = vset.pattern.permute.xlu0 4
    %2264 = vperm.xlu0 %2263, %v2030
    %v2265 = vpop.permute.xlu0 %2264
    %2268 = vset.pattern.permute.xlu0 4
    %2269 = vperm.xlu0 %2268, %v2032
    %v2270 = vpop.permute.xlu0 %2269
    %2273 = vset.pattern.permute.xlu0 4
    %2274 = vperm.xlu0 %2273, %v2034
    %v2275 = vpop.permute.xlu0 %2274
    %2278 = vset.pattern.permute.xlu0 4
    %2279 = vperm.xlu0 %2278, %v2036
    %v2280 = vpop.permute.xlu0 %2279
    %2283 = vset.pattern.permute.xlu0 4
    %2284 = vperm.xlu0 %2283, %v2038
    %v2285 = vpop.permute.xlu0 %2284
    %2288 = vset.pattern.permute.xlu0 4
    %2289 = vperm.xlu0 %2288, %v2040
    %v2290 = vpop.permute.xlu0 %2289
    %2293 = vset.pattern.permute.xlu0 4
    %2294 = vperm.xlu0 %2293, %v2042
    %v2295 = vpop.permute.xlu0 %2294
    %2298 = vset.pattern.permute.xlu0 4
    %2299 = vperm.xlu0 %2298, %v2044
    %v2300 = vpop.permute.xlu0 %2299
    %2303 = vset.pattern.permute.xlu0 4
    %2304 = vperm.xlu0 %2303, %v2046
    %v2305 = vpop.permute.xlu0 %2304
    %2308 = vset.pattern.permute.xlu0 4
    %2309 = vperm.xlu0 %2308, %v2048
    %v2310 = vpop.permute.xlu0 %2309
    %2313 = vset.pattern.permute.xlu0 4
    %2314 = vperm.xlu0 %2313, %v2050
    %v2315 = vpop.permute.xlu0 %2314
    %2318 = vset.pattern.permute.xlu0 4
    %2319 = vperm.xlu0 %2318, %v2052
    %v2320 = vpop.permute.xlu0 %2319
    %2323 = vset.pattern.permute.xlu0 4
    %2324 = vperm.xlu0 %2323, %v2054
    %v2325 = vpop.permute.xlu0 %2324
    %2328 = vset.pattern.permute.xlu0 4
    %2329 = vperm.xlu0 %2328, %v2056
    %v2330 = vpop.permute.xlu0 %2329
    %2333 = vset.pattern.permute.xlu0 4
    %2334 = vperm.xlu0 %2333, %v2058
    %v2335 = vpop.permute.xlu0 %2334
    %2338 = vset.pattern.permute.xlu0 4
    %2339 = vperm.xlu0 %2338, %v2060
    %v2340 = vpop.permute.xlu0 %2339
    %2343 = vset.pattern.permute.xlu0 4
    %2344 = vperm.xlu0 %2343, %v2062
    %v2345 = vpop.permute.xlu0 %2344
    %2348 = vset.pattern.permute.xlu0 4
    %2349 = vperm.xlu0 %2348, %v2064
    %v2350 = vpop.permute.xlu0 %2349
    %2353 = vset.pattern.permute.xlu0 4
    %2354 = vperm.xlu0 %2353, %v2066
    %v2355 = vpop.permute.xlu0 %2354
    %2358 = vset.pattern.permute.xlu0 4
    %2359 = vperm.xlu0 %2358, %v2068
    %v2360 = vpop.permute.xlu0 %2359
    %2363 = vset.pattern.permute.xlu0 4
    %2364 = vperm.xlu0 %2363, %v2070
    %v2365 = vpop.permute.xlu0 %2364
    %2368 = vset.pattern.permute.xlu0 4
    %2369 = vperm.xlu0 %2368, %v2072
    %v2370 = vpop.permute.xlu0 %2369
    %2373 = vset.pattern.permute.xlu0 4
    %2374 = vperm.xlu0 %2373, %v2074
    %v2375 = vpop.permute.xlu0 %2374
    %2378 = vset.pattern.permute.xlu0 4
    %2379 = vperm.xlu0 %2378, %v2076
    %v2380 = vpop.permute.xlu0 %2379
    %2383 = vset.pattern.permute.xlu0 4
    %2384 = vperm.xlu0 %2383, %v2078
    %v2385 = vpop.permute.xlu0 %2384
    %2388 = vset.pattern.permute.xlu0 4
    %2389 = vperm.xlu0 %2388, %v2080
    %v2390 = vpop.permute.xlu0 %2389
    %2393 = vset.pattern.permute.xlu0 4
    %2394 = vperm.xlu0 %2393, %v2082
    %v2395 = vpop.permute.xlu0 %2394
    %2398 = vset.pattern.permute.xlu0 4
    %2399 = vperm.xlu0 %2398, %v2084
    %v2400 = vpop.permute.xlu0 %2399
    %2403 = vset.pattern.permute.xlu0 4
    %2404 = vperm.xlu0 %2403, %v2086
    %v2405 = vpop.permute.xlu0 %2404
    %v2407 = vmul.f32 %v1960, %v2090
    %v2408 = vmul.f32 %v1962, %v2095
    %v2409 = vmul.f32 %v1964, %v2100
    %v2410 = vmul.f32 %v1966, %v2105
    %v2411 = vmul.f32 %v1968, %v2110
    %v2412 = vmul.f32 %v1970, %v2115
    %v2413 = vmul.f32 %v1972, %v2120
    %v2414 = vmul.f32 %v1974, %v2125
    %v2415 = vmul.f32 %v1976, %v2130
    %v2416 = vmul.f32 %v1978, %v2135
    %v2417 = vmul.f32 %v1980, %v2140
    %v2418 = vmul.f32 %v1982, %v2145
    %v2419 = vmul.f32 %v1984, %v2150
    %v2420 = vmul.f32 %v1986, %v2155
    %v2421 = vmul.f32 %v1988, %v2160
    %v2422 = vmul.f32 %v1990, %v2165
    %v2423 = vmul.f32 %v1992, %v2170
    %v2424 = vmul.f32 %v1994, %v2175
    %v2425 = vmul.f32 %v1996, %v2180
    %v2426 = vmul.f32 %v1998, %v2185
    %v2427 = vmul.f32 %v2000, %v2190
    %v2428 = vmul.f32 %v2002, %v2195
    %v2429 = vmul.f32 %v2004, %v2200
    %v2430 = vmul.f32 %v2006, %v2205
    %v2431 = vmul.f32 %v2008, %v2210
    %v2432 = vmul.f32 %v2010, %v2215
    %v2433 = vmul.f32 %v2012, %v2220
    %v2434 = vmul.f32 %v2014, %v2225
    %v2435 = vmul.f32 %v2016, %v2230
    %v2436 = vmul.f32 %v2018, %v2235
    %v2437 = vmul.f32 %v2020, %v2240
    %v2438 = vmul.f32 %v2022, %v2245
    %v2439 = vmul.f32 %v2024, %v2250
    %v2440 = vmul.f32 %v2026, %v2255
    %v2441 = vmul.f32 %v2028, %v2260
    %v2442 = vmul.f32 %v2030, %v2265
    %v2443 = vmul.f32 %v2032, %v2270
    %v2444 = vmul.f32 %v2034, %v2275
    %v2445 = vmul.f32 %v2036, %v2280
    %v2446 = vmul.f32 %v2038, %v2285
    %v2447 = vmul.f32 %v2040, %v2290
    %v2448 = vmul.f32 %v2042, %v2295
    %v2449 = vmul.f32 %v2044, %v2300
    %v2450 = vmul.f32 %v2046, %v2305
    %v2451 = vmul.f32 %v2048, %v2310
    %v2452 = vmul.f32 %v2050, %v2315
    %v2453 = vmul.f32 %v2052, %v2320
    %v2454 = vmul.f32 %v2054, %v2325
    %v2455 = vmul.f32 %v2056, %v2330
    %v2456 = vmul.f32 %v2058, %v2335
    %v2457 = vmul.f32 %v2060, %v2340
    %v2458 = vmul.f32 %v2062, %v2345
    %v2459 = vmul.f32 %v2064, %v2350
    %v2460 = vmul.f32 %v2066, %v2355
    %v2461 = vmul.f32 %v2068, %v2360
    %v2462 = vmul.f32 %v2070, %v2365
    %v2463 = vmul.f32 %v2072, %v2370
    %v2464 = vmul.f32 %v2074, %v2375
    %v2465 = vmul.f32 %v2076, %v2380
    %v2466 = vmul.f32 %v2078, %v2385
    %v2467 = vmul.f32 %v2080, %v2390
    %v2468 = vmul.f32 %v2082, %v2395
    %v2469 = vmul.f32 %v2084, %v2400
    %v2470 = vmul.f32 %v2086, %v2405
    %v2471 = vlaneseq
    %v2472 = vand.u32 %v2471, 127
    %vm2473 = vcmp.ge.s32.totalorder %v2472, 5
    %vm2474 = vcmp.lt.s32.totalorder %v2472, 85
    %vm2475 = vmand %vm2473, %vm2474
    %v2476 = vsel %vm2475, %v2407, -inf
    %v2477 = vsel %vm2475, %v2408, -inf
    %v2478 = vsel %vm2475, %v2409, -inf
    %v2479 = vsel %vm2475, %v2410, -inf
    %v2480 = vsel %vm2475, %v2411, -inf
    %v2481 = vsel %vm2475, %v2412, -inf
    %v2482 = vsel %vm2475, %v2413, -inf
    %v2483 = vsel %vm2475, %v2414, -inf
    %v2484 = vsel %vm2475, %v2415, -inf
    %v2485 = vsel %vm2475, %v2416, -inf
    %v2486 = vsel %vm2475, %v2417, -inf
    %v2487 = vsel %vm2475, %v2418, -inf
    %v2488 = vsel %vm2475, %v2419, -inf
    %v2489 = vsel %vm2475, %v2420, -inf
    %v2490 = vsel %vm2475, %v2421, -inf
    %v2491 = vsel %vm2475, %v2422, -inf
    %v2492 = vsel %vm2475, %v2423, -inf
    %v2493 = vsel %vm2475, %v2424, -inf
    %v2494 = vsel %vm2475, %v2425, -inf
    %v2495 = vsel %vm2475, %v2426, -inf
    %v2496 = vsel %vm2475, %v2427, -inf
    %v2497 = vsel %vm2475, %v2428, -inf
    %v2498 = vsel %vm2475, %v2429, -inf
    %v2499 = vsel %vm2475, %v2430, -inf
    %v2500 = vsel %vm2475, %v2431, -inf
    %v2501 = vsel %vm2475, %v2432, -inf
    %v2502 = vsel %vm2475, %v2433, -inf
    %v2503 = vsel %vm2475, %v2434, -inf
    %v2504 = vsel %vm2475, %v2435, -inf
    %v2505 = vsel %vm2475, %v2436, -inf
    %v2506 = vsel %vm2475, %v2437, -inf
    %v2507 = vsel %vm2475, %v2438, -inf
    %v2508 = vsel %vm2475, %v2439, -inf
    %v2509 = vsel %vm2475, %v2440, -inf
    %v2510 = vsel %vm2475, %v2441, -inf
    %v2511 = vsel %vm2475, %v2442, -inf
    %v2512 = vsel %vm2475, %v2443, -inf
    %v2513 = vsel %vm2475, %v2444, -inf
    %v2514 = vsel %vm2475, %v2445, -inf
    %v2515 = vsel %vm2475, %v2446, -inf
    %v2516 = vsel %vm2475, %v2447, -inf
    %v2517 = vsel %vm2475, %v2448, -inf
    %v2518 = vsel %vm2475, %v2449, -inf
    %v2519 = vsel %vm2475, %v2450, -inf
    %v2520 = vsel %vm2475, %v2451, -inf
    %v2521 = vsel %vm2475, %v2452, -inf
    %v2522 = vsel %vm2475, %v2453, -inf
    %v2523 = vsel %vm2475, %v2454, -inf
    %v2524 = vsel %vm2475, %v2455, -inf
    %v2525 = vsel %vm2475, %v2456, -inf
    %v2526 = vsel %vm2475, %v2457, -inf
    %v2527 = vsel %vm2475, %v2458, -inf
    %v2528 = vsel %vm2475, %v2459, -inf
    %v2529 = vsel %vm2475, %v2460, -inf
    %v2530 = vsel %vm2475, %v2461, -inf
    %v2531 = vsel %vm2475, %v2462, -inf
    %v2532 = vsel %vm2475, %v2463, -inf
    %v2533 = vsel %vm2475, %v2464, -inf
    %v2534 = vsel %vm2475, %v2465, -inf
    %v2535 = vsel %vm2475, %v2466, -inf
    %v2536 = vsel %vm2475, %v2467, -inf
    %v2537 = vsel %vm2475, %v2468, -inf
    %v2538 = vsel %vm2475, %v2469, -inf
    %v2539 = vsel %vm2475, %v2470, -inf
    %2540 = vmax.xlane.f32.xlu0 %v2476
    %v2541 = vpop.xlane.xlu0 %2540
    %2542 = vmax.xlane.f32.xlu0 %v2477
    %v2543 = vpop.xlane.xlu0 %2542
    %2544 = vmax.xlane.f32.xlu0 %v2478
    %v2545 = vpop.xlane.xlu0 %2544
    %2546 = vmax.xlane.f32.xlu0 %v2479
    %v2547 = vpop.xlane.xlu0 %2546
    %2548 = vmax.xlane.f32.xlu0 %v2480
    %v2549 = vpop.xlane.xlu0 %2548
    %2550 = vmax.xlane.f32.xlu0 %v2481
    %v2551 = vpop.xlane.xlu0 %2550
    %2552 = vmax.xlane.f32.xlu0 %v2482
    %v2553 = vpop.xlane.xlu0 %2552
    %2554 = vmax.xlane.f32.xlu0 %v2483
    %v2555 = vpop.xlane.xlu0 %2554
    %2556 = vmax.xlane.f32.xlu0 %v2484
    %v2557 = vpop.xlane.xlu0 %2556
    %2558 = vmax.xlane.f32.xlu0 %v2485
    %v2559 = vpop.xlane.xlu0 %2558
    %2560 = vmax.xlane.f32.xlu0 %v2486
    %v2561 = vpop.xlane.xlu0 %2560
    %2562 = vmax.xlane.f32.xlu0 %v2487
    %v2563 = vpop.xlane.xlu0 %2562
    %2564 = vmax.xlane.f32.xlu0 %v2488
    %v2565 = vpop.xlane.xlu0 %2564
    %2566 = vmax.xlane.f32.xlu0 %v2489
    %v2567 = vpop.xlane.xlu0 %2566
    %2568 = vmax.xlane.f32.xlu0 %v2490
    %v2569 = vpop.xlane.xlu0 %2568
    %2570 = vmax.xlane.f32.xlu0 %v2491
    %v2571 = vpop.xlane.xlu0 %2570
    %2572 = vmax.xlane.f32.xlu0 %v2492
    %v2573 = vpop.xlane.xlu0 %2572
    %2574 = vmax.xlane.f32.xlu0 %v2493
    %v2575 = vpop.xlane.xlu0 %2574
    %2576 = vmax.xlane.f32.xlu0 %v2494
    %v2577 = vpop.xlane.xlu0 %2576
    %2578 = vmax.xlane.f32.xlu0 %v2495
    %v2579 = vpop.xlane.xlu0 %2578
    %2580 = vmax.xlane.f32.xlu0 %v2496
    %v2581 = vpop.xlane.xlu0 %2580
    %2582 = vmax.xlane.f32.xlu0 %v2497
    %v2583 = vpop.xlane.xlu0 %2582
    %2584 = vmax.xlane.f32.xlu0 %v2498
    %v2585 = vpop.xlane.xlu0 %2584
    %2586 = vmax.xlane.f32.xlu0 %v2499
    %v2587 = vpop.xlane.xlu0 %2586
    %2588 = vmax.xlane.f32.xlu0 %v2500
    %v2589 = vpop.xlane.xlu0 %2588
    %2590 = vmax.xlane.f32.xlu0 %v2501
    %v2591 = vpop.xlane.xlu0 %2590
    %2592 = vmax.xlane.f32.xlu0 %v2502
    %v2593 = vpop.xlane.xlu0 %2592
    %2594 = vmax.xlane.f32.xlu0 %v2503
    %v2595 = vpop.xlane.xlu0 %2594
    %2596 = vmax.xlane.f32.xlu0 %v2504
    %v2597 = vpop.xlane.xlu0 %2596
    %2598 = vmax.xlane.f32.xlu0 %v2505
    %v2599 = vpop.xlane.xlu0 %2598
    %2600 = vmax.xlane.f32.xlu0 %v2506
    %v2601 = vpop.xlane.xlu0 %2600
    %2602 = vmax.xlane.f32.xlu0 %v2507
    %v2603 = vpop.xlane.xlu0 %2602
    %2604 = vmax.xlane.f32.xlu0 %v2508
    %v2605 = vpop.xlane.xlu0 %2604
    %2606 = vmax.xlane.f32.xlu0 %v2509
    %v2607 = vpop.xlane.xlu0 %2606
    %2608 = vmax.xlane.f32.xlu0 %v2510
    %v2609 = vpop.xlane.xlu0 %2608
    %2610 = vmax.xlane.f32.xlu0 %v2511
    %v2611 = vpop.xlane.xlu0 %2610
    %2612 = vmax.xlane.f32.xlu0 %v2512
    %v2613 = vpop.xlane.xlu0 %2612
    %2614 = vmax.xlane.f32.xlu0 %v2513
    %v2615 = vpop.xlane.xlu0 %2614
    %2616 = vmax.xlane.f32.xlu0 %v2514
    %v2617 = vpop.xlane.xlu0 %2616
    %2618 = vmax.xlane.f32.xlu0 %v2515
    %v2619 = vpop.xlane.xlu0 %2618
    %2620 = vmax.xlane.f32.xlu0 %v2516
    %v2621 = vpop.xlane.xlu0 %2620
    %2622 = vmax.xlane.f32.xlu0 %v2517
    %v2623 = vpop.xlane.xlu0 %2622
    %2624 = vmax.xlane.f32.xlu0 %v2518
    %v2625 = vpop.xlane.xlu0 %2624
    %2626 = vmax.xlane.f32.xlu0 %v2519
    %v2627 = vpop.xlane.xlu0 %2626
    %2628 = vmax.xlane.f32.xlu0 %v2520
    %v2629 = vpop.xlane.xlu0 %2628
    %2630 = vmax.xlane.f32.xlu0 %v2521
    %v2631 = vpop.xlane.xlu0 %2630
    %2632 = vmax.xlane.f32.xlu0 %v2522
    %v2633 = vpop.xlane.xlu0 %2632
    %2634 = vmax.xlane.f32.xlu0 %v2523
    %v2635 = vpop.xlane.xlu0 %2634
    %2636 = vmax.xlane.f32.xlu0 %v2524
    %v2637 = vpop.xlane.xlu0 %2636
    %2638 = vmax.xlane.f32.xlu0 %v2525
    %v2639 = vpop.xlane.xlu0 %2638
    %2640 = vmax.xlane.f32.xlu0 %v2526
    %v2641 = vpop.xlane.xlu0 %2640
    %2642 = vmax.xlane.f32.xlu0 %v2527
    %v2643 = vpop.xlane.xlu0 %2642
    %2644 = vmax.xlane.f32.xlu0 %v2528
    %v2645 = vpop.xlane.xlu0 %2644
    %2646 = vmax.xlane.f32.xlu0 %v2529
    %v2647 = vpop.xlane.xlu0 %2646
    %2648 = vmax.xlane.f32.xlu0 %v2530
    %v2649 = vpop.xlane.xlu0 %2648
    %2650 = vmax.xlane.f32.xlu0 %v2531
    %v2651 = vpop.xlane.xlu0 %2650
    %2652 = vmax.xlane.f32.xlu0 %v2532
    %v2653 = vpop.xlane.xlu0 %2652
    %2654 = vmax.xlane.f32.xlu0 %v2533
    %v2655 = vpop.xlane.xlu0 %2654
    %2656 = vmax.xlane.f32.xlu0 %v2534
    %v2657 = vpop.xlane.xlu0 %2656
    %2658 = vmax.xlane.f32.xlu0 %v2535
    %v2659 = vpop.xlane.xlu0 %2658
    %2660 = vmax.xlane.f32.xlu0 %v2536
    %v2661 = vpop.xlane.xlu0 %2660
    %2662 = vmax.xlane.f32.xlu0 %v2537
    %v2663 = vpop.xlane.xlu0 %2662
    %2664 = vmax.xlane.f32.xlu0 %v2538
    %v2665 = vpop.xlane.xlu0 %2664
    %2666 = vmax.xlane.f32.xlu0 %v2539
    %v2667 = vpop.xlane.xlu0 %2666
    %vm2668 = vcmp.eq.f32.partialorder %v2476, %v2541
    %vm2669 = vcmp.eq.f32.partialorder %v2477, %v2543
    %vm2670 = vcmp.eq.f32.partialorder %v2478, %v2545
    %vm2671 = vcmp.eq.f32.partialorder %v2479, %v2547
    %vm2672 = vcmp.eq.f32.partialorder %v2480, %v2549
    %vm2673 = vcmp.eq.f32.partialorder %v2481, %v2551
    %vm2674 = vcmp.eq.f32.partialorder %v2482, %v2553
    %vm2675 = vcmp.eq.f32.partialorder %v2483, %v2555
    %vm2676 = vcmp.eq.f32.partialorder %v2484, %v2557
    %vm2677 = vcmp.eq.f32.partialorder %v2485, %v2559
    %vm2678 = vcmp.eq.f32.partialorder %v2486, %v2561
    %vm2679 = vcmp.eq.f32.partialorder %v2487, %v2563
    %vm2680 = vcmp.eq.f32.partialorder %v2488, %v2565
    %vm2681 = vcmp.eq.f32.partialorder %v2489, %v2567
    %vm2682 = vcmp.eq.f32.partialorder %v2490, %v2569
    %vm2683 = vcmp.eq.f32.partialorder %v2491, %v2571
    %vm2684 = vcmp.eq.f32.partialorder %v2492, %v2573
    %vm2685 = vcmp.eq.f32.partialorder %v2493, %v2575
    %vm2686 = vcmp.eq.f32.partialorder %v2494, %v2577
    %vm2687 = vcmp.eq.f32.partialorder %v2495, %v2579
    %vm2688 = vcmp.eq.f32.partialorder %v2496, %v2581
    %vm2689 = vcmp.eq.f32.partialorder %v2497, %v2583
    %vm2690 = vcmp.eq.f32.partialorder %v2498, %v2585
    %vm2691 = vcmp.eq.f32.partialorder %v2499, %v2587
    %vm2692 = vcmp.eq.f32.partialorder %v2500, %v2589
    %vm2693 = vcmp.eq.f32.partialorder %v2501, %v2591
    %vm2694 = vcmp.eq.f32.partialorder %v2502, %v2593
    %vm2695 = vcmp.eq.f32.partialorder %v2503, %v2595
    %vm2696 = vcmp.eq.f32.partialorder %v2504, %v2597
    %vm2697 = vcmp.eq.f32.partialorder %v2505, %v2599
    %vm2698 = vcmp.eq.f32.partialorder %v2506, %v2601
    %vm2699 = vcmp.eq.f32.partialorder %v2507, %v2603
    %vm2700 = vcmp.eq.f32.partialorder %v2508, %v2605
    %vm2701 = vcmp.eq.f32.partialorder %v2509, %v2607
    %vm2702 = vcmp.eq.f32.partialorder %v2510, %v2609
    %vm2703 = vcmp.eq.f32.partialorder %v2511, %v2611
    %vm2704 = vcmp.eq.f32.partialorder %v2512, %v2613
    %vm2705 = vcmp.eq.f32.partialorder %v2513, %v2615
    %vm2706 = vcmp.eq.f32.partialorder %v2514, %v2617
    %vm2707 = vcmp.eq.f32.partialorder %v2515, %v2619
    %vm2708 = vcmp.eq.f32.partialorder %v2516, %v2621
    %vm2709 = vcmp.eq.f32.partialorder %v2517, %v2623
    %vm2710 = vcmp.eq.f32.partialorder %v2518, %v2625
    %vm2711 = vcmp.eq.f32.partialorder %v2519, %v2627
    %vm2712 = vcmp.eq.f32.partialorder %v2520, %v2629
    %vm2713 = vcmp.eq.f32.partialorder %v2521, %v2631
    %vm2714 = vcmp.eq.f32.partialorder %v2522, %v2633
    %vm2715 = vcmp.eq.f32.partialorder %v2523, %v2635
    %vm2716 = vcmp.eq.f32.partialorder %v2524, %v2637
    %vm2717 = vcmp.eq.f32.partialorder %v2525, %v2639
    %vm2718 = vcmp.eq.f32.partialorder %v2526, %v2641
    %vm2719 = vcmp.eq.f32.partialorder %v2527, %v2643
    %vm2720 = vcmp.eq.f32.partialorder %v2528, %v2645
    %vm2721 = vcmp.eq.f32.partialorder %v2529, %v2647
    %vm2722 = vcmp.eq.f32.partialorder %v2530, %v2649
    %vm2723 = vcmp.eq.f32.partialorder %v2531, %v2651
    %vm2724 = vcmp.eq.f32.partialorder %v2532, %v2653
    %vm2725 = vcmp.eq.f32.partialorder %v2533, %v2655
    %vm2726 = vcmp.eq.f32.partialorder %v2534, %v2657
    %vm2727 = vcmp.eq.f32.partialorder %v2535, %v2659
    %vm2728 = vcmp.eq.f32.partialorder %v2536, %v2661
    %vm2729 = vcmp.eq.f32.partialorder %v2537, %v2663
    %vm2730 = vcmp.eq.f32.partialorder %v2538, %v2665
    %vm2731 = vcmp.eq.f32.partialorder %v2539, %v2667
    %v2732 = vsel %vm2668, %v2472, 1073741824
    %v2733 = vsel %vm2669, %v2472, 1073741824
    %v2734 = vsel %vm2670, %v2472, 1073741824
    %v2735 = vsel %vm2671, %v2472, 1073741824
    %v2736 = vsel %vm2672, %v2472, 1073741824
    %v2737 = vsel %vm2673, %v2472, 1073741824
    %v2738 = vsel %vm2674, %v2472, 1073741824
    %v2739 = vsel %vm2675, %v2472, 1073741824
    %v2740 = vsel %vm2676, %v2472, 1073741824
    %v2741 = vsel %vm2677, %v2472, 1073741824
    %v2742 = vsel %vm2678, %v2472, 1073741824
    %v2743 = vsel %vm2679, %v2472, 1073741824
    %v2744 = vsel %vm2680, %v2472, 1073741824
    %v2745 = vsel %vm2681, %v2472, 1073741824
    %v2746 = vsel %vm2682, %v2472, 1073741824
    %v2747 = vsel %vm2683, %v2472, 1073741824
    %v2748 = vsel %vm2684, %v2472, 1073741824
    %v2749 = vsel %vm2685, %v2472, 1073741824
    %v2750 = vsel %vm2686, %v2472, 1073741824
    %v2751 = vsel %vm2687, %v2472, 1073741824
    %v2752 = vsel %vm2688, %v2472, 1073741824
    %v2753 = vsel %vm2689, %v2472, 1073741824
    %v2754 = vsel %vm2690, %v2472, 1073741824
    %v2755 = vsel %vm2691, %v2472, 1073741824
    %v2756 = vsel %vm2692, %v2472, 1073741824
    %v2757 = vsel %vm2693, %v2472, 1073741824
    %v2758 = vsel %vm2694, %v2472, 1073741824
    %v2759 = vsel %vm2695, %v2472, 1073741824
    %v2760 = vsel %vm2696, %v2472, 1073741824
    %v2761 = vsel %vm2697, %v2472, 1073741824
    %v2762 = vsel %vm2698, %v2472, 1073741824
    %v2763 = vsel %vm2699, %v2472, 1073741824
    %v2764 = vsel %vm2700, %v2472, 1073741824
    %v2765 = vsel %vm2701, %v2472, 1073741824
    %v2766 = vsel %vm2702, %v2472, 1073741824
    %v2767 = vsel %vm2703, %v2472, 1073741824
    %v2768 = vsel %vm2704, %v2472, 1073741824
    %v2769 = vsel %vm2705, %v2472, 1073741824
    %v2770 = vsel %vm2706, %v2472, 1073741824
    %v2771 = vsel %vm2707, %v2472, 1073741824
    %v2772 = vsel %vm2708, %v2472, 1073741824
    %v2773 = vsel %vm2709, %v2472, 1073741824
    %v2774 = vsel %vm2710, %v2472, 1073741824
    %v2775 = vsel %vm2711, %v2472, 1073741824
    %v2776 = vsel %vm2712, %v2472, 1073741824
    %v2777 = vsel %vm2713, %v2472, 1073741824
    %v2778 = vsel %vm2714, %v2472, 1073741824
    %v2779 = vsel %vm2715, %v2472, 1073741824
    %v2780 = vsel %vm2716, %v2472, 1073741824
    %v2781 = vsel %vm2717, %v2472, 1073741824
    %v2782 = vsel %vm2718, %v2472, 1073741824
    %v2783 = vsel %vm2719, %v2472, 1073741824
    %v2784 = vsel %vm2720, %v2472, 1073741824
    %v2785 = vsel %vm2721, %v2472, 1073741824
    %v2786 = vsel %vm2722, %v2472, 1073741824
    %v2787 = vsel %vm2723, %v2472, 1073741824
    %v2788 = vsel %vm2724, %v2472, 1073741824
    %v2789 = vsel %vm2725, %v2472, 1073741824
    %v2790 = vsel %vm2726, %v2472, 1073741824
    %v2791 = vsel %vm2727, %v2472, 1073741824
    %v2792 = vsel %vm2728, %v2472, 1073741824
    %v2793 = vsel %vm2729, %v2472, 1073741824
    %v2794 = vsel %vm2730, %v2472, 1073741824
    %v2795 = vsel %vm2731, %v2472, 1073741824
    %v2796 = vand.u32 %v2732, 65535
    %v2797 = vshra.s32 %v2732, 16
    %v2798 = vcvt.s32.f32 %v2796
    %v2799 = vcvt.s32.f32 %v2797
    %2800 = vmin.xlane.f32.xlu0 %v2799
    %v2801 = vpop.xlane.xlu0 %2800
    %vm2802 = vcmp.eq.f32.partialorder %v2799, %v2801
    %v2803 = vsel %vm2802, %v2798, inf
    %2804 = vmin.xlane.f32.xlu0 %v2803
    %v2805 = vpop.xlane.xlu0 %2804
    %v2806 = vcvt.f32.s32 %v2805
    %v2807 = vcvt.f32.s32 %v2801
    %v2808 = vshll.u32 %v2807, 16
    %v2809 = vadd.s32 %v2808, %v2806
    %v2810 = vand.u32 %v2733, 65535
    %v2811 = vshra.s32 %v2733, 16
    %v2812 = vcvt.s32.f32 %v2810
    %v2813 = vcvt.s32.f32 %v2811
    %2814 = vmin.xlane.f32.xlu0 %v2813
    %v2815 = vpop.xlane.xlu0 %2814
    %vm2816 = vcmp.eq.f32.partialorder %v2813, %v2815
    %v2817 = vsel %vm2816, %v2812, inf
    %2818 = vmin.xlane.f32.xlu0 %v2817
    %v2819 = vpop.xlane.xlu0 %2818
    %v2820 = vcvt.f32.s32 %v2819
    %v2821 = vcvt.f32.s32 %v2815
    %v2822 = vshll.u32 %v2821, 16
    %v2823 = vadd.s32 %v2822, %v2820
    %v2824 = vand.u32 %v2734, 65535
    %v2825 = vshra.s32 %v2734, 16
    %v2826 = vcvt.s32.f32 %v2824
    %v2827 = vcvt.s32.f32 %v2825
    %2828 = vmin.xlane.f32.xlu0 %v2827
    %v2829 = vpop.xlane.xlu0 %2828
    %vm2830 = vcmp.eq.f32.partialorder %v2827, %v2829
    %v2831 = vsel %vm2830, %v2826, inf
    %2832 = vmin.xlane.f32.xlu0 %v2831
    %v2833 = vpop.xlane.xlu0 %2832
    %v2834 = vcvt.f32.s32 %v2833
    %v2835 = vcvt.f32.s32 %v2829
    %v2836 = vshll.u32 %v2835, 16
    %v2837 = vadd.s32 %v2836, %v2834
    %v2838 = vand.u32 %v2735, 65535
    %v2839 = vshra.s32 %v2735, 16
    %v2840 = vcvt.s32.f32 %v2838
    %v2841 = vcvt.s32.f32 %v2839
    %2842 = vmin.xlane.f32.xlu0 %v2841
    %v2843 = vpop.xlane.xlu0 %2842
    %vm2844 = vcmp.eq.f32.partialorder %v2841, %v2843
    %v2845 = vsel %vm2844, %v2840, inf
    %2846 = vmin.xlane.f32.xlu0 %v2845
    %v2847 = vpop.xlane.xlu0 %2846
    %v2848 = vcvt.f32.s32 %v2847
    %v2849 = vcvt.f32.s32 %v2843
    %v2850 = vshll.u32 %v2849, 16
    %v2851 = vadd.s32 %v2850, %v2848
    %v2852 = vand.u32 %v2736, 65535
    %v2853 = vshra.s32 %v2736, 16
    %v2854 = vcvt.s32.f32 %v2852
    %v2855 = vcvt.s32.f32 %v2853
    %2856 = vmin.xlane.f32.xlu0 %v2855
    %v2857 = vpop.xlane.xlu0 %2856
    %vm2858 = vcmp.eq.f32.partialorder %v2855, %v2857
    %v2859 = vsel %vm2858, %v2854, inf
    %2860 = vmin.xlane.f32.xlu0 %v2859
    %v2861 = vpop.xlane.xlu0 %2860
    %v2862 = vcvt.f32.s32 %v2861
    %v2863 = vcvt.f32.s32 %v2857
    %v2864 = vshll.u32 %v2863, 16
    %v2865 = vadd.s32 %v2864, %v2862
    %v2866 = vand.u32 %v2737, 65535
    %v2867 = vshra.s32 %v2737, 16
    %v2868 = vcvt.s32.f32 %v2866
    %v2869 = vcvt.s32.f32 %v2867
    %2870 = vmin.xlane.f32.xlu0 %v2869
    %v2871 = vpop.xlane.xlu0 %2870
    %vm2872 = vcmp.eq.f32.partialorder %v2869, %v2871
    %v2873 = vsel %vm2872, %v2868, inf
    %2874 = vmin.xlane.f32.xlu0 %v2873
    %v2875 = vpop.xlane.xlu0 %2874
    %v2876 = vcvt.f32.s32 %v2875
    %v2877 = vcvt.f32.s32 %v2871
    %v2878 = vshll.u32 %v2877, 16
    %v2879 = vadd.s32 %v2878, %v2876
    %v2880 = vand.u32 %v2738, 65535
    %v2881 = vshra.s32 %v2738, 16
    %v2882 = vcvt.s32.f32 %v2880
    %v2883 = vcvt.s32.f32 %v2881
    %2884 = vmin.xlane.f32.xlu0 %v2883
    %v2885 = vpop.xlane.xlu0 %2884
    %vm2886 = vcmp.eq.f32.partialorder %v2883, %v2885
    %v2887 = vsel %vm2886, %v2882, inf
    %2888 = vmin.xlane.f32.xlu0 %v2887
    %v2889 = vpop.xlane.xlu0 %2888
    %v2890 = vcvt.f32.s32 %v2889
    %v2891 = vcvt.f32.s32 %v2885
    %v2892 = vshll.u32 %v2891, 16
    %v2893 = vadd.s32 %v2892, %v2890
    %v2894 = vand.u32 %v2739, 65535
    %v2895 = vshra.s32 %v2739, 16
    %v2896 = vcvt.s32.f32 %v2894
    %v2897 = vcvt.s32.f32 %v2895
    %2898 = vmin.xlane.f32.xlu0 %v2897
    %v2899 = vpop.xlane.xlu0 %2898
    %vm2900 = vcmp.eq.f32.partialorder %v2897, %v2899
    %v2901 = vsel %vm2900, %v2896, inf
    %2902 = vmin.xlane.f32.xlu0 %v2901
    %v2903 = vpop.xlane.xlu0 %2902
    %v2904 = vcvt.f32.s32 %v2903
    %v2905 = vcvt.f32.s32 %v2899
    %v2906 = vshll.u32 %v2905, 16
    %v2907 = vadd.s32 %v2906, %v2904
    %v2908 = vand.u32 %v2740, 65535
    %v2909 = vshra.s32 %v2740, 16
    %v2910 = vcvt.s32.f32 %v2908
    %v2911 = vcvt.s32.f32 %v2909
    %2912 = vmin.xlane.f32.xlu0 %v2911
    %v2913 = vpop.xlane.xlu0 %2912
    %vm2914 = vcmp.eq.f32.partialorder %v2911, %v2913
    %v2915 = vsel %vm2914, %v2910, inf
    %2916 = vmin.xlane.f32.xlu0 %v2915
    %v2917 = vpop.xlane.xlu0 %2916
    %v2918 = vcvt.f32.s32 %v2917
    %v2919 = vcvt.f32.s32 %v2913
    %v2920 = vshll.u32 %v2919, 16
    %v2921 = vadd.s32 %v2920, %v2918
    %v2922 = vand.u32 %v2741, 65535
    %v2923 = vshra.s32 %v2741, 16
    %v2924 = vcvt.s32.f32 %v2922
    %v2925 = vcvt.s32.f32 %v2923
    %2926 = vmin.xlane.f32.xlu0 %v2925
    %v2927 = vpop.xlane.xlu0 %2926
    %vm2928 = vcmp.eq.f32.partialorder %v2925, %v2927
    %v2929 = vsel %vm2928, %v2924, inf
    %2930 = vmin.xlane.f32.xlu0 %v2929
    %v2931 = vpop.xlane.xlu0 %2930
    %v2932 = vcvt.f32.s32 %v2931
    %v2933 = vcvt.f32.s32 %v2927
    %v2934 = vshll.u32 %v2933, 16
    %v2935 = vadd.s32 %v2934, %v2932
    %v2936 = vand.u32 %v2742, 65535
    %v2937 = vshra.s32 %v2742, 16
    %v2938 = vcvt.s32.f32 %v2936
    %v2939 = vcvt.s32.f32 %v2937
    %2940 = vmin.xlane.f32.xlu0 %v2939
    %v2941 = vpop.xlane.xlu0 %2940
    %vm2942 = vcmp.eq.f32.partialorder %v2939, %v2941
    %v2943 = vsel %vm2942, %v2938, inf
    %2944 = vmin.xlane.f32.xlu0 %v2943
    %v2945 = vpop.xlane.xlu0 %2944
    %v2946 = vcvt.f32.s32 %v2945
    %v2947 = vcvt.f32.s32 %v2941
    %v2948 = vshll.u32 %v2947, 16
    %v2949 = vadd.s32 %v2948, %v2946
    %v2950 = vand.u32 %v2743, 65535
    %v2951 = vshra.s32 %v2743, 16
    %v2952 = vcvt.s32.f32 %v2950
    %v2953 = vcvt.s32.f32 %v2951
    %2954 = vmin.xlane.f32.xlu0 %v2953
    %v2955 = vpop.xlane.xlu0 %2954
    %vm2956 = vcmp.eq.f32.partialorder %v2953, %v2955
    %v2957 = vsel %vm2956, %v2952, inf
    %2958 = vmin.xlane.f32.xlu0 %v2957
    %v2959 = vpop.xlane.xlu0 %2958
    %v2960 = vcvt.f32.s32 %v2959
    %v2961 = vcvt.f32.s32 %v2955
    %v2962 = vshll.u32 %v2961, 16
    %v2963 = vadd.s32 %v2962, %v2960
    %v2964 = vand.u32 %v2744, 65535
    %v2965 = vshra.s32 %v2744, 16
    %v2966 = vcvt.s32.f32 %v2964
    %v2967 = vcvt.s32.f32 %v2965
    %2968 = vmin.xlane.f32.xlu0 %v2967
    %v2969 = vpop.xlane.xlu0 %2968
    %vm2970 = vcmp.eq.f32.partialorder %v2967, %v2969
    %v2971 = vsel %vm2970, %v2966, inf
    %2972 = vmin.xlane.f32.xlu0 %v2971
    %v2973 = vpop.xlane.xlu0 %2972
    %v2974 = vcvt.f32.s32 %v2973
    %v2975 = vcvt.f32.s32 %v2969
    %v2976 = vshll.u32 %v2975, 16
    %v2977 = vadd.s32 %v2976, %v2974
    %v2978 = vand.u32 %v2745, 65535
    %v2979 = vshra.s32 %v2745, 16
    %v2980 = vcvt.s32.f32 %v2978
    %v2981 = vcvt.s32.f32 %v2979
    %2982 = vmin.xlane.f32.xlu0 %v2981
    %v2983 = vpop.xlane.xlu0 %2982
    %vm2984 = vcmp.eq.f32.partialorder %v2981, %v2983
    %v2985 = vsel %vm2984, %v2980, inf
    %2986 = vmin.xlane.f32.xlu0 %v2985
    %v2987 = vpop.xlane.xlu0 %2986
    %v2988 = vcvt.f32.s32 %v2987
    %v2989 = vcvt.f32.s32 %v2983
    %v2990 = vshll.u32 %v2989, 16
    %v2991 = vadd.s32 %v2990, %v2988
    %v2992 = vand.u32 %v2746, 65535
    %v2993 = vshra.s32 %v2746, 16
    %v2994 = vcvt.s32.f32 %v2992
    %v2995 = vcvt.s32.f32 %v2993
    %2996 = vmin.xlane.f32.xlu0 %v2995
    %v2997 = vpop.xlane.xlu0 %2996
    %vm2998 = vcmp.eq.f32.partialorder %v2995, %v2997
    %v2999 = vsel %vm2998, %v2994, inf
    %3000 = vmin.xlane.f32.xlu0 %v2999
    %v3001 = vpop.xlane.xlu0 %3000
    %v3002 = vcvt.f32.s32 %v3001
    %v3003 = vcvt.f32.s32 %v2997
    %v3004 = vshll.u32 %v3003, 16
    %v3005 = vadd.s32 %v3004, %v3002
    %v3006 = vand.u32 %v2747, 65535
    %v3007 = vshra.s32 %v2747, 16
    %v3008 = vcvt.s32.f32 %v3006
    %v3009 = vcvt.s32.f32 %v3007
    %3010 = vmin.xlane.f32.xlu0 %v3009
    %v3011 = vpop.xlane.xlu0 %3010
    %vm3012 = vcmp.eq.f32.partialorder %v3009, %v3011
    %v3013 = vsel %vm3012, %v3008, inf
    %3014 = vmin.xlane.f32.xlu0 %v3013
    %v3015 = vpop.xlane.xlu0 %3014
    %v3016 = vcvt.f32.s32 %v3015
    %v3017 = vcvt.f32.s32 %v3011
    %v3018 = vshll.u32 %v3017, 16
    %v3019 = vadd.s32 %v3018, %v3016
    %v3020 = vand.u32 %v2748, 65535
    %v3021 = vshra.s32 %v2748, 16
    %v3022 = vcvt.s32.f32 %v3020
    %v3023 = vcvt.s32.f32 %v3021
    %3024 = vmin.xlane.f32.xlu0 %v3023
    %v3025 = vpop.xlane.xlu0 %3024
    %vm3026 = vcmp.eq.f32.partialorder %v3023, %v3025
    %v3027 = vsel %vm3026, %v3022, inf
    %3028 = vmin.xlane.f32.xlu0 %v3027
    %v3029 = vpop.xlane.xlu0 %3028
    %v3030 = vcvt.f32.s32 %v3029
    %v3031 = vcvt.f32.s32 %v3025
    %v3032 = vshll.u32 %v3031, 16
    %v3033 = vadd.s32 %v3032, %v3030
    %v3034 = vand.u32 %v2749, 65535
    %v3035 = vshra.s32 %v2749, 16
    %v3036 = vcvt.s32.f32 %v3034
    %v3037 = vcvt.s32.f32 %v3035
    %3038 = vmin.xlane.f32.xlu0 %v3037
    %v3039 = vpop.xlane.xlu0 %3038
    %vm3040 = vcmp.eq.f32.partialorder %v3037, %v3039
    %v3041 = vsel %vm3040, %v3036, inf
    %3042 = vmin.xlane.f32.xlu0 %v3041
    %v3043 = vpop.xlane.xlu0 %3042
    %v3044 = vcvt.f32.s32 %v3043
    %v3045 = vcvt.f32.s32 %v3039
    %v3046 = vshll.u32 %v3045, 16
    %v3047 = vadd.s32 %v3046, %v3044
    %v3048 = vand.u32 %v2750, 65535
    %v3049 = vshra.s32 %v2750, 16
    %v3050 = vcvt.s32.f32 %v3048
    %v3051 = vcvt.s32.f32 %v3049
    %3052 = vmin.xlane.f32.xlu0 %v3051
    %v3053 = vpop.xlane.xlu0 %3052
    %vm3054 = vcmp.eq.f32.partialorder %v3051, %v3053
    %v3055 = vsel %vm3054, %v3050, inf
    %3056 = vmin.xlane.f32.xlu0 %v3055
    %v3057 = vpop.xlane.xlu0 %3056
    %v3058 = vcvt.f32.s32 %v3057
    %v3059 = vcvt.f32.s32 %v3053
    %v3060 = vshll.u32 %v3059, 16
    %v3061 = vadd.s32 %v3060, %v3058
    %v3062 = vand.u32 %v2751, 65535
    %v3063 = vshra.s32 %v2751, 16
    %v3064 = vcvt.s32.f32 %v3062
    %v3065 = vcvt.s32.f32 %v3063
    %3066 = vmin.xlane.f32.xlu0 %v3065
    %v3067 = vpop.xlane.xlu0 %3066
    %vm3068 = vcmp.eq.f32.partialorder %v3065, %v3067
    %v3069 = vsel %vm3068, %v3064, inf
    %3070 = vmin.xlane.f32.xlu0 %v3069
    %v3071 = vpop.xlane.xlu0 %3070
    %v3072 = vcvt.f32.s32 %v3071
    %v3073 = vcvt.f32.s32 %v3067
    %v3074 = vshll.u32 %v3073, 16
    %v3075 = vadd.s32 %v3074, %v3072
    %v3076 = vand.u32 %v2752, 65535
    %v3077 = vshra.s32 %v2752, 16
    %v3078 = vcvt.s32.f32 %v3076
    %v3079 = vcvt.s32.f32 %v3077
    %3080 = vmin.xlane.f32.xlu0 %v3079
    %v3081 = vpop.xlane.xlu0 %3080
    %vm3082 = vcmp.eq.f32.partialorder %v3079, %v3081
    %v3083 = vsel %vm3082, %v3078, inf
    %3084 = vmin.xlane.f32.xlu0 %v3083
    %v3085 = vpop.xlane.xlu0 %3084
    %v3086 = vcvt.f32.s32 %v3085
    %v3087 = vcvt.f32.s32 %v3081
    %v3088 = vshll.u32 %v3087, 16
    %v3089 = vadd.s32 %v3088, %v3086
    %v3090 = vand.u32 %v2753, 65535
    %v3091 = vshra.s32 %v2753, 16
    %v3092 = vcvt.s32.f32 %v3090
    %v3093 = vcvt.s32.f32 %v3091
    %3094 = vmin.xlane.f32.xlu0 %v3093
    %v3095 = vpop.xlane.xlu0 %3094
    %vm3096 = vcmp.eq.f32.partialorder %v3093, %v3095
    %v3097 = vsel %vm3096, %v3092, inf
    %3098 = vmin.xlane.f32.xlu0 %v3097
    %v3099 = vpop.xlane.xlu0 %3098
    %v3100 = vcvt.f32.s32 %v3099
    %v3101 = vcvt.f32.s32 %v3095
    %v3102 = vshll.u32 %v3101, 16
    %v3103 = vadd.s32 %v3102, %v3100
    %v3104 = vand.u32 %v2754, 65535
    %v3105 = vshra.s32 %v2754, 16
    %v3106 = vcvt.s32.f32 %v3104
    %v3107 = vcvt.s32.f32 %v3105
    %3108 = vmin.xlane.f32.xlu0 %v3107
    %v3109 = vpop.xlane.xlu0 %3108
    %vm3110 = vcmp.eq.f32.partialorder %v3107, %v3109
    %v3111 = vsel %vm3110, %v3106, inf
    %3112 = vmin.xlane.f32.xlu0 %v3111
    %v3113 = vpop.xlane.xlu0 %3112
    %v3114 = vcvt.f32.s32 %v3113
    %v3115 = vcvt.f32.s32 %v3109
    %v3116 = vshll.u32 %v3115, 16
    %v3117 = vadd.s32 %v3116, %v3114
    %v3118 = vand.u32 %v2755, 65535
    %v3119 = vshra.s32 %v2755, 16
    %v3120 = vcvt.s32.f32 %v3118
    %v3121 = vcvt.s32.f32 %v3119
    %3122 = vmin.xlane.f32.xlu0 %v3121
    %v3123 = vpop.xlane.xlu0 %3122
    %vm3124 = vcmp.eq.f32.partialorder %v3121, %v3123
    %v3125 = vsel %vm3124, %v3120, inf
    %3126 = vmin.xlane.f32.xlu0 %v3125
    %v3127 = vpop.xlane.xlu0 %3126
    %v3128 = vcvt.f32.s32 %v3127
    %v3129 = vcvt.f32.s32 %v3123
    %v3130 = vshll.u32 %v3129, 16
    %v3131 = vadd.s32 %v3130, %v3128
    %v3132 = vand.u32 %v2756, 65535
    %v3133 = vshra.s32 %v2756, 16
    %v3134 = vcvt.s32.f32 %v3132
    %v3135 = vcvt.s32.f32 %v3133
    %3136 = vmin.xlane.f32.xlu0 %v3135
    %v3137 = vpop.xlane.xlu0 %3136
    %vm3138 = vcmp.eq.f32.partialorder %v3135, %v3137
    %v3139 = vsel %vm3138, %v3134, inf
    %3140 = vmin.xlane.f32.xlu0 %v3139
    %v3141 = vpop.xlane.xlu0 %3140
    %v3142 = vcvt.f32.s32 %v3141
    %v3143 = vcvt.f32.s32 %v3137
    %v3144 = vshll.u32 %v3143, 16
    %v3145 = vadd.s32 %v3144, %v3142
    %v3146 = vand.u32 %v2757, 65535
    %v3147 = vshra.s32 %v2757, 16
    %v3148 = vcvt.s32.f32 %v3146
    %v3149 = vcvt.s32.f32 %v3147
    %3150 = vmin.xlane.f32.xlu0 %v3149
    %v3151 = vpop.xlane.xlu0 %3150
    %vm3152 = vcmp.eq.f32.partialorder %v3149, %v3151
    %v3153 = vsel %vm3152, %v3148, inf
    %3154 = vmin.xlane.f32.xlu0 %v3153
    %v3155 = vpop.xlane.xlu0 %3154
    %v3156 = vcvt.f32.s32 %v3155
    %v3157 = vcvt.f32.s32 %v3151
    %v3158 = vshll.u32 %v3157, 16
    %v3159 = vadd.s32 %v3158, %v3156
    %v3160 = vand.u32 %v2758, 65535
    %v3161 = vshra.s32 %v2758, 16
    %v3162 = vcvt.s32.f32 %v3160
    %v3163 = vcvt.s32.f32 %v3161
    %3164 = vmin.xlane.f32.xlu0 %v3163
    %v3165 = vpop.xlane.xlu0 %3164
    %vm3166 = vcmp.eq.f32.partialorder %v3163, %v3165
    %v3167 = vsel %vm3166, %v3162, inf
    %3168 = vmin.xlane.f32.xlu0 %v3167
    %v3169 = vpop.xlane.xlu0 %3168
    %v3170 = vcvt.f32.s32 %v3169
    %v3171 = vcvt.f32.s32 %v3165
    %v3172 = vshll.u32 %v3171, 16
    %v3173 = vadd.s32 %v3172, %v3170
    %v3174 = vand.u32 %v2759, 65535
    %v3175 = vshra.s32 %v2759, 16
    %v3176 = vcvt.s32.f32 %v3174
    %v3177 = vcvt.s32.f32 %v3175
    %3178 = vmin.xlane.f32.xlu0 %v3177
    %v3179 = vpop.xlane.xlu0 %3178
    %vm3180 = vcmp.eq.f32.partialorder %v3177, %v3179
    %v3181 = vsel %vm3180, %v3176, inf
    %3182 = vmin.xlane.f32.xlu0 %v3181
    %v3183 = vpop.xlane.xlu0 %3182
    %v3184 = vcvt.f32.s32 %v3183
    %v3185 = vcvt.f32.s32 %v3179
    %v3186 = vshll.u32 %v3185, 16
    %v3187 = vadd.s32 %v3186, %v3184
    %v3188 = vand.u32 %v2760, 65535
    %v3189 = vshra.s32 %v2760, 16
    %v3190 = vcvt.s32.f32 %v3188
    %v3191 = vcvt.s32.f32 %v3189
    %3192 = vmin.xlane.f32.xlu0 %v3191
    %v3193 = vpop.xlane.xlu0 %3192
    %vm3194 = vcmp.eq.f32.partialorder %v3191, %v3193
    %v3195 = vsel %vm3194, %v3190, inf
    %3196 = vmin.xlane.f32.xlu0 %v3195
    %v3197 = vpop.xlane.xlu0 %3196
    %v3198 = vcvt.f32.s32 %v3197
    %v3199 = vcvt.f32.s32 %v3193
    %v3200 = vshll.u32 %v3199, 16
    %v3201 = vadd.s32 %v3200, %v3198
    %v3202 = vand.u32 %v2761, 65535
    %v3203 = vshra.s32 %v2761, 16
    %v3204 = vcvt.s32.f32 %v3202
    %v3205 = vcvt.s32.f32 %v3203
    %3206 = vmin.xlane.f32.xlu0 %v3205
    %v3207 = vpop.xlane.xlu0 %3206
    %vm3208 = vcmp.eq.f32.partialorder %v3205, %v3207
    %v3209 = vsel %vm3208, %v3204, inf
    %3210 = vmin.xlane.f32.xlu0 %v3209
    %v3211 = vpop.xlane.xlu0 %3210
    %v3212 = vcvt.f32.s32 %v3211
    %v3213 = vcvt.f32.s32 %v3207
    %v3214 = vshll.u32 %v3213, 16
    %v3215 = vadd.s32 %v3214, %v3212
    %v3216 = vand.u32 %v2762, 65535
    %v3217 = vshra.s32 %v2762, 16
    %v3218 = vcvt.s32.f32 %v3216
    %v3219 = vcvt.s32.f32 %v3217
    %3220 = vmin.xlane.f32.xlu0 %v3219
    %v3221 = vpop.xlane.xlu0 %3220
    %vm3222 = vcmp.eq.f32.partialorder %v3219, %v3221
    %v3223 = vsel %vm3222, %v3218, inf
    %3224 = vmin.xlane.f32.xlu0 %v3223
    %v3225 = vpop.xlane.xlu0 %3224
    %v3226 = vcvt.f32.s32 %v3225
    %v3227 = vcvt.f32.s32 %v3221
    %v3228 = vshll.u32 %v3227, 16
    %v3229 = vadd.s32 %v3228, %v3226
    %v3230 = vand.u32 %v2763, 65535
    %v3231 = vshra.s32 %v2763, 16
    %v3232 = vcvt.s32.f32 %v3230
    %v3233 = vcvt.s32.f32 %v3231
    %3234 = vmin.xlane.f32.xlu0 %v3233
    %v3235 = vpop.xlane.xlu0 %3234
    %vm3236 = vcmp.eq.f32.partialorder %v3233, %v3235
    %v3237 = vsel %vm3236, %v3232, inf
    %3238 = vmin.xlane.f32.xlu0 %v3237
    %v3239 = vpop.xlane.xlu0 %3238
    %v3240 = vcvt.f32.s32 %v3239
    %v3241 = vcvt.f32.s32 %v3235
    %v3242 = vshll.u32 %v3241, 16
    %v3243 = vadd.s32 %v3242, %v3240
    %v3244 = vand.u32 %v2764, 65535
    %v3245 = vshra.s32 %v2764, 16
    %v3246 = vcvt.s32.f32 %v3244
    %v3247 = vcvt.s32.f32 %v3245
    %3248 = vmin.xlane.f32.xlu0 %v3247
    %v3249 = vpop.xlane.xlu0 %3248
    %vm3250 = vcmp.eq.f32.partialorder %v3247, %v3249
    %v3251 = vsel %vm3250, %v3246, inf
    %3252 = vmin.xlane.f32.xlu0 %v3251
    %v3253 = vpop.xlane.xlu0 %3252
    %v3254 = vcvt.f32.s32 %v3253
    %v3255 = vcvt.f32.s32 %v3249
    %v3256 = vshll.u32 %v3255, 16
    %v3257 = vadd.s32 %v3256, %v3254
    %v3258 = vand.u32 %v2765, 65535
    %v3259 = vshra.s32 %v2765, 16
    %v3260 = vcvt.s32.f32 %v3258
    %v3261 = vcvt.s32.f32 %v3259
    %3262 = vmin.xlane.f32.xlu0 %v3261
    %v3263 = vpop.xlane.xlu0 %3262
    %vm3264 = vcmp.eq.f32.partialorder %v3261, %v3263
    %v3265 = vsel %vm3264, %v3260, inf
    %3266 = vmin.xlane.f32.xlu0 %v3265
    %v3267 = vpop.xlane.xlu0 %3266
    %v3268 = vcvt.f32.s32 %v3267
    %v3269 = vcvt.f32.s32 %v3263
    %v3270 = vshll.u32 %v3269, 16
    %v3271 = vadd.s32 %v3270, %v3268
    %v3272 = vand.u32 %v2766, 65535
    %v3273 = vshra.s32 %v2766, 16
    %v3274 = vcvt.s32.f32 %v3272
    %v3275 = vcvt.s32.f32 %v3273
    %3276 = vmin.xlane.f32.xlu0 %v3275
    %v3277 = vpop.xlane.xlu0 %3276
    %vm3278 = vcmp.eq.f32.partialorder %v3275, %v3277
    %v3279 = vsel %vm3278, %v3274, inf
    %3280 = vmin.xlane.f32.xlu0 %v3279
    %v3281 = vpop.xlane.xlu0 %3280
    %v3282 = vcvt.f32.s32 %v3281
    %v3283 = vcvt.f32.s32 %v3277
    %v3284 = vshll.u32 %v3283, 16
    %v3285 = vadd.s32 %v3284, %v3282
    %v3286 = vand.u32 %v2767, 65535
    %v3287 = vshra.s32 %v2767, 16
    %v3288 = vcvt.s32.f32 %v3286
    %v3289 = vcvt.s32.f32 %v3287
    %3290 = vmin.xlane.f32.xlu0 %v3289
    %v3291 = vpop.xlane.xlu0 %3290
    %vm3292 = vcmp.eq.f32.partialorder %v3289, %v3291
    %v3293 = vsel %vm3292, %v3288, inf
    %3294 = vmin.xlane.f32.xlu0 %v3293
    %v3295 = vpop.xlane.xlu0 %3294
    %v3296 = vcvt.f32.s32 %v3295
    %v3297 = vcvt.f32.s32 %v3291
    %v3298 = vshll.u32 %v3297, 16
    %v3299 = vadd.s32 %v3298, %v3296
    %v3300 = vand.u32 %v2768, 65535
    %v3301 = vshra.s32 %v2768, 16
    %v3302 = vcvt.s32.f32 %v3300
    %v3303 = vcvt.s32.f32 %v3301
    %3304 = vmin.xlane.f32.xlu0 %v3303
    %v3305 = vpop.xlane.xlu0 %3304
    %vm3306 = vcmp.eq.f32.partialorder %v3303, %v3305
    %v3307 = vsel %vm3306, %v3302, inf
    %3308 = vmin.xlane.f32.xlu0 %v3307
    %v3309 = vpop.xlane.xlu0 %3308
    %v3310 = vcvt.f32.s32 %v3309
    %v3311 = vcvt.f32.s32 %v3305
    %v3312 = vshll.u32 %v3311, 16
    %v3313 = vadd.s32 %v3312, %v3310
    %v3314 = vand.u32 %v2769, 65535
    %v3315 = vshra.s32 %v2769, 16
    %v3316 = vcvt.s32.f32 %v3314
    %v3317 = vcvt.s32.f32 %v3315
    %3318 = vmin.xlane.f32.xlu0 %v3317
    %v3319 = vpop.xlane.xlu0 %3318
    %vm3320 = vcmp.eq.f32.partialorder %v3317, %v3319
    %v3321 = vsel %vm3320, %v3316, inf
    %3322 = vmin.xlane.f32.xlu0 %v3321
    %v3323 = vpop.xlane.xlu0 %3322
    %v3324 = vcvt.f32.s32 %v3323
    %v3325 = vcvt.f32.s32 %v3319
    %v3326 = vshll.u32 %v3325, 16
    %v3327 = vadd.s32 %v3326, %v3324
    %v3328 = vand.u32 %v2770, 65535
    %v3329 = vshra.s32 %v2770, 16
    %v3330 = vcvt.s32.f32 %v3328
    %v3331 = vcvt.s32.f32 %v3329
    %3332 = vmin.xlane.f32.xlu0 %v3331
    %v3333 = vpop.xlane.xlu0 %3332
    %vm3334 = vcmp.eq.f32.partialorder %v3331, %v3333
    %v3335 = vsel %vm3334, %v3330, inf
    %3336 = vmin.xlane.f32.xlu0 %v3335
    %v3337 = vpop.xlane.xlu0 %3336
    %v3338 = vcvt.f32.s32 %v3337
    %v3339 = vcvt.f32.s32 %v3333
    %v3340 = vshll.u32 %v3339, 16
    %v3341 = vadd.s32 %v3340, %v3338
    %v3342 = vand.u32 %v2771, 65535
    %v3343 = vshra.s32 %v2771, 16
    %v3344 = vcvt.s32.f32 %v3342
    %v3345 = vcvt.s32.f32 %v3343
    %3346 = vmin.xlane.f32.xlu0 %v3345
    %v3347 = vpop.xlane.xlu0 %3346
    %vm3348 = vcmp.eq.f32.partialorder %v3345, %v3347
    %v3349 = vsel %vm3348, %v3344, inf
    %3350 = vmin.xlane.f32.xlu0 %v3349
    %v3351 = vpop.xlane.xlu0 %3350
    %v3352 = vcvt.f32.s32 %v3351
    %v3353 = vcvt.f32.s32 %v3347
    %v3354 = vshll.u32 %v3353, 16
    %v3355 = vadd.s32 %v3354, %v3352
    %v3356 = vand.u32 %v2772, 65535
    %v3357 = vshra.s32 %v2772, 16
    %v3358 = vcvt.s32.f32 %v3356
    %v3359 = vcvt.s32.f32 %v3357
    %3360 = vmin.xlane.f32.xlu0 %v3359
    %v3361 = vpop.xlane.xlu0 %3360
    %vm3362 = vcmp.eq.f32.partialorder %v3359, %v3361
    %v3363 = vsel %vm3362, %v3358, inf
    %3364 = vmin.xlane.f32.xlu0 %v3363
    %v3365 = vpop.xlane.xlu0 %3364
    %v3366 = vcvt.f32.s32 %v3365
    %v3367 = vcvt.f32.s32 %v3361
    %v3368 = vshll.u32 %v3367, 16
    %v3369 = vadd.s32 %v3368, %v3366
    %v3370 = vand.u32 %v2773, 65535
    %v3371 = vshra.s32 %v2773, 16
    %v3372 = vcvt.s32.f32 %v3370
    %v3373 = vcvt.s32.f32 %v3371
    %3374 = vmin.xlane.f32.xlu0 %v3373
    %v3375 = vpop.xlane.xlu0 %3374
    %vm3376 = vcmp.eq.f32.partialorder %v3373, %v3375
    %v3377 = vsel %vm3376, %v3372, inf
    %3378 = vmin.xlane.f32.xlu0 %v3377
    %v3379 = vpop.xlane.xlu0 %3378
    %v3380 = vcvt.f32.s32 %v3379
    %v3381 = vcvt.f32.s32 %v3375
    %v3382 = vshll.u32 %v3381, 16
    %v3383 = vadd.s32 %v3382, %v3380
    %v3384 = vand.u32 %v2774, 65535
    %v3385 = vshra.s32 %v2774, 16
    %v3386 = vcvt.s32.f32 %v3384
    %v3387 = vcvt.s32.f32 %v3385
    %3388 = vmin.xlane.f32.xlu0 %v3387
    %v3389 = vpop.xlane.xlu0 %3388
    %vm3390 = vcmp.eq.f32.partialorder %v3387, %v3389
    %v3391 = vsel %vm3390, %v3386, inf
    %3392 = vmin.xlane.f32.xlu0 %v3391
    %v3393 = vpop.xlane.xlu0 %3392
    %v3394 = vcvt.f32.s32 %v3393
    %v3395 = vcvt.f32.s32 %v3389
    %v3396 = vshll.u32 %v3395, 16
    %v3397 = vadd.s32 %v3396, %v3394
    %v3398 = vand.u32 %v2775, 65535
    %v3399 = vshra.s32 %v2775, 16
    %v3400 = vcvt.s32.f32 %v3398
    %v3401 = vcvt.s32.f32 %v3399
    %3402 = vmin.xlane.f32.xlu0 %v3401
    %v3403 = vpop.xlane.xlu0 %3402
    %vm3404 = vcmp.eq.f32.partialorder %v3401, %v3403
    %v3405 = vsel %vm3404, %v3400, inf
    %3406 = vmin.xlane.f32.xlu0 %v3405
    %v3407 = vpop.xlane.xlu0 %3406
    %v3408 = vcvt.f32.s32 %v3407
    %v3409 = vcvt.f32.s32 %v3403
    %v3410 = vshll.u32 %v3409, 16
    %v3411 = vadd.s32 %v3410, %v3408
    %v3412 = vand.u32 %v2776, 65535
    %v3413 = vshra.s32 %v2776, 16
    %v3414 = vcvt.s32.f32 %v3412
    %v3415 = vcvt.s32.f32 %v3413
    %3416 = vmin.xlane.f32.xlu0 %v3415
    %v3417 = vpop.xlane.xlu0 %3416
    %vm3418 = vcmp.eq.f32.partialorder %v3415, %v3417
    %v3419 = vsel %vm3418, %v3414, inf
    %3420 = vmin.xlane.f32.xlu0 %v3419
    %v3421 = vpop.xlane.xlu0 %3420
    %v3422 = vcvt.f32.s32 %v3421
    %v3423 = vcvt.f32.s32 %v3417
    %v3424 = vshll.u32 %v3423, 16
    %v3425 = vadd.s32 %v3424, %v3422
    %v3426 = vand.u32 %v2777, 65535
    %v3427 = vshra.s32 %v2777, 16
    %v3428 = vcvt.s32.f32 %v3426
    %v3429 = vcvt.s32.f32 %v3427
    %3430 = vmin.xlane.f32.xlu0 %v3429
    %v3431 = vpop.xlane.xlu0 %3430
    %vm3432 = vcmp.eq.f32.partialorder %v3429, %v3431
    %v3433 = vsel %vm3432, %v3428, inf
    %3434 = vmin.xlane.f32.xlu0 %v3433
    %v3435 = vpop.xlane.xlu0 %3434
    %v3436 = vcvt.f32.s32 %v3435
    %v3437 = vcvt.f32.s32 %v3431
    %v3438 = vshll.u32 %v3437, 16
    %v3439 = vadd.s32 %v3438, %v3436
    %v3440 = vand.u32 %v2778, 65535
    %v3441 = vshra.s32 %v2778, 16
    %v3442 = vcvt.s32.f32 %v3440
    %v3443 = vcvt.s32.f32 %v3441
    %3444 = vmin.xlane.f32.xlu0 %v3443
    %v3445 = vpop.xlane.xlu0 %3444
    %vm3446 = vcmp.eq.f32.partialorder %v3443, %v3445
    %v3447 = vsel %vm3446, %v3442, inf
    %3448 = vmin.xlane.f32.xlu0 %v3447
    %v3449 = vpop.xlane.xlu0 %3448
    %v3450 = vcvt.f32.s32 %v3449
    %v3451 = vcvt.f32.s32 %v3445
    %v3452 = vshll.u32 %v3451, 16
    %v3453 = vadd.s32 %v3452, %v3450
    %v3454 = vand.u32 %v2779, 65535
    %v3455 = vshra.s32 %v2779, 16
    %v3456 = vcvt.s32.f32 %v3454
    %v3457 = vcvt.s32.f32 %v3455
    %3458 = vmin.xlane.f32.xlu0 %v3457
    %v3459 = vpop.xlane.xlu0 %3458
    %vm3460 = vcmp.eq.f32.partialorder %v3457, %v3459
    %v3461 = vsel %vm3460, %v3456, inf
    %3462 = vmin.xlane.f32.xlu0 %v3461
    %v3463 = vpop.xlane.xlu0 %3462
    %v3464 = vcvt.f32.s32 %v3463
    %v3465 = vcvt.f32.s32 %v3459
    %v3466 = vshll.u32 %v3465, 16
    %v3467 = vadd.s32 %v3466, %v3464
    %v3468 = vand.u32 %v2780, 65535
    %v3469 = vshra.s32 %v2780, 16
    %v3470 = vcvt.s32.f32 %v3468
    %v3471 = vcvt.s32.f32 %v3469
    %3472 = vmin.xlane.f32.xlu0 %v3471
    %v3473 = vpop.xlane.xlu0 %3472
    %vm3474 = vcmp.eq.f32.partialorder %v3471, %v3473
    %v3475 = vsel %vm3474, %v3470, inf
    %3476 = vmin.xlane.f32.xlu0 %v3475
    %v3477 = vpop.xlane.xlu0 %3476
    %v3478 = vcvt.f32.s32 %v3477
    %v3479 = vcvt.f32.s32 %v3473
    %v3480 = vshll.u32 %v3479, 16
    %v3481 = vadd.s32 %v3480, %v3478
    %v3482 = vand.u32 %v2781, 65535
    %v3483 = vshra.s32 %v2781, 16
    %v3484 = vcvt.s32.f32 %v3482
    %v3485 = vcvt.s32.f32 %v3483
    %3486 = vmin.xlane.f32.xlu0 %v3485
    %v3487 = vpop.xlane.xlu0 %3486
    %vm3488 = vcmp.eq.f32.partialorder %v3485, %v3487
    %v3489 = vsel %vm3488, %v3484, inf
    %3490 = vmin.xlane.f32.xlu0 %v3489
    %v3491 = vpop.xlane.xlu0 %3490
    %v3492 = vcvt.f32.s32 %v3491
    %v3493 = vcvt.f32.s32 %v3487
    %v3494 = vshll.u32 %v3493, 16
    %v3495 = vadd.s32 %v3494, %v3492
    %v3496 = vand.u32 %v2782, 65535
    %v3497 = vshra.s32 %v2782, 16
    %v3498 = vcvt.s32.f32 %v3496
    %v3499 = vcvt.s32.f32 %v3497
    %3500 = vmin.xlane.f32.xlu0 %v3499
    %v3501 = vpop.xlane.xlu0 %3500
    %vm3502 = vcmp.eq.f32.partialorder %v3499, %v3501
    %v3503 = vsel %vm3502, %v3498, inf
    %3504 = vmin.xlane.f32.xlu0 %v3503
    %v3505 = vpop.xlane.xlu0 %3504
    %v3506 = vcvt.f32.s32 %v3505
    %v3507 = vcvt.f32.s32 %v3501
    %v3508 = vshll.u32 %v3507, 16
    %v3509 = vadd.s32 %v3508, %v3506
    %v3510 = vand.u32 %v2783, 65535
    %v3511 = vshra.s32 %v2783, 16
    %v3512 = vcvt.s32.f32 %v3510
    %v3513 = vcvt.s32.f32 %v3511
    %3514 = vmin.xlane.f32.xlu0 %v3513
    %v3515 = vpop.xlane.xlu0 %3514
    %vm3516 = vcmp.eq.f32.partialorder %v3513, %v3515
    %v3517 = vsel %vm3516, %v3512, inf
    %3518 = vmin.xlane.f32.xlu0 %v3517
    %v3519 = vpop.xlane.xlu0 %3518
    %v3520 = vcvt.f32.s32 %v3519
    %v3521 = vcvt.f32.s32 %v3515
    %v3522 = vshll.u32 %v3521, 16
    %v3523 = vadd.s32 %v3522, %v3520
    %v3524 = vand.u32 %v2784, 65535
    %v3525 = vshra.s32 %v2784, 16
    %v3526 = vcvt.s32.f32 %v3524
    %v3527 = vcvt.s32.f32 %v3525
    %3528 = vmin.xlane.f32.xlu0 %v3527
    %v3529 = vpop.xlane.xlu0 %3528
    %vm3530 = vcmp.eq.f32.partialorder %v3527, %v3529
    %v3531 = vsel %vm3530, %v3526, inf
    %3532 = vmin.xlane.f32.xlu0 %v3531
    %v3533 = vpop.xlane.xlu0 %3532
    %v3534 = vcvt.f32.s32 %v3533
    %v3535 = vcvt.f32.s32 %v3529
    %v3536 = vshll.u32 %v3535, 16
    %v3537 = vadd.s32 %v3536, %v3534
    %v3538 = vand.u32 %v2785, 65535
    %v3539 = vshra.s32 %v2785, 16
    %v3540 = vcvt.s32.f32 %v3538
    %v3541 = vcvt.s32.f32 %v3539
    %3542 = vmin.xlane.f32.xlu0 %v3541
    %v3543 = vpop.xlane.xlu0 %3542
    %vm3544 = vcmp.eq.f32.partialorder %v3541, %v3543
    %v3545 = vsel %vm3544, %v3540, inf
    %3546 = vmin.xlane.f32.xlu0 %v3545
    %v3547 = vpop.xlane.xlu0 %3546
    %v3548 = vcvt.f32.s32 %v3547
    %v3549 = vcvt.f32.s32 %v3543
    %v3550 = vshll.u32 %v3549, 16
    %v3551 = vadd.s32 %v3550, %v3548
    %v3552 = vand.u32 %v2786, 65535
    %v3553 = vshra.s32 %v2786, 16
    %v3554 = vcvt.s32.f32 %v3552
    %v3555 = vcvt.s32.f32 %v3553
    %3556 = vmin.xlane.f32.xlu0 %v3555
    %v3557 = vpop.xlane.xlu0 %3556
    %vm3558 = vcmp.eq.f32.partialorder %v3555, %v3557
    %v3559 = vsel %vm3558, %v3554, inf
    %3560 = vmin.xlane.f32.xlu0 %v3559
    %v3561 = vpop.xlane.xlu0 %3560
    %v3562 = vcvt.f32.s32 %v3561
    %v3563 = vcvt.f32.s32 %v3557
    %v3564 = vshll.u32 %v3563, 16
    %v3565 = vadd.s32 %v3564, %v3562
    %v3566 = vand.u32 %v2787, 65535
    %v3567 = vshra.s32 %v2787, 16
    %v3568 = vcvt.s32.f32 %v3566
    %v3569 = vcvt.s32.f32 %v3567
    %3570 = vmin.xlane.f32.xlu0 %v3569
    %v3571 = vpop.xlane.xlu0 %3570
    %vm3572 = vcmp.eq.f32.partialorder %v3569, %v3571
    %v3573 = vsel %vm3572, %v3568, inf
    %3574 = vmin.xlane.f32.xlu0 %v3573
    %v3575 = vpop.xlane.xlu0 %3574
    %v3576 = vcvt.f32.s32 %v3575
    %v3577 = vcvt.f32.s32 %v3571
    %v3578 = vshll.u32 %v3577, 16
    %v3579 = vadd.s32 %v3578, %v3576
    %v3580 = vand.u32 %v2788, 65535
    %v3581 = vshra.s32 %v2788, 16
    %v3582 = vcvt.s32.f32 %v3580
    %v3583 = vcvt.s32.f32 %v3581
    %3584 = vmin.xlane.f32.xlu0 %v3583
    %v3585 = vpop.xlane.xlu0 %3584
    %vm3586 = vcmp.eq.f32.partialorder %v3583, %v3585
    %v3587 = vsel %vm3586, %v3582, inf
    %3588 = vmin.xlane.f32.xlu0 %v3587
    %v3589 = vpop.xlane.xlu0 %3588
    %v3590 = vcvt.f32.s32 %v3589
    %v3591 = vcvt.f32.s32 %v3585
    %v3592 = vshll.u32 %v3591, 16
    %v3593 = vadd.s32 %v3592, %v3590
    %v3594 = vand.u32 %v2789, 65535
    %v3595 = vshra.s32 %v2789, 16
    %v3596 = vcvt.s32.f32 %v3594
    %v3597 = vcvt.s32.f32 %v3595
    %3598 = vmin.xlane.f32.xlu0 %v3597
    %v3599 = vpop.xlane.xlu0 %3598
    %vm3600 = vcmp.eq.f32.partialorder %v3597, %v3599
    %v3601 = vsel %vm3600, %v3596, inf
    %3602 = vmin.xlane.f32.xlu0 %v3601
    %v3603 = vpop.xlane.xlu0 %3602
    %v3604 = vcvt.f32.s32 %v3603
    %v3605 = vcvt.f32.s32 %v3599
    %v3606 = vshll.u32 %v3605, 16
    %v3607 = vadd.s32 %v3606, %v3604
    %v3608 = vand.u32 %v2790, 65535
    %v3609 = vshra.s32 %v2790, 16
    %v3610 = vcvt.s32.f32 %v3608
    %v3611 = vcvt.s32.f32 %v3609
    %3612 = vmin.xlane.f32.xlu0 %v3611
    %v3613 = vpop.xlane.xlu0 %3612
    %vm3614 = vcmp.eq.f32.partialorder %v3611, %v3613
    %v3615 = vsel %vm3614, %v3610, inf
    %3616 = vmin.xlane.f32.xlu0 %v3615
    %v3617 = vpop.xlane.xlu0 %3616
    %v3618 = vcvt.f32.s32 %v3617
    %v3619 = vcvt.f32.s32 %v3613
    %v3620 = vshll.u32 %v3619, 16
    %v3621 = vadd.s32 %v3620, %v3618
    %v3622 = vand.u32 %v2791, 65535
    %v3623 = vshra.s32 %v2791, 16
    %v3624 = vcvt.s32.f32 %v3622
    %v3625 = vcvt.s32.f32 %v3623
    %3626 = vmin.xlane.f32.xlu0 %v3625
    %v3627 = vpop.xlane.xlu0 %3626
    %vm3628 = vcmp.eq.f32.partialorder %v3625, %v3627
    %v3629 = vsel %vm3628, %v3624, inf
    %3630 = vmin.xlane.f32.xlu0 %v3629
    %v3631 = vpop.xlane.xlu0 %3630
    %v3632 = vcvt.f32.s32 %v3631
    %v3633 = vcvt.f32.s32 %v3627
    %v3634 = vshll.u32 %v3633, 16
    %v3635 = vadd.s32 %v3634, %v3632
    %v3636 = vand.u32 %v2792, 65535
    %v3637 = vshra.s32 %v2792, 16
    %v3638 = vcvt.s32.f32 %v3636
    %v3639 = vcvt.s32.f32 %v3637
    %3640 = vmin.xlane.f32.xlu0 %v3639
    %v3641 = vpop.xlane.xlu0 %3640
    %vm3642 = vcmp.eq.f32.partialorder %v3639, %v3641
    %v3643 = vsel %vm3642, %v3638, inf
    %3644 = vmin.xlane.f32.xlu0 %v3643
    %v3645 = vpop.xlane.xlu0 %3644
    %v3646 = vcvt.f32.s32 %v3645
    %v3647 = vcvt.f32.s32 %v3641
    %v3648 = vshll.u32 %v3647, 16
    %v3649 = vadd.s32 %v3648, %v3646
    %v3650 = vand.u32 %v2793, 65535
    %v3651 = vshra.s32 %v2793, 16
    %v3652 = vcvt.s32.f32 %v3650
    %v3653 = vcvt.s32.f32 %v3651
    %3654 = vmin.xlane.f32.xlu0 %v3653
    %v3655 = vpop.xlane.xlu0 %3654
    %vm3656 = vcmp.eq.f32.partialorder %v3653, %v3655
    %v3657 = vsel %vm3656, %v3652, inf
    %3658 = vmin.xlane.f32.xlu0 %v3657
    %v3659 = vpop.xlane.xlu0 %3658
    %v3660 = vcvt.f32.s32 %v3659
    %v3661 = vcvt.f32.s32 %v3655
    %v3662 = vshll.u32 %v3661, 16
    %v3663 = vadd.s32 %v3662, %v3660
    %v3664 = vand.u32 %v2794, 65535
    %v3665 = vshra.s32 %v2794, 16
    %v3666 = vcvt.s32.f32 %v3664
    %v3667 = vcvt.s32.f32 %v3665
    %3668 = vmin.xlane.f32.xlu0 %v3667
    %v3669 = vpop.xlane.xlu0 %3668
    %vm3670 = vcmp.eq.f32.partialorder %v3667, %v3669
    %v3671 = vsel %vm3670, %v3666, inf
    %3672 = vmin.xlane.f32.xlu0 %v3671
    %v3673 = vpop.xlane.xlu0 %3672
    %v3674 = vcvt.f32.s32 %v3673
    %v3675 = vcvt.f32.s32 %v3669
    %v3676 = vshll.u32 %v3675, 16
    %v3677 = vadd.s32 %v3676, %v3674
    %v3678 = vand.u32 %v2795, 65535
    %v3679 = vshra.s32 %v2795, 16
    %v3680 = vcvt.s32.f32 %v3678
    %v3681 = vcvt.s32.f32 %v3679
    %3682 = vmin.xlane.f32.xlu0 %v3681
    %v3683 = vpop.xlane.xlu0 %3682
    %vm3684 = vcmp.eq.f32.partialorder %v3681, %v3683
    %v3685 = vsel %vm3684, %v3680, inf
    %3686 = vmin.xlane.f32.xlu0 %v3685
    %v3687 = vpop.xlane.xlu0 %3686
    %v3688 = vcvt.f32.s32 %v3687
    %v3689 = vcvt.f32.s32 %v3683
    %v3690 = vshll.u32 %v3689, 16
    %v3691 = vadd.s32 %v3690, %v3688
    %v3692 = vsub.s32 %v2809, 5
    %v3693 = vsub.s32 %v2823, 5
    %v3694 = vsub.s32 %v2837, 5
    %v3695 = vsub.s32 %v2851, 5
    %v3696 = vsub.s32 %v2865, 5
    %v3697 = vsub.s32 %v2879, 5
    %v3698 = vsub.s32 %v2893, 5
    %v3699 = vsub.s32 %v2907, 5
    %v3700 = vsub.s32 %v2921, 5
    %v3701 = vsub.s32 %v2935, 5
    %v3702 = vsub.s32 %v2949, 5
    %v3703 = vsub.s32 %v2963, 5
    %v3704 = vsub.s32 %v2977, 5
    %v3705 = vsub.s32 %v2991, 5
    %v3706 = vsub.s32 %v3005, 5
    %v3707 = vsub.s32 %v3019, 5
    %v3708 = vsub.s32 %v3033, 5
    %v3709 = vsub.s32 %v3047, 5
    %v3710 = vsub.s32 %v3061, 5
    %v3711 = vsub.s32 %v3075, 5
    %v3712 = vsub.s32 %v3089, 5
    %v3713 = vsub.s32 %v3103, 5
    %v3714 = vsub.s32 %v3117, 5
    %v3715 = vsub.s32 %v3131, 5
    %v3716 = vsub.s32 %v3145, 5
    %v3717 = vsub.s32 %v3159, 5
    %v3718 = vsub.s32 %v3173, 5
    %v3719 = vsub.s32 %v3187, 5
    %v3720 = vsub.s32 %v3201, 5
    %v3721 = vsub.s32 %v3215, 5
    %v3722 = vsub.s32 %v3229, 5
    %v3723 = vsub.s32 %v3243, 5
    %v3724 = vsub.s32 %v3257, 5
    %v3725 = vsub.s32 %v3271, 5
    %v3726 = vsub.s32 %v3285, 5
    %v3727 = vsub.s32 %v3299, 5
    %v3728 = vsub.s32 %v3313, 5
    %v3729 = vsub.s32 %v3327, 5
    %v3730 = vsub.s32 %v3341, 5
    %v3731 = vsub.s32 %v3355, 5
    %v3732 = vsub.s32 %v3369, 5
    %v3733 = vsub.s32 %v3383, 5
    %v3734 = vsub.s32 %v3397, 5
    %v3735 = vsub.s32 %v3411, 5
    %v3736 = vsub.s32 %v3425, 5
    %v3737 = vsub.s32 %v3439, 5
    %v3738 = vsub.s32 %v3453, 5
    %v3739 = vsub.s32 %v3467, 5
    %v3740 = vsub.s32 %v3481, 5
    %v3741 = vsub.s32 %v3495, 5
    %v3742 = vsub.s32 %v3509, 5
    %v3743 = vsub.s32 %v3523, 5
    %v3744 = vsub.s32 %v3537, 5
    %v3745 = vsub.s32 %v3551, 5
    %v3746 = vsub.s32 %v3565, 5
    %v3747 = vsub.s32 %v3579, 5
    %v3748 = vsub.s32 %v3593, 5
    %v3749 = vsub.s32 %v3607, 5
    %v3750 = vsub.s32 %v3621, 5
    %v3751 = vsub.s32 %v3635, 5
    %v3752 = vsub.s32 %v3649, 5
    %v3753 = vsub.s32 %v3663, 5
    %v3754 = vsub.s32 %v3677, 5
    %v3755 = vsub.s32 %v3691, 5
    %v3756 = vcvt.s32.f32 %v3692
    %v3757 = vcvt.s32.f32 %v3693
    %v3758 = vcvt.s32.f32 %v3694
    %v3759 = vcvt.s32.f32 %v3695
    %v3760 = vcvt.s32.f32 %v3696
    %v3761 = vcvt.s32.f32 %v3697
    %v3762 = vcvt.s32.f32 %v3698
    %v3763 = vcvt.s32.f32 %v3699
    %v3764 = vcvt.s32.f32 %v3700
    %v3765 = vcvt.s32.f32 %v3701
    %v3766 = vcvt.s32.f32 %v3702
    %v3767 = vcvt.s32.f32 %v3703
    %v3768 = vcvt.s32.f32 %v3704
    %v3769 = vcvt.s32.f32 %v3705
    %v3770 = vcvt.s32.f32 %v3706
    %v3771 = vcvt.s32.f32 %v3707
    %v3772 = vcvt.s32.f32 %v3708
    %v3773 = vcvt.s32.f32 %v3709
    %v3774 = vcvt.s32.f32 %v3710
    %v3775 = vcvt.s32.f32 %v3711
    %v3776 = vcvt.s32.f32 %v3712
    %v3777 = vcvt.s32.f32 %v3713
    %v3778 = vcvt.s32.f32 %v3714
    %v3779 = vcvt.s32.f32 %v3715
    %v3780 = vcvt.s32.f32 %v3716
    %v3781 = vcvt.s32.f32 %v3717
    %v3782 = vcvt.s32.f32 %v3718
    %v3783 = vcvt.s32.f32 %v3719
    %v3784 = vcvt.s32.f32 %v3720
    %v3785 = vcvt.s32.f32 %v3721
    %v3786 = vcvt.s32.f32 %v3722
    %v3787 = vcvt.s32.f32 %v3723
    %v3788 = vcvt.s32.f32 %v3724
    %v3789 = vcvt.s32.f32 %v3725
    %v3790 = vcvt.s32.f32 %v3726
    %v3791 = vcvt.s32.f32 %v3727
    %v3792 = vcvt.s32.f32 %v3728
    %v3793 = vcvt.s32.f32 %v3729
    %v3794 = vcvt.s32.f32 %v3730
    %v3795 = vcvt.s32.f32 %v3731
    %v3796 = vcvt.s32.f32 %v3732
    %v3797 = vcvt.s32.f32 %v3733
    %v3798 = vcvt.s32.f32 %v3734
    %v3799 = vcvt.s32.f32 %v3735
    %v3800 = vcvt.s32.f32 %v3736
    %v3801 = vcvt.s32.f32 %v3737
    %v3802 = vcvt.s32.f32 %v3738
    %v3803 = vcvt.s32.f32 %v3739
    %v3804 = vcvt.s32.f32 %v3740
    %v3805 = vcvt.s32.f32 %v3741
    %v3806 = vcvt.s32.f32 %v3742
    %v3807 = vcvt.s32.f32 %v3743
    %v3808 = vcvt.s32.f32 %v3744
    %v3809 = vcvt.s32.f32 %v3745
    %v3810 = vcvt.s32.f32 %v3746
    %v3811 = vcvt.s32.f32 %v3747
    %v3812 = vcvt.s32.f32 %v3748
    %v3813 = vcvt.s32.f32 %v3749
    %v3814 = vcvt.s32.f32 %v3750
    %v3815 = vcvt.s32.f32 %v3751
    %v3816 = vcvt.s32.f32 %v3752
    %v3817 = vcvt.s32.f32 %v3753
    %v3818 = vcvt.s32.f32 %v3754
    %v3819 = vcvt.s32.f32 %v3755
    %v3820 = vmul.f32 %v3756, 640.0
    %v3821 = vmul.f32 %v3757, 640.0
    %v3822 = vmul.f32 %v3758, 640.0
    %v3823 = vmul.f32 %v3759, 640.0
    %v3824 = vmul.f32 %v3760, 640.0
    %v3825 = vmul.f32 %v3761, 640.0
    %v3826 = vmul.f32 %v3762, 640.0
    %v3827 = vmul.f32 %v3763, 640.0
    %v3828 = vmul.f32 %v3764, 640.0
    %v3829 = vmul.f32 %v3765, 640.0
    %v3830 = vmul.f32 %v3766, 640.0
    %v3831 = vmul.f32 %v3767, 640.0
    %v3832 = vmul.f32 %v3768, 640.0
    %v3833 = vmul.f32 %v3769, 640.0
    %v3834 = vmul.f32 %v3770, 640.0
    %v3835 = vmul.f32 %v3771, 640.0
    %v3836 = vmul.f32 %v3772, 640.0
    %v3837 = vmul.f32 %v3773, 640.0
    %v3838 = vmul.f32 %v3774, 640.0
    %v3839 = vmul.f32 %v3775, 640.0
    %v3840 = vmul.f32 %v3776, 640.0
    %v3841 = vmul.f32 %v3777, 640.0
    %v3842 = vmul.f32 %v3778, 640.0
    %v3843 = vmul.f32 %v3779, 640.0
    %v3844 = vmul.f32 %v3780, 640.0
    %v3845 = vmul.f32 %v3781, 640.0
    %v3846 = vmul.f32 %v3782, 640.0
    %v3847 = vmul.f32 %v3783, 640.0
    %v3848 = vmul.f32 %v3784, 640.0
    %v3849 = vmul.f32 %v3785, 640.0
    %v3850 = vmul.f32 %v3786, 640.0
    %v3851 = vmul.f32 %v3787, 640.0
    %v3852 = vmul.f32 %v3788, 640.0
    %v3853 = vmul.f32 %v3789, 640.0
    %v3854 = vmul.f32 %v3790, 640.0
    %v3855 = vmul.f32 %v3791, 640.0
    %v3856 = vmul.f32 %v3792, 640.0
    %v3857 = vmul.f32 %v3793, 640.0
    %v3858 = vmul.f32 %v3794, 640.0
    %v3859 = vmul.f32 %v3795, 640.0
    %v3860 = vmul.f32 %v3796, 640.0
    %v3861 = vmul.f32 %v3797, 640.0
    %v3862 = vmul.f32 %v3798, 640.0
    %v3863 = vmul.f32 %v3799, 640.0
    %v3864 = vmul.f32 %v3800, 640.0
    %v3865 = vmul.f32 %v3801, 640.0
    %v3866 = vmul.f32 %v3802, 640.0
    %v3867 = vmul.f32 %v3803, 640.0
    %v3868 = vmul.f32 %v3804, 640.0
    %v3869 = vmul.f32 %v3805, 640.0
    %v3870 = vmul.f32 %v3806, 640.0
    %v3871 = vmul.f32 %v3807, 640.0
    %v3872 = vmul.f32 %v3808, 640.0
    %v3873 = vmul.f32 %v3809, 640.0
    %v3874 = vmul.f32 %v3810, 640.0
    %v3875 = vmul.f32 %v3811, 640.0
    %v3876 = vmul.f32 %v3812, 640.0
    %v3877 = vmul.f32 %v3813, 640.0
    %v3878 = vmul.f32 %v3814, 640.0
    %v3879 = vmul.f32 %v3815, 640.0
    %v3880 = vmul.f32 %v3816, 640.0
    %v3881 = vmul.f32 %v3817, 640.0
    %v3882 = vmul.f32 %v3818, 640.0
    %v3883 = vmul.f32 %v3819, 640.0
    %v3884 = vmul.f32 %v1960, 0.5
    %v3885 = vmul.f32 %v1962, 0.5
    %v3886 = vmul.f32 %v1964, 0.5
    %v3887 = vmul.f32 %v1966, 0.5
    %v3888 = vmul.f32 %v1968, 0.5
    %v3889 = vmul.f32 %v1970, 0.5
    %v3890 = vmul.f32 %v1972, 0.5
    %v3891 = vmul.f32 %v1974, 0.5
    %v3892 = vmul.f32 %v1976, 0.5
    %v3893 = vmul.f32 %v1978, 0.5
    %v3894 = vmul.f32 %v1980, 0.5
    %v3895 = vmul.f32 %v1982, 0.5
    %v3896 = vmul.f32 %v1984, 0.5
    %v3897 = vmul.f32 %v1986, 0.5
    %v3898 = vmul.f32 %v1988, 0.5
    %v3899 = vmul.f32 %v1990, 0.5
    %v3900 = vmul.f32 %v1992, 0.5
    %v3901 = vmul.f32 %v1994, 0.5
    %v3902 = vmul.f32 %v1996, 0.5
    %v3903 = vmul.f32 %v1998, 0.5
    %v3904 = vmul.f32 %v2000, 0.5
    %v3905 = vmul.f32 %v2002, 0.5
    %v3906 = vmul.f32 %v2004, 0.5
    %v3907 = vmul.f32 %v2006, 0.5
    %v3908 = vmul.f32 %v2008, 0.5
    %v3909 = vmul.f32 %v2010, 0.5
    %v3910 = vmul.f32 %v2012, 0.5
    %v3911 = vmul.f32 %v2014, 0.5
    %v3912 = vmul.f32 %v2016, 0.5
    %v3913 = vmul.f32 %v2018, 0.5
    %v3914 = vmul.f32 %v2020, 0.5
    %v3915 = vmul.f32 %v2022, 0.5
    %v3916 = vmul.f32 %v2024, 0.5
    %v3917 = vmul.f32 %v2026, 0.5
    %v3918 = vmul.f32 %v2028, 0.5
    %v3919 = vmul.f32 %v2030, 0.5
    %v3920 = vmul.f32 %v2032, 0.5
    %v3921 = vmul.f32 %v2034, 0.5
    %v3922 = vmul.f32 %v2036, 0.5
    %v3923 = vmul.f32 %v2038, 0.5
    %v3924 = vmul.f32 %v2040, 0.5
    %v3925 = vmul.f32 %v2042, 0.5
    %v3926 = vmul.f32 %v2044, 0.5
    %v3927 = vmul.f32 %v2046, 0.5
    %v3928 = vmul.f32 %v2048, 0.5
    %v3929 = vmul.f32 %v2050, 0.5
    %v3930 = vmul.f32 %v2052, 0.5
    %v3931 = vmul.f32 %v2054, 0.5
    %v3932 = vmul.f32 %v2056, 0.5
    %v3933 = vmul.f32 %v2058, 0.5
    %v3934 = vmul.f32 %v2060, 0.5
    %v3935 = vmul.f32 %v2062, 0.5
    %v3936 = vmul.f32 %v2064, 0.5
    %v3937 = vmul.f32 %v2066, 0.5
    %v3938 = vmul.f32 %v2068, 0.5
    %v3939 = vmul.f32 %v2070, 0.5
    %v3940 = vmul.f32 %v2072, 0.5
    %v3941 = vmul.f32 %v2074, 0.5
    %v3942 = vmul.f32 %v2076, 0.5
    %v3943 = vmul.f32 %v2078, 0.5
    %v3944 = vmul.f32 %v2080, 0.5
    %v3945 = vmul.f32 %v2082, 0.5
    %v3946 = vmul.f32 %v2084, 0.5
    %v3947 = vmul.f32 %v2086, 0.5
    %4012 = vrot.lane.b32.xlu0 %v3884, 126
    %v4013 = vpop.permute.xlu0 %4012
    %4014 = vrot.lane.b32.xlu0 %v3885, 126
    %v4015 = vpop.permute.xlu0 %4014
    %4016 = vrot.lane.b32.xlu0 %v3886, 126
    %v4017 = vpop.permute.xlu0 %4016
    %4018 = vrot.lane.b32.xlu0 %v3887, 126
    %v4019 = vpop.permute.xlu0 %4018
    %4020 = vrot.lane.b32.xlu0 %v3888, 126
    %v4021 = vpop.permute.xlu0 %4020
    %4022 = vrot.lane.b32.xlu0 %v3889, 126
    %v4023 = vpop.permute.xlu0 %4022
    %4024 = vrot.lane.b32.xlu0 %v3890, 126
    %v4025 = vpop.permute.xlu0 %4024
    %4026 = vrot.lane.b32.xlu0 %v3891, 126
    %v4027 = vpop.permute.xlu0 %4026
    %4028 = vrot.lane.b32.xlu0 %v3892, 126
    %v4029 = vpop.permute.xlu0 %4028
    %4030 = vrot.lane.b32.xlu0 %v3893, 126
    %v4031 = vpop.permute.xlu0 %4030
    %4032 = vrot.lane.b32.xlu0 %v3894, 126
    %v4033 = vpop.permute.xlu0 %4032
    %4034 = vrot.lane.b32.xlu0 %v3895, 126
    %v4035 = vpop.permute.xlu0 %4034
    %4036 = vrot.lane.b32.xlu0 %v3896, 126
    %v4037 = vpop.permute.xlu0 %4036
    %4038 = vrot.lane.b32.xlu0 %v3897, 126
    %v4039 = vpop.permute.xlu0 %4038
    %4040 = vrot.lane.b32.xlu0 %v3898, 126
    %v4041 = vpop.permute.xlu0 %4040
    %4042 = vrot.lane.b32.xlu0 %v3899, 126
    %v4043 = vpop.permute.xlu0 %4042
    %4044 = vrot.lane.b32.xlu0 %v3900, 126
    %v4045 = vpop.permute.xlu0 %4044
    %4046 = vrot.lane.b32.xlu0 %v3901, 126
    %v4047 = vpop.permute.xlu0 %4046
    %4048 = vrot.lane.b32.xlu0 %v3902, 126
    %v4049 = vpop.permute.xlu0 %4048
    %4050 = vrot.lane.b32.xlu0 %v3903, 126
    %v4051 = vpop.permute.xlu0 %4050
    %4052 = vrot.lane.b32.xlu0 %v3904, 126
    %v4053 = vpop.permute.xlu0 %4052
    %4054 = vrot.lane.b32.xlu0 %v3905, 126
    %v4055 = vpop.permute.xlu0 %4054
    %4056 = vrot.lane.b32.xlu0 %v3906, 126
    %v4057 = vpop.permute.xlu0 %4056
    %4058 = vrot.lane.b32.xlu0 %v3907, 126
    %v4059 = vpop.permute.xlu0 %4058
    %4060 = vrot.lane.b32.xlu0 %v3908, 126
    %v4061 = vpop.permute.xlu0 %4060
    %4062 = vrot.lane.b32.xlu0 %v3909, 126
    %v4063 = vpop.permute.xlu0 %4062
    %4064 = vrot.lane.b32.xlu0 %v3910, 126
    %v4065 = vpop.permute.xlu0 %4064
    %4066 = vrot.lane.b32.xlu0 %v3911, 126
    %v4067 = vpop.permute.xlu0 %4066
    %4068 = vrot.lane.b32.xlu0 %v3912, 126
    %v4069 = vpop.permute.xlu0 %4068
    %4070 = vrot.lane.b32.xlu0 %v3913, 126
    %v4071 = vpop.permute.xlu0 %4070
    %4072 = vrot.lane.b32.xlu0 %v3914, 126
    %v4073 = vpop.permute.xlu0 %4072
    %4074 = vrot.lane.b32.xlu0 %v3915, 126
    %v4075 = vpop.permute.xlu0 %4074
    %4076 = vrot.lane.b32.xlu0 %v3916, 126
    %v4077 = vpop.permute.xlu0 %4076
    %4078 = vrot.lane.b32.xlu0 %v3917, 126
    %v4079 = vpop.permute.xlu0 %4078
    %4080 = vrot.lane.b32.xlu0 %v3918, 126
    %v4081 = vpop.permute.xlu0 %4080
    %4082 = vrot.lane.b32.xlu0 %v3919, 126
    %v4083 = vpop.permute.xlu0 %4082
    %4084 = vrot.lane.b32.xlu0 %v3920, 126
    %v4085 = vpop.permute.xlu0 %4084
    %4086 = vrot.lane.b32.xlu0 %v3921, 126
    %v4087 = vpop.permute.xlu0 %4086
    %4088 = vrot.lane.b32.xlu0 %v3922, 126
    %v4089 = vpop.permute.xlu0 %4088
    %4090 = vrot.lane.b32.xlu0 %v3923, 126
    %v4091 = vpop.permute.xlu0 %4090
    %4092 = vrot.lane.b32.xlu0 %v3924, 126
    %v4093 = vpop.permute.xlu0 %4092
    %4094 = vrot.lane.b32.xlu0 %v3925, 126
    %v4095 = vpop.permute.xlu0 %4094
    %4096 = vrot.lane.b32.xlu0 %v3926, 126
    %v4097 = vpop.permute.xlu0 %4096
    %4098 = vrot.lane.b32.xlu0 %v3927, 126
    %v4099 = vpop.permute.xlu0 %4098
    %4100 = vrot.lane.b32.xlu0 %v3928, 126
    %v4101 = vpop.permute.xlu0 %4100
    %4102 = vrot.lane.b32.xlu0 %v3929, 126
    %v4103 = vpop.permute.xlu0 %4102
    %4104 = vrot.lane.b32.xlu0 %v3930, 126
    %v4105 = vpop.permute.xlu0 %4104
    %4106 = vrot.lane.b32.xlu0 %v3931, 126
    %v4107 = vpop.permute.xlu0 %4106
    %4108 = vrot.lane.b32.xlu0 %v3932, 126
    %v4109 = vpop.permute.xlu0 %4108
    %4110 = vrot.lane.b32.xlu0 %v3933, 126
    %v4111 = vpop.permute.xlu0 %4110
    %4112 = vrot.lane.b32.xlu0 %v3934, 126
    %v4113 = vpop.permute.xlu0 %4112
    %4114 = vrot.lane.b32.xlu0 %v3935, 126
    %v4115 = vpop.permute.xlu0 %4114
    %4116 = vrot.lane.b32.xlu0 %v3936, 126
    %v4117 = vpop.permute.xlu0 %4116
    %4118 = vrot.lane.b32.xlu0 %v3937, 126
    %v4119 = vpop.permute.xlu0 %4118
    %4120 = vrot.lane.b32.xlu0 %v3938, 126
    %v4121 = vpop.permute.xlu0 %4120
    %4122 = vrot.lane.b32.xlu0 %v3939, 126
    %v4123 = vpop.permute.xlu0 %4122
    %4124 = vrot.lane.b32.xlu0 %v3940, 126
    %v4125 = vpop.permute.xlu0 %4124
    %4126 = vrot.lane.b32.xlu0 %v3941, 126
    %v4127 = vpop.permute.xlu0 %4126
    %4128 = vrot.lane.b32.xlu0 %v3942, 126
    %v4129 = vpop.permute.xlu0 %4128
    %4130 = vrot.lane.b32.xlu0 %v3943, 126
    %v4131 = vpop.permute.xlu0 %4130
    %4132 = vrot.lane.b32.xlu0 %v3944, 126
    %v4133 = vpop.permute.xlu0 %4132
    %4134 = vrot.lane.b32.xlu0 %v3945, 126
    %v4135 = vpop.permute.xlu0 %4134
    %4136 = vrot.lane.b32.xlu0 %v3946, 126
    %v4137 = vpop.permute.xlu0 %4136
    %4138 = vrot.lane.b32.xlu0 %v3947, 126
    %v4139 = vpop.permute.xlu0 %4138
    %v4204 = vsub.f32 %v1960, %v4013
    %v4205 = vsub.f32 %v1962, %v4015
    %v4206 = vsub.f32 %v1964, %v4017
    %v4207 = vsub.f32 %v1966, %v4019
    %v4208 = vsub.f32 %v1968, %v4021
    %v4209 = vsub.f32 %v1970, %v4023
    %v4210 = vsub.f32 %v1972, %v4025
    %v4211 = vsub.f32 %v1974, %v4027
    %v4212 = vsub.f32 %v1976, %v4029
    %v4213 = vsub.f32 %v1978, %v4031
    %v4214 = vsub.f32 %v1980, %v4033
    %v4215 = vsub.f32 %v1982, %v4035
    %v4216 = vsub.f32 %v1984, %v4037
    %v4217 = vsub.f32 %v1986, %v4039
    %v4218 = vsub.f32 %v1988, %v4041
    %v4219 = vsub.f32 %v1990, %v4043
    %v4220 = vsub.f32 %v1992, %v4045
    %v4221 = vsub.f32 %v1994, %v4047
    %v4222 = vsub.f32 %v1996, %v4049
    %v4223 = vsub.f32 %v1998, %v4051
    %v4224 = vsub.f32 %v2000, %v4053
    %v4225 = vsub.f32 %v2002, %v4055
    %v4226 = vsub.f32 %v2004, %v4057
    %v4227 = vsub.f32 %v2006, %v4059
    %v4228 = vsub.f32 %v2008, %v4061
    %v4229 = vsub.f32 %v2010, %v4063
    %v4230 = vsub.f32 %v2012, %v4065
    %v4231 = vsub.f32 %v2014, %v4067
    %v4232 = vsub.f32 %v2016, %v4069
    %v4233 = vsub.f32 %v2018, %v4071
    %v4234 = vsub.f32 %v2020, %v4073
    %v4235 = vsub.f32 %v2022, %v4075
    %v4236 = vsub.f32 %v2024, %v4077
    %v4237 = vsub.f32 %v2026, %v4079
    %v4238 = vsub.f32 %v2028, %v4081
    %v4239 = vsub.f32 %v2030, %v4083
    %v4240 = vsub.f32 %v2032, %v4085
    %v4241 = vsub.f32 %v2034, %v4087
    %v4242 = vsub.f32 %v2036, %v4089
    %v4243 = vsub.f32 %v2038, %v4091
    %v4244 = vsub.f32 %v2040, %v4093
    %v4245 = vsub.f32 %v2042, %v4095
    %v4246 = vsub.f32 %v2044, %v4097
    %v4247 = vsub.f32 %v2046, %v4099
    %v4248 = vsub.f32 %v2048, %v4101
    %v4249 = vsub.f32 %v2050, %v4103
    %v4250 = vsub.f32 %v2052, %v4105
    %v4251 = vsub.f32 %v2054, %v4107
    %v4252 = vsub.f32 %v2056, %v4109
    %v4253 = vsub.f32 %v2058, %v4111
    %v4254 = vsub.f32 %v2060, %v4113
    %v4255 = vsub.f32 %v2062, %v4115
    %v4256 = vsub.f32 %v2064, %v4117
    %v4257 = vsub.f32 %v2066, %v4119
    %v4258 = vsub.f32 %v2068, %v4121
    %v4259 = vsub.f32 %v2070, %v4123
    %v4260 = vsub.f32 %v2072, %v4125
    %v4261 = vsub.f32 %v2074, %v4127
    %v4262 = vsub.f32 %v2076, %v4129
    %v4263 = vsub.f32 %v2078, %v4131
    %v4264 = vsub.f32 %v2080, %v4133
    %v4265 = vsub.f32 %v2082, %v4135
    %v4266 = vsub.f32 %v2084, %v4137
    %v4267 = vsub.f32 %v2086, %v4139
    %v4268 = vadd.f32 %v1960, %v4013
    %v4269 = vadd.f32 %v1962, %v4015
    %v4270 = vadd.f32 %v1964, %v4017
    %v4271 = vadd.f32 %v1966, %v4019
    %v4272 = vadd.f32 %v1968, %v4021
    %v4273 = vadd.f32 %v1970, %v4023
    %v4274 = vadd.f32 %v1972, %v4025
    %v4275 = vadd.f32 %v1974, %v4027
    %v4276 = vadd.f32 %v1976, %v4029
    %v4277 = vadd.f32 %v1978, %v4031
    %v4278 = vadd.f32 %v1980, %v4033
    %v4279 = vadd.f32 %v1982, %v4035
    %v4280 = vadd.f32 %v1984, %v4037
    %v4281 = vadd.f32 %v1986, %v4039
    %v4282 = vadd.f32 %v1988, %v4041
    %v4283 = vadd.f32 %v1990, %v4043
    %v4284 = vadd.f32 %v1992, %v4045
    %v4285 = vadd.f32 %v1994, %v4047
    %v4286 = vadd.f32 %v1996, %v4049
    %v4287 = vadd.f32 %v1998, %v4051
    %v4288 = vadd.f32 %v2000, %v4053
    %v4289 = vadd.f32 %v2002, %v4055
    %v4290 = vadd.f32 %v2004, %v4057
    %v4291 = vadd.f32 %v2006, %v4059
    %v4292 = vadd.f32 %v2008, %v4061
    %v4293 = vadd.f32 %v2010, %v4063
    %v4294 = vadd.f32 %v2012, %v4065
    %v4295 = vadd.f32 %v2014, %v4067
    %v4296 = vadd.f32 %v2016, %v4069
    %v4297 = vadd.f32 %v2018, %v4071
    %v4298 = vadd.f32 %v2020, %v4073
    %v4299 = vadd.f32 %v2022, %v4075
    %v4300 = vadd.f32 %v2024, %v4077
    %v4301 = vadd.f32 %v2026, %v4079
    %v4302 = vadd.f32 %v2028, %v4081
    %v4303 = vadd.f32 %v2030, %v4083
    %v4304 = vadd.f32 %v2032, %v4085
    %v4305 = vadd.f32 %v2034, %v4087
    %v4306 = vadd.f32 %v2036, %v4089
    %v4307 = vadd.f32 %v2038, %v4091
    %v4308 = vadd.f32 %v2040, %v4093
    %v4309 = vadd.f32 %v2042, %v4095
    %v4310 = vadd.f32 %v2044, %v4097
    %v4311 = vadd.f32 %v2046, %v4099
    %v4312 = vadd.f32 %v2048, %v4101
    %v4313 = vadd.f32 %v2050, %v4103
    %v4314 = vadd.f32 %v2052, %v4105
    %v4315 = vadd.f32 %v2054, %v4107
    %v4316 = vadd.f32 %v2056, %v4109
    %v4317 = vadd.f32 %v2058, %v4111
    %v4318 = vadd.f32 %v2060, %v4113
    %v4319 = vadd.f32 %v2062, %v4115
    %v4320 = vadd.f32 %v2064, %v4117
    %v4321 = vadd.f32 %v2066, %v4119
    %v4322 = vadd.f32 %v2068, %v4121
    %v4323 = vadd.f32 %v2070, %v4123
    %v4324 = vadd.f32 %v2072, %v4125
    %v4325 = vadd.f32 %v2074, %v4127
    %v4326 = vadd.f32 %v2076, %v4129
    %v4327 = vadd.f32 %v2078, %v4131
    %v4328 = vadd.f32 %v2080, %v4133
    %v4329 = vadd.f32 %v2082, %v4135
    %v4330 = vadd.f32 %v2084, %v4137
    %v4331 = vadd.f32 %v2086, %v4139
    %4332 = vst [vmem:[#allocation2] sm:$0xff] 0.0
    %4333 = vst [vmem:[#allocation2 + $0x8] sm:$0xff] 0.0
    %4334 = vst [vmem:[#allocation2 + $0x10] sm:$0xff] 0.0
    %4335 = vst [vmem:[#allocation2 + $0x18] sm:$0xff] 0.0
    %4336 = vst [vmem:[#allocation2 + $0x20] sm:$0xff] 0.0
    %4337 = vst [vmem:[#allocation2 + $0x28] sm:$0xff] 0.0
    %4338 = vst [vmem:[#allocation2 + $0x30] sm:$0xff] 0.0
    %4339 = vst [vmem:[#allocation2 + $0x38] sm:$0xff] 0.0
    %4340 = vst [vmem:[#allocation2 + $0x40] sm:$0xff] 0.0
    %4341 = vst [vmem:[#allocation2 + $0x48] sm:$0xff] 0.0
    %4342 = vst [vmem:[#allocation2 + $0x50] sm:$0xff] 0.0
    %4343 = vst [vmem:[#allocation2 + $0x58] sm:$0xff] 0.0
    %4344 = vst [vmem:[#allocation2 + $0x60] sm:$0xff] 0.0
    %4345 = vst [vmem:[#allocation2 + $0x68] sm:$0xff] 0.0
    %4346 = vst [vmem:[#allocation2 + $0x70] sm:$0xff] 0.0
    %4347 = vst [vmem:[#allocation2 + $0x78] sm:$0xff] 0.0
    %4348 = vst [vmem:[#allocation2 + $0x80] sm:$0xff] 0.0
    %4349 = vst [vmem:[#allocation2 + $0x88] sm:$0xff] 0.0
    %4350 = vst [vmem:[#allocation2 + $0x90] sm:$0xff] 0.0
    %4351 = vst [vmem:[#allocation2 + $0x98] sm:$0xff] 0.0
    %4352 = vst [vmem:[#allocation2 + $0xa0] sm:$0xff] 0.0
    %4353 = vst [vmem:[#allocation2 + $0xa8] sm:$0xff] 0.0
    %4354 = vst [vmem:[#allocation2 + $0xb0] sm:$0xff] 0.0
    %4355 = vst [vmem:[#allocation2 + $0xb8] sm:$0xff] 0.0
    %4356 = vst [vmem:[#allocation2 + $0xc0] sm:$0xff] 0.0
    %4357 = vst [vmem:[#allocation2 + $0xc8] sm:$0xff] 0.0
    %4358 = vst [vmem:[#allocation2 + $0xd0] sm:$0xff] 0.0
    %4359 = vst [vmem:[#allocation2 + $0xd8] sm:$0xff] 0.0
    %4360 = vst [vmem:[#allocation2 + $0xe0] sm:$0xff] 0.0
    %4361 = vst [vmem:[#allocation2 + $0xe8] sm:$0xff] 0.0
    %4362 = vst [vmem:[#allocation2 + $0xf0] sm:$0xff] 0.0
    %4363 = vst [vmem:[#allocation2 + $0xf8] sm:$0xff] 0.0
    %4364 = vst [vmem:[#allocation2 + $0x100] sm:$0xff] 0.0
    %4365 = vst [vmem:[#allocation2 + $0x108] sm:$0xff] 0.0
    %4366 = vst [vmem:[#allocation2 + $0x110] sm:$0xff] 0.0
    %4367 = vst [vmem:[#allocation2 + $0x118] sm:$0xff] 0.0
    %4368 = vst [vmem:[#allocation2 + $0x120] sm:$0xff] 0.0
    %4369 = vst [vmem:[#allocation2 + $0x128] sm:$0xff] 0.0
    %4370 = vst [vmem:[#allocation2 + $0x130] sm:$0xff] 0.0
    %4371 = vst [vmem:[#allocation2 + $0x138] sm:$0xff] 0.0
    %4372 = vst [vmem:[#allocation2 + $0x140] sm:$0xff] 0.0
    %4373 = vst [vmem:[#allocation2 + $0x148] sm:$0xff] 0.0
    %4374 = vst [vmem:[#allocation2 + $0x150] sm:$0xff] 0.0
    %4375 = vst [vmem:[#allocation2 + $0x158] sm:$0xff] 0.0
    %4376 = vst [vmem:[#allocation2 + $0x160] sm:$0xff] 0.0
    %4377 = vst [vmem:[#allocation2 + $0x168] sm:$0xff] 0.0
    %4378 = vst [vmem:[#allocation2 + $0x170] sm:$0xff] 0.0
    %4379 = vst [vmem:[#allocation2 + $0x178] sm:$0xff] 0.0
    %4380 = vst [vmem:[#allocation2 + $0x180] sm:$0xff] 0.0
    %4381 = vst [vmem:[#allocation2 + $0x188] sm:$0xff] 0.0
    %4382 = vst [vmem:[#allocation2 + $0x190] sm:$0xff] 0.0
    %4383 = vst [vmem:[#allocation2 + $0x198] sm:$0xff] 0.0
    %4384 = vst [vmem:[#allocation2 + $0x1a0] sm:$0xff] 0.0
    %4385 = vst [vmem:[#allocation2 + $0x1a8] sm:$0xff] 0.0
    %4386 = vst [vmem:[#allocation2 + $0x1b0] sm:$0xff] 0.0
    %4387 = vst [vmem:[#allocation2 + $0x1b8] sm:$0xff] 0.0
    %4388 = vst [vmem:[#allocation2 + $0x1c0] sm:$0xff] 0.0
    %4389 = vst [vmem:[#allocation2 + $0x1c8] sm:$0xff] 0.0
    %4390 = vst [vmem:[#allocation2 + $0x1d0] sm:$0xff] 0.0
    %4391 = vst [vmem:[#allocation2 + $0x1d8] sm:$0xff] 0.0
    %4392 = vst [vmem:[#allocation2 + $0x1e0] sm:$0xff] 0.0
    %4393 = vst [vmem:[#allocation2 + $0x1e8] sm:$0xff] 0.0
    %4394 = vst [vmem:[#allocation2 + $0x1f0] sm:$0xff] 0.0
    %4395 = vst [vmem:[#allocation2 + $0x1f8] sm:$0xff] 0.0
    %vm4396 = vcmask 7168
    %4397 = vst.msk [vmem:[#allocation2] sm:$0xff] %vm4396, %v4204
    %4398 = vst.msk [vmem:[#allocation2 + $0x8] sm:$0xff] %vm4396, %v4205
    %4399 = vst.msk [vmem:[#allocation2 + $0x10] sm:$0xff] %vm4396, %v4206
    %4400 = vst.msk [vmem:[#allocation2 + $0x18] sm:$0xff] %vm4396, %v4207
    %4401 = vst.msk [vmem:[#allocation2 + $0x20] sm:$0xff] %vm4396, %v4208
    %4402 = vst.msk [vmem:[#allocation2 + $0x28] sm:$0xff] %vm4396, %v4209
    %4403 = vst.msk [vmem:[#allocation2 + $0x30] sm:$0xff] %vm4396, %v4210
    %4404 = vst.msk [vmem:[#allocation2 + $0x38] sm:$0xff] %vm4396, %v4211
    %4405 = vst.msk [vmem:[#allocation2 + $0x40] sm:$0xff] %vm4396, %v4212
    %4406 = vst.msk [vmem:[#allocation2 + $0x48] sm:$0xff] %vm4396, %v4213
    %4407 = vst.msk [vmem:[#allocation2 + $0x50] sm:$0xff] %vm4396, %v4214
    %4408 = vst.msk [vmem:[#allocation2 + $0x58] sm:$0xff] %vm4396, %v4215
    %4409 = vst.msk [vmem:[#allocation2 + $0x60] sm:$0xff] %vm4396, %v4216
    %4410 = vst.msk [vmem:[#allocation2 + $0x68] sm:$0xff] %vm4396, %v4217
    %4411 = vst.msk [vmem:[#allocation2 + $0x70] sm:$0xff] %vm4396, %v4218
    %4412 = vst.msk [vmem:[#allocation2 + $0x78] sm:$0xff] %vm4396, %v4219
    %4413 = vst.msk [vmem:[#allocation2 + $0x80] sm:$0xff] %vm4396, %v4220
    %4414 = vst.msk [vmem:[#allocation2 + $0x88] sm:$0xff] %vm4396, %v4221
    %4415 = vst.msk [vmem:[#allocation2 + $0x90] sm:$0xff] %vm4396, %v4222
    %4416 = vst.msk [vmem:[#allocation2 + $0x98] sm:$0xff] %vm4396, %v4223
    %4417 = vst.msk [vmem:[#allocation2 + $0xa0] sm:$0xff] %vm4396, %v4224
    %4418 = vst.msk [vmem:[#allocation2 + $0xa8] sm:$0xff] %vm4396, %v4225
    %4419 = vst.msk [vmem:[#allocation2 + $0xb0] sm:$0xff] %vm4396, %v4226
    %4420 = vst.msk [vmem:[#allocation2 + $0xb8] sm:$0xff] %vm4396, %v4227
    %4421 = vst.msk [vmem:[#allocation2 + $0xc0] sm:$0xff] %vm4396, %v4228
    %4422 = vst.msk [vmem:[#allocation2 + $0xc8] sm:$0xff] %vm4396, %v4229
    %4423 = vst.msk [vmem:[#allocation2 + $0xd0] sm:$0xff] %vm4396, %v4230
    %4424 = vst.msk [vmem:[#allocation2 + $0xd8] sm:$0xff] %vm4396, %v4231
    %4425 = vst.msk [vmem:[#allocation2 + $0xe0] sm:$0xff] %vm4396, %v4232
    %4426 = vst.msk [vmem:[#allocation2 + $0xe8] sm:$0xff] %vm4396, %v4233
    %4427 = vst.msk [vmem:[#allocation2 + $0xf0] sm:$0xff] %vm4396, %v4234
    %4428 = vst.msk [vmem:[#allocation2 + $0xf8] sm:$0xff] %vm4396, %v4235
    %4429 = vst.msk [vmem:[#allocation2 + $0x100] sm:$0xff] %vm4396, %v4236
    %4430 = vst.msk [vmem:[#allocation2 + $0x108] sm:$0xff] %vm4396, %v4237
    %4431 = vst.msk [vmem:[#allocation2 + $0x110] sm:$0xff] %vm4396, %v4238
    %4432 = vst.msk [vmem:[#allocation2 + $0x118] sm:$0xff] %vm4396, %v4239
    %4433 = vst.msk [vmem:[#allocation2 + $0x120] sm:$0xff] %vm4396, %v4240
    %4434 = vst.msk [vmem:[#allocation2 + $0x128] sm:$0xff] %vm4396, %v4241
    %4435 = vst.msk [vmem:[#allocation2 + $0x130] sm:$0xff] %vm4396, %v4242
    %4436 = vst.msk [vmem:[#allocation2 + $0x138] sm:$0xff] %vm4396, %v4243
    %4437 = vst.msk [vmem:[#allocation2 + $0x140] sm:$0xff] %vm4396, %v4244
    %4438 = vst.msk [vmem:[#allocation2 + $0x148] sm:$0xff] %vm4396, %v4245
    %4439 = vst.msk [vmem:[#allocation2 + $0x150] sm:$0xff] %vm4396, %v4246
    %4440 = vst.msk [vmem:[#allocation2 + $0x158] sm:$0xff] %vm4396, %v4247
    %4441 = vst.msk [vmem:[#allocation2 + $0x160] sm:$0xff] %vm4396, %v4248
    %4442 = vst.msk [vmem:[#allocation2 + $0x168] sm:$0xff] %vm4396, %v4249
    %4443 = vst.msk [vmem:[#allocation2 + $0x170] sm:$0xff] %vm4396, %v4250
    %4444 = vst.msk [vmem:[#allocation2 + $0x178] sm:$0xff] %vm4396, %v4251
    %4445 = vst.msk [vmem:[#allocation2 + $0x180] sm:$0xff] %vm4396, %v4252
    %4446 = vst.msk [vmem:[#allocation2 + $0x188] sm:$0xff] %vm4396, %v4253
    %4447 = vst.msk [vmem:[#allocation2 + $0x190] sm:$0xff] %vm4396, %v4254
    %4448 = vst.msk [vmem:[#allocation2 + $0x198] sm:$0xff] %vm4396, %v4255
    %4449 = vst.msk [vmem:[#allocation2 + $0x1a0] sm:$0xff] %vm4396, %v4256
    %4450 = vst.msk [vmem:[#allocation2 + $0x1a8] sm:$0xff] %vm4396, %v4257
    %4451 = vst.msk [vmem:[#allocation2 + $0x1b0] sm:$0xff] %vm4396, %v4258
    %4452 = vst.msk [vmem:[#allocation2 + $0x1b8] sm:$0xff] %vm4396, %v4259
    %4453 = vst.msk [vmem:[#allocation2 + $0x1c0] sm:$0xff] %vm4396, %v4260
    %4454 = vst.msk [vmem:[#allocation2 + $0x1c8] sm:$0xff] %vm4396, %v4261
    %4455 = vst.msk [vmem:[#allocation2 + $0x1d0] sm:$0xff] %vm4396, %v4262
    %4456 = vst.msk [vmem:[#allocation2 + $0x1d8] sm:$0xff] %vm4396, %v4263
    %4457 = vst.msk [vmem:[#allocation2 + $0x1e0] sm:$0xff] %vm4396, %v4264
    %4458 = vst.msk [vmem:[#allocation2 + $0x1e8] sm:$0xff] %vm4396, %v4265
    %4459 = vst.msk [vmem:[#allocation2 + $0x1f0] sm:$0xff] %vm4396, %v4266
    %4460 = vst.msk [vmem:[#allocation2 + $0x1f8] sm:$0xff] %vm4396, %v4267
    %vm4461 = vcmask 15368
    %4462 = vst.msk [vmem:[#allocation2] sm:$0xff] %vm4461, %v4204
    %4463 = vst.msk [vmem:[#allocation2 + $0x8] sm:$0xff] %vm4461, %v4205
    %4464 = vst.msk [vmem:[#allocation2 + $0x10] sm:$0xff] %vm4461, %v4206
    %4465 = vst.msk [vmem:[#allocation2 + $0x18] sm:$0xff] %vm4461, %v4207
    %4466 = vst.msk [vmem:[#allocation2 + $0x20] sm:$0xff] %vm4461, %v4208
    %4467 = vst.msk [vmem:[#allocation2 + $0x28] sm:$0xff] %vm4461, %v4209
    %4468 = vst.msk [vmem:[#allocation2 + $0x30] sm:$0xff] %vm4461, %v4210
    %4469 = vst.msk [vmem:[#allocation2 + $0x38] sm:$0xff] %vm4461, %v4211
    %4470 = vst.msk [vmem:[#allocation2 + $0x40] sm:$0xff] %vm4461, %v4212
    %4471 = vst.msk [vmem:[#allocation2 + $0x48] sm:$0xff] %vm4461, %v4213
    %4472 = vst.msk [vmem:[#allocation2 + $0x50] sm:$0xff] %vm4461, %v4214
    %4473 = vst.msk [vmem:[#allocation2 + $0x58] sm:$0xff] %vm4461, %v4215
    %4474 = vst.msk [vmem:[#allocation2 + $0x60] sm:$0xff] %vm4461, %v4216
    %4475 = vst.msk [vmem:[#allocation2 + $0x68] sm:$0xff] %vm4461, %v4217
    %4476 = vst.msk [vmem:[#allocation2 + $0x70] sm:$0xff] %vm4461, %v4218
    %4477 = vst.msk [vmem:[#allocation2 + $0x78] sm:$0xff] %vm4461, %v4219
    %4478 = vst.msk [vmem:[#allocation2 + $0x80] sm:$0xff] %vm4461, %v4220
    %4479 = vst.msk [vmem:[#allocation2 + $0x88] sm:$0xff] %vm4461, %v4221
    %4480 = vst.msk [vmem:[#allocation2 + $0x90] sm:$0xff] %vm4461, %v4222
    %4481 = vst.msk [vmem:[#allocation2 + $0x98] sm:$0xff] %vm4461, %v4223
    %4482 = vst.msk [vmem:[#allocation2 + $0xa0] sm:$0xff] %vm4461, %v4224
    %4483 = vst.msk [vmem:[#allocation2 + $0xa8] sm:$0xff] %vm4461, %v4225
    %4484 = vst.msk [vmem:[#allocation2 + $0xb0] sm:$0xff] %vm4461, %v4226
    %4485 = vst.msk [vmem:[#allocation2 + $0xb8] sm:$0xff] %vm4461, %v4227
    %4486 = vst.msk [vmem:[#allocation2 + $0xc0] sm:$0xff] %vm4461, %v4228
    %4487 = vst.msk [vmem:[#allocation2 + $0xc8] sm:$0xff] %vm4461, %v4229
    %4488 = vst.msk [vmem:[#allocation2 + $0xd0] sm:$0xff] %vm4461, %v4230
    %4489 = vst.msk [vmem:[#allocation2 + $0xd8] sm:$0xff] %vm4461, %v4231
    %4490 = vst.msk [vmem:[#allocation2 + $0xe0] sm:$0xff] %vm4461, %v4232
    %4491 = vst.msk [vmem:[#allocation2 + $0xe8] sm:$0xff] %vm4461, %v4233
    %4492 = vst.msk [vmem:[#allocation2 + $0xf0] sm:$0xff] %vm4461, %v4234
    %4493 = vst.msk [vmem:[#allocation2 + $0xf8] sm:$0xff] %vm4461, %v4235
    %4494 = vst.msk [vmem:[#allocation2 + $0x100] sm:$0xff] %vm4461, %v4236
    %4495 = vst.msk [vmem:[#allocation2 + $0x108] sm:$0xff] %vm4461, %v4237
    %4496 = vst.msk [vmem:[#allocation2 + $0x110] sm:$0xff] %vm4461, %v4238
    %4497 = vst.msk [vmem:[#allocation2 + $0x118] sm:$0xff] %vm4461, %v4239
    %4498 = vst.msk [vmem:[#allocation2 + $0x120] sm:$0xff] %vm4461, %v4240
    %4499 = vst.msk [vmem:[#allocation2 + $0x128] sm:$0xff] %vm4461, %v4241
    %4500 = vst.msk [vmem:[#allocation2 + $0x130] sm:$0xff] %vm4461, %v4242
    %4501 = vst.msk [vmem:[#allocation2 + $0x138] sm:$0xff] %vm4461, %v4243
    %4502 = vst.msk [vmem:[#allocation2 + $0x140] sm:$0xff] %vm4461, %v4244
    %4503 = vst.msk [vmem:[#allocation2 + $0x148] sm:$0xff] %vm4461, %v4245
    %4504 = vst.msk [vmem:[#allocation2 + $0x150] sm:$0xff] %vm4461, %v4246
    %4505 = vst.msk [vmem:[#allocation2 + $0x158] sm:$0xff] %vm4461, %v4247
    %4506 = vst.msk [vmem:[#allocation2 + $0x160] sm:$0xff] %vm4461, %v4248
    %4507 = vst.msk [vmem:[#allocation2 + $0x168] sm:$0xff] %vm4461, %v4249
    %4508 = vst.msk [vmem:[#allocation2 + $0x170] sm:$0xff] %vm4461, %v4250
    %4509 = vst.msk [vmem:[#allocation2 + $0x178] sm:$0xff] %vm4461, %v4251
    %4510 = vst.msk [vmem:[#allocation2 + $0x180] sm:$0xff] %vm4461, %v4252
    %4511 = vst.msk [vmem:[#allocation2 + $0x188] sm:$0xff] %vm4461, %v4253
    %4512 = vst.msk [vmem:[#allocation2 + $0x190] sm:$0xff] %vm4461, %v4254
    %4513 = vst.msk [vmem:[#allocation2 + $0x198] sm:$0xff] %vm4461, %v4255
    %4514 = vst.msk [vmem:[#allocation2 + $0x1a0] sm:$0xff] %vm4461, %v4256
    %4515 = vst.msk [vmem:[#allocation2 + $0x1a8] sm:$0xff] %vm4461, %v4257
    %4516 = vst.msk [vmem:[#allocation2 + $0x1b0] sm:$0xff] %vm4461, %v4258
    %4517 = vst.msk [vmem:[#allocation2 + $0x1b8] sm:$0xff] %vm4461, %v4259
    %4518 = vst.msk [vmem:[#allocation2 + $0x1c0] sm:$0xff] %vm4461, %v4260
    %4519 = vst.msk [vmem:[#allocation2 + $0x1c8] sm:$0xff] %vm4461, %v4261
    %4520 = vst.msk [vmem:[#allocation2 + $0x1d0] sm:$0xff] %vm4461, %v4262
    %4521 = vst.msk [vmem:[#allocation2 + $0x1d8] sm:$0xff] %vm4461, %v4263
    %4522 = vst.msk [vmem:[#allocation2 + $0x1e0] sm:$0xff] %vm4461, %v4264
    %4523 = vst.msk [vmem:[#allocation2 + $0x1e8] sm:$0xff] %vm4461, %v4265
    %4524 = vst.msk [vmem:[#allocation2 + $0x1f0] sm:$0xff] %vm4461, %v4266
    %4525 = vst.msk [vmem:[#allocation2 + $0x1f8] sm:$0xff] %vm4461, %v4267
    %4590 = vrot.lane.b32.xlu0 %v4268, 2
    %v4591 = vpop.permute.xlu0 %4590
    %4592 = vrot.lane.b32.xlu0 %v4269, 2
    %v4593 = vpop.permute.xlu0 %4592
    %4594 = vrot.lane.b32.xlu0 %v4270, 2
    %v4595 = vpop.permute.xlu0 %4594
    %4596 = vrot.lane.b32.xlu0 %v4271, 2
    %v4597 = vpop.permute.xlu0 %4596
    %4598 = vrot.lane.b32.xlu0 %v4272, 2
    %v4599 = vpop.permute.xlu0 %4598
    %4600 = vrot.lane.b32.xlu0 %v4273, 2
    %v4601 = vpop.permute.xlu0 %4600
    %4602 = vrot.lane.b32.xlu0 %v4274, 2
    %v4603 = vpop.permute.xlu0 %4602
    %4604 = vrot.lane.b32.xlu0 %v4275, 2
    %v4605 = vpop.permute.xlu0 %4604
    %4606 = vrot.lane.b32.xlu0 %v4276, 2
    %v4607 = vpop.permute.xlu0 %4606
    %4608 = vrot.lane.b32.xlu0 %v4277, 2
    %v4609 = vpop.permute.xlu0 %4608
    %4610 = vrot.lane.b32.xlu0 %v4278, 2
    %v4611 = vpop.permute.xlu0 %4610
    %4612 = vrot.lane.b32.xlu0 %v4279, 2
    %v4613 = vpop.permute.xlu0 %4612
    %4614 = vrot.lane.b32.xlu0 %v4280, 2
    %v4615 = vpop.permute.xlu0 %4614
    %4616 = vrot.lane.b32.xlu0 %v4281, 2
    %v4617 = vpop.permute.xlu0 %4616
    %4618 = vrot.lane.b32.xlu0 %v4282, 2
    %v4619 = vpop.permute.xlu0 %4618
    %4620 = vrot.lane.b32.xlu0 %v4283, 2
    %v4621 = vpop.permute.xlu0 %4620
    %4622 = vrot.lane.b32.xlu0 %v4284, 2
    %v4623 = vpop.permute.xlu0 %4622
    %4624 = vrot.lane.b32.xlu0 %v4285, 2
    %v4625 = vpop.permute.xlu0 %4624
    %4626 = vrot.lane.b32.xlu0 %v4286, 2
    %v4627 = vpop.permute.xlu0 %4626
    %4628 = vrot.lane.b32.xlu0 %v4287, 2
    %v4629 = vpop.permute.xlu0 %4628
    %4630 = vrot.lane.b32.xlu0 %v4288, 2
    %v4631 = vpop.permute.xlu0 %4630
    %4632 = vrot.lane.b32.xlu0 %v4289, 2
    %v4633 = vpop.permute.xlu0 %4632
    %4634 = vrot.lane.b32.xlu0 %v4290, 2
    %v4635 = vpop.permute.xlu0 %4634
    %4636 = vrot.lane.b32.xlu0 %v4291, 2
    %v4637 = vpop.permute.xlu0 %4636
    %4638 = vrot.lane.b32.xlu0 %v4292, 2
    %v4639 = vpop.permute.xlu0 %4638
    %4640 = vrot.lane.b32.xlu0 %v4293, 2
    %v4641 = vpop.permute.xlu0 %4640
    %4642 = vrot.lane.b32.xlu0 %v4294, 2
    %v4643 = vpop.permute.xlu0 %4642
    %4644 = vrot.lane.b32.xlu0 %v4295, 2
    %v4645 = vpop.permute.xlu0 %4644
    %4646 = vrot.lane.b32.xlu0 %v4296, 2
    %v4647 = vpop.permute.xlu0 %4646
    %4648 = vrot.lane.b32.xlu0 %v4297, 2
    %v4649 = vpop.permute.xlu0 %4648
    %4650 = vrot.lane.b32.xlu0 %v4298, 2
    %v4651 = vpop.permute.xlu0 %4650
    %4652 = vrot.lane.b32.xlu0 %v4299, 2
    %v4653 = vpop.permute.xlu0 %4652
    %4654 = vrot.lane.b32.xlu0 %v4300, 2
    %v4655 = vpop.permute.xlu0 %4654
    %4656 = vrot.lane.b32.xlu0 %v4301, 2
    %v4657 = vpop.permute.xlu0 %4656
    %4658 = vrot.lane.b32.xlu0 %v4302, 2
    %v4659 = vpop.permute.xlu0 %4658
    %4660 = vrot.lane.b32.xlu0 %v4303, 2
    %v4661 = vpop.permute.xlu0 %4660
    %4662 = vrot.lane.b32.xlu0 %v4304, 2
    %v4663 = vpop.permute.xlu0 %4662
    %4664 = vrot.lane.b32.xlu0 %v4305, 2
    %v4665 = vpop.permute.xlu0 %4664
    %4666 = vrot.lane.b32.xlu0 %v4306, 2
    %v4667 = vpop.permute.xlu0 %4666
    %4668 = vrot.lane.b32.xlu0 %v4307, 2
    %v4669 = vpop.permute.xlu0 %4668
    %4670 = vrot.lane.b32.xlu0 %v4308, 2
    %v4671 = vpop.permute.xlu0 %4670
    %4672 = vrot.lane.b32.xlu0 %v4309, 2
    %v4673 = vpop.permute.xlu0 %4672
    %4674 = vrot.lane.b32.xlu0 %v4310, 2
    %v4675 = vpop.permute.xlu0 %4674
    %4676 = vrot.lane.b32.xlu0 %v4311, 2
    %v4677 = vpop.permute.xlu0 %4676
    %4678 = vrot.lane.b32.xlu0 %v4312, 2
    %v4679 = vpop.permute.xlu0 %4678
    %4680 = vrot.lane.b32.xlu0 %v4313, 2
    %v4681 = vpop.permute.xlu0 %4680
    %4682 = vrot.lane.b32.xlu0 %v4314, 2
    %v4683 = vpop.permute.xlu0 %4682
    %4684 = vrot.lane.b32.xlu0 %v4315, 2
    %v4685 = vpop.permute.xlu0 %4684
    %4686 = vrot.lane.b32.xlu0 %v4316, 2
    %v4687 = vpop.permute.xlu0 %4686
    %4688 = vrot.lane.b32.xlu0 %v4317, 2
    %v4689 = vpop.permute.xlu0 %4688
    %4690 = vrot.lane.b32.xlu0 %v4318, 2
    %v4691 = vpop.permute.xlu0 %4690
    %4692 = vrot.lane.b32.xlu0 %v4319, 2
    %v4693 = vpop.permute.xlu0 %4692
    %4694 = vrot.lane.b32.xlu0 %v4320, 2
    %v4695 = vpop.permute.xlu0 %4694
    %4696 = vrot.lane.b32.xlu0 %v4321, 2
    %v4697 = vpop.permute.xlu0 %4696
    %4698 = vrot.lane.b32.xlu0 %v4322, 2
    %v4699 = vpop.permute.xlu0 %4698
    %4700 = vrot.lane.b32.xlu0 %v4323, 2
    %v4701 = vpop.permute.xlu0 %4700
    %4702 = vrot.lane.b32.xlu0 %v4324, 2
    %v4703 = vpop.permute.xlu0 %4702
    %4704 = vrot.lane.b32.xlu0 %v4325, 2
    %v4705 = vpop.permute.xlu0 %4704
    %4706 = vrot.lane.b32.xlu0 %v4326, 2
    %v4707 = vpop.permute.xlu0 %4706
    %4708 = vrot.lane.b32.xlu0 %v4327, 2
    %v4709 = vpop.permute.xlu0 %4708
    %4710 = vrot.lane.b32.xlu0 %v4328, 2
    %v4711 = vpop.permute.xlu0 %4710
    %4712 = vrot.lane.b32.xlu0 %v4329, 2
    %v4713 = vpop.permute.xlu0 %4712
    %4714 = vrot.lane.b32.xlu0 %v4330, 2
    %v4715 = vpop.permute.xlu0 %4714
    %4716 = vrot.lane.b32.xlu0 %v4331, 2
    %v4717 = vpop.permute.xlu0 %4716
    %vm4782 = vcmask 23568
    %4783 = vst.msk [vmem:[#allocation2] sm:$0xff] %vm4782, %v4591
    %4784 = vst.msk [vmem:[#allocation2 + $0x8] sm:$0xff] %vm4782, %v4593
    %4785 = vst.msk [vmem:[#allocation2 + $0x10] sm:$0xff] %vm4782, %v4595
    %4786 = vst.msk [vmem:[#allocation2 + $0x18] sm:$0xff] %vm4782, %v4597
    %4787 = vst.msk [vmem:[#allocation2 + $0x20] sm:$0xff] %vm4782, %v4599
    %4788 = vst.msk [vmem:[#allocation2 + $0x28] sm:$0xff] %vm4782, %v4601
    %4789 = vst.msk [vmem:[#allocation2 + $0x30] sm:$0xff] %vm4782, %v4603
    %4790 = vst.msk [vmem:[#allocation2 + $0x38] sm:$0xff] %vm4782, %v4605
    %4791 = vst.msk [vmem:[#allocation2 + $0x40] sm:$0xff] %vm4782, %v4607
    %4792 = vst.msk [vmem:[#allocation2 + $0x48] sm:$0xff] %vm4782, %v4609
    %4793 = vst.msk [vmem:[#allocation2 + $0x50] sm:$0xff] %vm4782, %v4611
    %4794 = vst.msk [vmem:[#allocation2 + $0x58] sm:$0xff] %vm4782, %v4613
    %4795 = vst.msk [vmem:[#allocation2 + $0x60] sm:$0xff] %vm4782, %v4615
    %4796 = vst.msk [vmem:[#allocation2 + $0x68] sm:$0xff] %vm4782, %v4617
    %4797 = vst.msk [vmem:[#allocation2 + $0x70] sm:$0xff] %vm4782, %v4619
    %4798 = vst.msk [vmem:[#allocation2 + $0x78] sm:$0xff] %vm4782, %v4621
    %4799 = vst.msk [vmem:[#allocation2 + $0x80] sm:$0xff] %vm4782, %v4623
    %4800 = vst.msk [vmem:[#allocation2 + $0x88] sm:$0xff] %vm4782, %v4625
    %4801 = vst.msk [vmem:[#allocation2 + $0x90] sm:$0xff] %vm4782, %v4627
    %4802 = vst.msk [vmem:[#allocation2 + $0x98] sm:$0xff] %vm4782, %v4629
    %4803 = vst.msk [vmem:[#allocation2 + $0xa0] sm:$0xff] %vm4782, %v4631
    %4804 = vst.msk [vmem:[#allocation2 + $0xa8] sm:$0xff] %vm4782, %v4633
    %4805 = vst.msk [vmem:[#allocation2 + $0xb0] sm:$0xff] %vm4782, %v4635
    %4806 = vst.msk [vmem:[#allocation2 + $0xb8] sm:$0xff] %vm4782, %v4637
    %4807 = vst.msk [vmem:[#allocation2 + $0xc0] sm:$0xff] %vm4782, %v4639
    %4808 = vst.msk [vmem:[#allocation2 + $0xc8] sm:$0xff] %vm4782, %v4641
    %4809 = vst.msk [vmem:[#allocation2 + $0xd0] sm:$0xff] %vm4782, %v4643
    %4810 = vst.msk [vmem:[#allocation2 + $0xd8] sm:$0xff] %vm4782, %v4645
    %4811 = vst.msk [vmem:[#allocation2 + $0xe0] sm:$0xff] %vm4782, %v4647
    %4812 = vst.msk [vmem:[#allocation2 + $0xe8] sm:$0xff] %vm4782, %v4649
    %4813 = vst.msk [vmem:[#allocation2 + $0xf0] sm:$0xff] %vm4782, %v4651
    %4814 = vst.msk [vmem:[#allocation2 + $0xf8] sm:$0xff] %vm4782, %v4653
    %4815 = vst.msk [vmem:[#allocation2 + $0x100] sm:$0xff] %vm4782, %v4655
    %4816 = vst.msk [vmem:[#allocation2 + $0x108] sm:$0xff] %vm4782, %v4657
    %4817 = vst.msk [vmem:[#allocation2 + $0x110] sm:$0xff] %vm4782, %v4659
    %4818 = vst.msk [vmem:[#allocation2 + $0x118] sm:$0xff] %vm4782, %v4661
    %4819 = vst.msk [vmem:[#allocation2 + $0x120] sm:$0xff] %vm4782, %v4663
    %4820 = vst.msk [vmem:[#allocation2 + $0x128] sm:$0xff] %vm4782, %v4665
    %4821 = vst.msk [vmem:[#allocation2 + $0x130] sm:$0xff] %vm4782, %v4667
    %4822 = vst.msk [vmem:[#allocation2 + $0x138] sm:$0xff] %vm4782, %v4669
    %4823 = vst.msk [vmem:[#allocation2 + $0x140] sm:$0xff] %vm4782, %v4671
    %4824 = vst.msk [vmem:[#allocation2 + $0x148] sm:$0xff] %vm4782, %v4673
    %4825 = vst.msk [vmem:[#allocation2 + $0x150] sm:$0xff] %vm4782, %v4675
    %4826 = vst.msk [vmem:[#allocation2 + $0x158] sm:$0xff] %vm4782, %v4677
    %4827 = vst.msk [vmem:[#allocation2 + $0x160] sm:$0xff] %vm4782, %v4679
    %4828 = vst.msk [vmem:[#allocation2 + $0x168] sm:$0xff] %vm4782, %v4681
    %4829 = vst.msk [vmem:[#allocation2 + $0x170] sm:$0xff] %vm4782, %v4683
    %4830 = vst.msk [vmem:[#allocation2 + $0x178] sm:$0xff] %vm4782, %v4685
    %4831 = vst.msk [vmem:[#allocation2 + $0x180] sm:$0xff] %vm4782, %v4687
    %4832 = vst.msk [vmem:[#allocation2 + $0x188] sm:$0xff] %vm4782, %v4689
    %4833 = vst.msk [vmem:[#allocation2 + $0x190] sm:$0xff] %vm4782, %v4691
    %4834 = vst.msk [vmem:[#allocation2 + $0x198] sm:$0xff] %vm4782, %v4693
    %4835 = vst.msk [vmem:[#allocation2 + $0x1a0] sm:$0xff] %vm4782, %v4695
    %4836 = vst.msk [vmem:[#allocation2 + $0x1a8] sm:$0xff] %vm4782, %v4697
    %4837 = vst.msk [vmem:[#allocation2 + $0x1b0] sm:$0xff] %vm4782, %v4699
    %4838 = vst.msk [vmem:[#allocation2 + $0x1b8] sm:$0xff] %vm4782, %v4701
    %4839 = vst.msk [vmem:[#allocation2 + $0x1c0] sm:$0xff] %vm4782, %v4703
    %4840 = vst.msk [vmem:[#allocation2 + $0x1c8] sm:$0xff] %vm4782, %v4705
    %4841 = vst.msk [vmem:[#allocation2 + $0x1d0] sm:$0xff] %vm4782, %v4707
    %4842 = vst.msk [vmem:[#allocation2 + $0x1d8] sm:$0xff] %vm4782, %v4709
    %4843 = vst.msk [vmem:[#allocation2 + $0x1e0] sm:$0xff] %vm4782, %v4711
    %4844 = vst.msk [vmem:[#allocation2 + $0x1e8] sm:$0xff] %vm4782, %v4713
    %4845 = vst.msk [vmem:[#allocation2 + $0x1f0] sm:$0xff] %vm4782, %v4715
    %4846 = vst.msk [vmem:[#allocation2 + $0x1f8] sm:$0xff] %vm4782, %v4717
    %vm4847 = vcmask 31768
    %4848 = vst.msk [vmem:[#allocation2] sm:$0xff] %vm4847, %v4591
    %4849 = vst.msk [vmem:[#allocation2 + $0x8] sm:$0xff] %vm4847, %v4593
    %4850 = vst.msk [vmem:[#allocation2 + $0x10] sm:$0xff] %vm4847, %v4595
    %4851 = vst.msk [vmem:[#allocation2 + $0x18] sm:$0xff] %vm4847, %v4597
    %4852 = vst.msk [vmem:[#allocation2 + $0x20] sm:$0xff] %vm4847, %v4599
    %4853 = vst.msk [vmem:[#allocation2 + $0x28] sm:$0xff] %vm4847, %v4601
    %4854 = vst.msk [vmem:[#allocation2 + $0x30] sm:$0xff] %vm4847, %v4603
    %4855 = vst.msk [vmem:[#allocation2 + $0x38] sm:$0xff] %vm4847, %v4605
    %4856 = vst.msk [vmem:[#allocation2 + $0x40] sm:$0xff] %vm4847, %v4607
    %4857 = vst.msk [vmem:[#allocation2 + $0x48] sm:$0xff] %vm4847, %v4609
    %4858 = vst.msk [vmem:[#allocation2 + $0x50] sm:$0xff] %vm4847, %v4611
    %4859 = vst.msk [vmem:[#allocation2 + $0x58] sm:$0xff] %vm4847, %v4613
    %4860 = vst.msk [vmem:[#allocation2 + $0x60] sm:$0xff] %vm4847, %v4615
    %4861 = vst.msk [vmem:[#allocation2 + $0x68] sm:$0xff] %vm4847, %v4617
    %4862 = vst.msk [vmem:[#allocation2 + $0x70] sm:$0xff] %vm4847, %v4619
    %4863 = vst.msk [vmem:[#allocation2 + $0x78] sm:$0xff] %vm4847, %v4621
    %4864 = vst.msk [vmem:[#allocation2 + $0x80] sm:$0xff] %vm4847, %v4623
    %4865 = vst.msk [vmem:[#allocation2 + $0x88] sm:$0xff] %vm4847, %v4625
    %4866 = vst.msk [vmem:[#allocation2 + $0x90] sm:$0xff] %vm4847, %v4627
    %4867 = vst.msk [vmem:[#allocation2 + $0x98] sm:$0xff] %vm4847, %v4629
    %4868 = vst.msk [vmem:[#allocation2 + $0xa0] sm:$0xff] %vm4847, %v4631
    %4869 = vst.msk [vmem:[#allocation2 + $0xa8] sm:$0xff] %vm4847, %v4633
    %4870 = vst.msk [vmem:[#allocation2 + $0xb0] sm:$0xff] %vm4847, %v4635
    %4871 = vst.msk [vmem:[#allocation2 + $0xb8] sm:$0xff] %vm4847, %v4637
    %4872 = vst.msk [vmem:[#allocation2 + $0xc0] sm:$0xff] %vm4847, %v4639
    %4873 = vst.msk [vmem:[#allocation2 + $0xc8] sm:$0xff] %vm4847, %v4641
    %4874 = vst.msk [vmem:[#allocation2 + $0xd0] sm:$0xff] %vm4847, %v4643
    %4875 = vst.msk [vmem:[#allocation2 + $0xd8] sm:$0xff] %vm4847, %v4645
    %4876 = vst.msk [vmem:[#allocation2 + $0xe0] sm:$0xff] %vm4847, %v4647
    %4877 = vst.msk [vmem:[#allocation2 + $0xe8] sm:$0xff] %vm4847, %v4649
    %4878 = vst.msk [vmem:[#allocation2 + $0xf0] sm:$0xff] %vm4847, %v4651
    %4879 = vst.msk [vmem:[#allocation2 + $0xf8] sm:$0xff] %vm4847, %v4653
    %4880 = vst.msk [vmem:[#allocation2 + $0x100] sm:$0xff] %vm4847, %v4655
    %4881 = vst.msk [vmem:[#allocation2 + $0x108] sm:$0xff] %vm4847, %v4657
    %4882 = vst.msk [vmem:[#allocation2 + $0x110] sm:$0xff] %vm4847, %v4659
    %4883 = vst.msk [vmem:[#allocation2 + $0x118] sm:$0xff] %vm4847, %v4661
    %4884 = vst.msk [vmem:[#allocation2 + $0x120] sm:$0xff] %vm4847, %v4663
    %4885 = vst.msk [vmem:[#allocation2 + $0x128] sm:$0xff] %vm4847, %v4665
    %4886 = vst.msk [vmem:[#allocation2 + $0x130] sm:$0xff] %vm4847, %v4667
    %4887 = vst.msk [vmem:[#allocation2 + $0x138] sm:$0xff] %vm4847, %v4669
    %4888 = vst.msk [vmem:[#allocation2 + $0x140] sm:$0xff] %vm4847, %v4671
    %4889 = vst.msk [vmem:[#allocation2 + $0x148] sm:$0xff] %vm4847, %v4673
    %4890 = vst.msk [vmem:[#allocation2 + $0x150] sm:$0xff] %vm4847, %v4675
    %4891 = vst.msk [vmem:[#allocation2 + $0x158] sm:$0xff] %vm4847, %v4677
    %4892 = vst.msk [vmem:[#allocation2 + $0x160] sm:$0xff] %vm4847, %v4679
    %4893 = vst.msk [vmem:[#allocation2 + $0x168] sm:$0xff] %vm4847, %v4681
    %4894 = vst.msk [vmem:[#allocation2 + $0x170] sm:$0xff] %vm4847, %v4683
    %4895 = vst.msk [vmem:[#allocation2 + $0x178] sm:$0xff] %vm4847, %v4685
    %4896 = vst.msk [vmem:[#allocation2 + $0x180] sm:$0xff] %vm4847, %v4687
    %4897 = vst.msk [vmem:[#allocation2 + $0x188] sm:$0xff] %vm4847, %v4689
    %4898 = vst.msk [vmem:[#allocation2 + $0x190] sm:$0xff] %vm4847, %v4691
    %4899 = vst.msk [vmem:[#allocation2 + $0x198] sm:$0xff] %vm4847, %v4693
    %4900 = vst.msk [vmem:[#allocation2 + $0x1a0] sm:$0xff] %vm4847, %v4695
    %4901 = vst.msk [vmem:[#allocation2 + $0x1a8] sm:$0xff] %vm4847, %v4697
    %4902 = vst.msk [vmem:[#allocation2 + $0x1b0] sm:$0xff] %vm4847, %v4699
    %4903 = vst.msk [vmem:[#allocation2 + $0x1b8] sm:$0xff] %vm4847, %v4701
    %4904 = vst.msk [vmem:[#allocation2 + $0x1c0] sm:$0xff] %vm4847, %v4703
    %4905 = vst.msk [vmem:[#allocation2 + $0x1c8] sm:$0xff] %vm4847, %v4705
    %4906 = vst.msk [vmem:[#allocation2 + $0x1d0] sm:$0xff] %vm4847, %v4707
    %4907 = vst.msk [vmem:[#allocation2 + $0x1d8] sm:$0xff] %vm4847, %v4709
    %4908 = vst.msk [vmem:[#allocation2 + $0x1e0] sm:$0xff] %vm4847, %v4711
    %4909 = vst.msk [vmem:[#allocation2 + $0x1e8] sm:$0xff] %vm4847, %v4713
    %4910 = vst.msk [vmem:[#allocation2 + $0x1f0] sm:$0xff] %vm4847, %v4715
    %4911 = vst.msk [vmem:[#allocation2 + $0x1f8] sm:$0xff] %vm4847, %v4717
    %v4912 = vadd.f32 %v4204, %v3820
    %v4913 = vadd.f32 %v4205, %v3821
    %v4914 = vadd.f32 %v4206, %v3822
    %v4915 = vadd.f32 %v4207, %v3823
    %v4916 = vadd.f32 %v4208, %v3824
    %v4917 = vadd.f32 %v4209, %v3825
    %v4918 = vadd.f32 %v4210, %v3826
    %v4919 = vadd.f32 %v4211, %v3827
    %v4920 = vadd.f32 %v4212, %v3828
    %v4921 = vadd.f32 %v4213, %v3829
    %v4922 = vadd.f32 %v4214, %v3830
    %v4923 = vadd.f32 %v4215, %v3831
    %v4924 = vadd.f32 %v4216, %v3832
    %v4925 = vadd.f32 %v4217, %v3833
    %v4926 = vadd.f32 %v4218, %v3834
    %v4927 = vadd.f32 %v4219, %v3835
    %v4928 = vadd.f32 %v4220, %v3836
    %v4929 = vadd.f32 %v4221, %v3837
    %v4930 = vadd.f32 %v4222, %v3838
    %v4931 = vadd.f32 %v4223, %v3839
    %v4932 = vadd.f32 %v4224, %v3840
    %v4933 = vadd.f32 %v4225, %v3841
    %v4934 = vadd.f32 %v4226, %v3842
    %v4935 = vadd.f32 %v4227, %v3843
    %v4936 = vadd.f32 %v4228, %v3844
    %v4937 = vadd.f32 %v4229, %v3845
    %v4938 = vadd.f32 %v4230, %v3846
    %v4939 = vadd.f32 %v4231, %v3847
    %v4940 = vadd.f32 %v4232, %v3848
    %v4941 = vadd.f32 %v4233, %v3849
    %v4942 = vadd.f32 %v4234, %v3850
    %v4943 = vadd.f32 %v4235, %v3851
    %v4944 = vadd.f32 %v4236, %v3852
    %v4945 = vadd.f32 %v4237, %v3853
    %v4946 = vadd.f32 %v4238, %v3854
    %v4947 = vadd.f32 %v4239, %v3855
    %v4948 = vadd.f32 %v4240, %v3856
    %v4949 = vadd.f32 %v4241, %v3857
    %v4950 = vadd.f32 %v4242, %v3858
    %v4951 = vadd.f32 %v4243, %v3859
    %v4952 = vadd.f32 %v4244, %v3860
    %v4953 = vadd.f32 %v4245, %v3861
    %v4954 = vadd.f32 %v4246, %v3862
    %v4955 = vadd.f32 %v4247, %v3863
    %v4956 = vadd.f32 %v4248, %v3864
    %v4957 = vadd.f32 %v4249, %v3865
    %v4958 = vadd.f32 %v4250, %v3866
    %v4959 = vadd.f32 %v4251, %v3867
    %v4960 = vadd.f32 %v4252, %v3868
    %v4961 = vadd.f32 %v4253, %v3869
    %v4962 = vadd.f32 %v4254, %v3870
    %v4963 = vadd.f32 %v4255, %v3871
    %v4964 = vadd.f32 %v4256, %v3872
    %v4965 = vadd.f32 %v4257, %v3873
    %v4966 = vadd.f32 %v4258, %v3874
    %v4967 = vadd.f32 %v4259, %v3875
    %v4968 = vadd.f32 %v4260, %v3876
    %v4969 = vadd.f32 %v4261, %v3877
    %v4970 = vadd.f32 %v4262, %v3878
    %v4971 = vadd.f32 %v4263, %v3879
    %v4972 = vadd.f32 %v4264, %v3880
    %v4973 = vadd.f32 %v4265, %v3881
    %v4974 = vadd.f32 %v4266, %v3882
    %v4975 = vadd.f32 %v4267, %v3883
    %5040 = vrot.lane.b32.xlu0 %v4912, 4
    %v5041 = vpop.permute.xlu0 %5040
    %5042 = vrot.lane.b32.xlu0 %v4913, 4
    %v5043 = vpop.permute.xlu0 %5042
    %5044 = vrot.lane.b32.xlu0 %v4914, 4
    %v5045 = vpop.permute.xlu0 %5044
    %5046 = vrot.lane.b32.xlu0 %v4915, 4
    %v5047 = vpop.permute.xlu0 %5046
    %5048 = vrot.lane.b32.xlu0 %v4916, 4
    %v5049 = vpop.permute.xlu0 %5048
    %5050 = vrot.lane.b32.xlu0 %v4917, 4
    %v5051 = vpop.permute.xlu0 %5050
    %5052 = vrot.lane.b32.xlu0 %v4918, 4
    %v5053 = vpop.permute.xlu0 %5052
    %5054 = vrot.lane.b32.xlu0 %v4919, 4
    %v5055 = vpop.permute.xlu0 %5054
    %5056 = vrot.lane.b32.xlu0 %v4920, 4
    %v5057 = vpop.permute.xlu0 %5056
    %5058 = vrot.lane.b32.xlu0 %v4921, 4
    %v5059 = vpop.permute.xlu0 %5058
    %5060 = vrot.lane.b32.xlu0 %v4922, 4
    %v5061 = vpop.permute.xlu0 %5060
    %5062 = vrot.lane.b32.xlu0 %v4923, 4
    %v5063 = vpop.permute.xlu0 %5062
    %5064 = vrot.lane.b32.xlu0 %v4924, 4
    %v5065 = vpop.permute.xlu0 %5064
    %5066 = vrot.lane.b32.xlu0 %v4925, 4
    %v5067 = vpop.permute.xlu0 %5066
    %5068 = vrot.lane.b32.xlu0 %v4926, 4
    %v5069 = vpop.permute.xlu0 %5068
    %5070 = vrot.lane.b32.xlu0 %v4927, 4
    %v5071 = vpop.permute.xlu0 %5070
    %5072 = vrot.lane.b32.xlu0 %v4928, 4
    %v5073 = vpop.permute.xlu0 %5072
    %5074 = vrot.lane.b32.xlu0 %v4929, 4
    %v5075 = vpop.permute.xlu0 %5074
    %5076 = vrot.lane.b32.xlu0 %v4930, 4
    %v5077 = vpop.permute.xlu0 %5076
    %5078 = vrot.lane.b32.xlu0 %v4931, 4
    %v5079 = vpop.permute.xlu0 %5078
    %5080 = vrot.lane.b32.xlu0 %v4932, 4
    %v5081 = vpop.permute.xlu0 %5080
    %5082 = vrot.lane.b32.xlu0 %v4933, 4
    %v5083 = vpop.permute.xlu0 %5082
    %5084 = vrot.lane.b32.xlu0 %v4934, 4
    %v5085 = vpop.permute.xlu0 %5084
    %5086 = vrot.lane.b32.xlu0 %v4935, 4
    %v5087 = vpop.permute.xlu0 %5086
    %5088 = vrot.lane.b32.xlu0 %v4936, 4
    %v5089 = vpop.permute.xlu0 %5088
    %5090 = vrot.lane.b32.xlu0 %v4937, 4
    %v5091 = vpop.permute.xlu0 %5090
    %5092 = vrot.lane.b32.xlu0 %v4938, 4
    %v5093 = vpop.permute.xlu0 %5092
    %5094 = vrot.lane.b32.xlu0 %v4939, 4
    %v5095 = vpop.permute.xlu0 %5094
    %5096 = vrot.lane.b32.xlu0 %v4940, 4
    %v5097 = vpop.permute.xlu0 %5096
    %5098 = vrot.lane.b32.xlu0 %v4941, 4
    %v5099 = vpop.permute.xlu0 %5098
    %5100 = vrot.lane.b32.xlu0 %v4942, 4
    %v5101 = vpop.permute.xlu0 %5100
    %5102 = vrot.lane.b32.xlu0 %v4943, 4
    %v5103 = vpop.permute.xlu0 %5102
    %5104 = vrot.lane.b32.xlu0 %v4944, 4
    %v5105 = vpop.permute.xlu0 %5104
    %5106 = vrot.lane.b32.xlu0 %v4945, 4
    %v5107 = vpop.permute.xlu0 %5106
    %5108 = vrot.lane.b32.xlu0 %v4946, 4
    %v5109 = vpop.permute.xlu0 %5108
    %5110 = vrot.lane.b32.xlu0 %v4947, 4
    %v5111 = vpop.permute.xlu0 %5110
    %5112 = vrot.lane.b32.xlu0 %v4948, 4
    %v5113 = vpop.permute.xlu0 %5112
    %5114 = vrot.lane.b32.xlu0 %v4949, 4
    %v5115 = vpop.permute.xlu0 %5114
    %5116 = vrot.lane.b32.xlu0 %v4950, 4
    %v5117 = vpop.permute.xlu0 %5116
    %5118 = vrot.lane.b32.xlu0 %v4951, 4
    %v5119 = vpop.permute.xlu0 %5118
    %5120 = vrot.lane.b32.xlu0 %v4952, 4
    %v5121 = vpop.permute.xlu0 %5120
    %5122 = vrot.lane.b32.xlu0 %v4953, 4
    %v5123 = vpop.permute.xlu0 %5122
    %5124 = vrot.lane.b32.xlu0 %v4954, 4
    %v5125 = vpop.permute.xlu0 %5124
    %5126 = vrot.lane.b32.xlu0 %v4955, 4
    %v5127 = vpop.permute.xlu0 %5126
    %5128 = vrot.lane.b32.xlu0 %v4956, 4
    %v5129 = vpop.permute.xlu0 %5128
    %5130 = vrot.lane.b32.xlu0 %v4957, 4
    %v5131 = vpop.permute.xlu0 %5130
    %5132 = vrot.lane.b32.xlu0 %v4958, 4
    %v5133 = vpop.permute.xlu0 %5132
    %5134 = vrot.lane.b32.xlu0 %v4959, 4
    %v5135 = vpop.permute.xlu0 %5134
    %5136 = vrot.lane.b32.xlu0 %v4960, 4
    %v5137 = vpop.permute.xlu0 %5136
    %5138 = vrot.lane.b32.xlu0 %v4961, 4
    %v5139 = vpop.permute.xlu0 %5138
    %5140 = vrot.lane.b32.xlu0 %v4962, 4
    %v5141 = vpop.permute.xlu0 %5140
    %5142 = vrot.lane.b32.xlu0 %v4963, 4
    %v5143 = vpop.permute.xlu0 %5142
    %5144 = vrot.lane.b32.xlu0 %v4964, 4
    %v5145 = vpop.permute.xlu0 %5144
    %5146 = vrot.lane.b32.xlu0 %v4965, 4
    %v5147 = vpop.permute.xlu0 %5146
    %5148 = vrot.lane.b32.xlu0 %v4966, 4
    %v5149 = vpop.permute.xlu0 %5148
    %5150 = vrot.lane.b32.xlu0 %v4967, 4
    %v5151 = vpop.permute.xlu0 %5150
    %5152 = vrot.lane.b32.xlu0 %v4968, 4
    %v5153 = vpop.permute.xlu0 %5152
    %5154 = vrot.lane.b32.xlu0 %v4969, 4
    %v5155 = vpop.permute.xlu0 %5154
    %5156 = vrot.lane.b32.xlu0 %v4970, 4
    %v5157 = vpop.permute.xlu0 %5156
    %5158 = vrot.lane.b32.xlu0 %v4971, 4
    %v5159 = vpop.permute.xlu0 %5158
    %5160 = vrot.lane.b32.xlu0 %v4972, 4
    %v5161 = vpop.permute.xlu0 %5160
    %5162 = vrot.lane.b32.xlu0 %v4973, 4
    %v5163 = vpop.permute.xlu0 %5162
    %5164 = vrot.lane.b32.xlu0 %v4974, 4
    %v5165 = vpop.permute.xlu0 %5164
    %5166 = vrot.lane.b32.xlu0 %v4975, 4
    %v5167 = vpop.permute.xlu0 %5166
    %vm5232 = vcmask 39968
    %5233 = vst.msk [vmem:[#allocation2] sm:$0xff] %vm5232, %v5041
    %5234 = vst.msk [vmem:[#allocation2 + $0x8] sm:$0xff] %vm5232, %v5043
    %5235 = vst.msk [vmem:[#allocation2 + $0x10] sm:$0xff] %vm5232, %v5045
    %5236 = vst.msk [vmem:[#allocation2 + $0x18] sm:$0xff] %vm5232, %v5047
    %5237 = vst.msk [vmem:[#allocation2 + $0x20] sm:$0xff] %vm5232, %v5049
    %5238 = vst.msk [vmem:[#allocation2 + $0x28] sm:$0xff] %vm5232, %v5051
    %5239 = vst.msk [vmem:[#allocation2 + $0x30] sm:$0xff] %vm5232, %v5053
    %5240 = vst.msk [vmem:[#allocation2 + $0x38] sm:$0xff] %vm5232, %v5055
    %5241 = vst.msk [vmem:[#allocation2 + $0x40] sm:$0xff] %vm5232, %v5057
    %5242 = vst.msk [vmem:[#allocation2 + $0x48] sm:$0xff] %vm5232, %v5059
    %5243 = vst.msk [vmem:[#allocation2 + $0x50] sm:$0xff] %vm5232, %v5061
    %5244 = vst.msk [vmem:[#allocation2 + $0x58] sm:$0xff] %vm5232, %v5063
    %5245 = vst.msk [vmem:[#allocation2 + $0x60] sm:$0xff] %vm5232, %v5065
    %5246 = vst.msk [vmem:[#allocation2 + $0x68] sm:$0xff] %vm5232, %v5067
    %5247 = vst.msk [vmem:[#allocation2 + $0x70] sm:$0xff] %vm5232, %v5069
    %5248 = vst.msk [vmem:[#allocation2 + $0x78] sm:$0xff] %vm5232, %v5071
    %5249 = vst.msk [vmem:[#allocation2 + $0x80] sm:$0xff] %vm5232, %v5073
    %5250 = vst.msk [vmem:[#allocation2 + $0x88] sm:$0xff] %vm5232, %v5075
    %5251 = vst.msk [vmem:[#allocation2 + $0x90] sm:$0xff] %vm5232, %v5077
    %5252 = vst.msk [vmem:[#allocation2 + $0x98] sm:$0xff] %vm5232, %v5079
    %5253 = vst.msk [vmem:[#allocation2 + $0xa0] sm:$0xff] %vm5232, %v5081
    %5254 = vst.msk [vmem:[#allocation2 + $0xa8] sm:$0xff] %vm5232, %v5083
    %5255 = vst.msk [vmem:[#allocation2 + $0xb0] sm:$0xff] %vm5232, %v5085
    %5256 = vst.msk [vmem:[#allocation2 + $0xb8] sm:$0xff] %vm5232, %v5087
    %5257 = vst.msk [vmem:[#allocation2 + $0xc0] sm:$0xff] %vm5232, %v5089
    %5258 = vst.msk [vmem:[#allocation2 + $0xc8] sm:$0xff] %vm5232, %v5091
    %5259 = vst.msk [vmem:[#allocation2 + $0xd0] sm:$0xff] %vm5232, %v5093
    %5260 = vst.msk [vmem:[#allocation2 + $0xd8] sm:$0xff] %vm5232, %v5095
    %5261 = vst.msk [vmem:[#allocation2 + $0xe0] sm:$0xff] %vm5232, %v5097
    %5262 = vst.msk [vmem:[#allocation2 + $0xe8] sm:$0xff] %vm5232, %v5099
    %5263 = vst.msk [vmem:[#allocation2 + $0xf0] sm:$0xff] %vm5232, %v5101
    %5264 = vst.msk [vmem:[#allocation2 + $0xf8] sm:$0xff] %vm5232, %v5103
    %5265 = vst.msk [vmem:[#allocation2 + $0x100] sm:$0xff] %vm5232, %v5105
    %5266 = vst.msk [vmem:[#allocation2 + $0x108] sm:$0xff] %vm5232, %v5107
    %5267 = vst.msk [vmem:[#allocation2 + $0x110] sm:$0xff] %vm5232, %v5109
    %5268 = vst.msk [vmem:[#allocation2 + $0x118] sm:$0xff] %vm5232, %v5111
    %5269 = vst.msk [vmem:[#allocation2 + $0x120] sm:$0xff] %vm5232, %v5113
    %5270 = vst.msk [vmem:[#allocation2 + $0x128] sm:$0xff] %vm5232, %v5115
    %5271 = vst.msk [vmem:[#allocation2 + $0x130] sm:$0xff] %vm5232, %v5117
    %5272 = vst.msk [vmem:[#allocation2 + $0x138] sm:$0xff] %vm5232, %v5119
    %5273 = vst.msk [vmem:[#allocation2 + $0x140] sm:$0xff] %vm5232, %v5121
    %5274 = vst.msk [vmem:[#allocation2 + $0x148] sm:$0xff] %vm5232, %v5123
    %5275 = vst.msk [vmem:[#allocation2 + $0x150] sm:$0xff] %vm5232, %v5125
    %5276 = vst.msk [vmem:[#allocation2 + $0x158] sm:$0xff] %vm5232, %v5127
    %5277 = vst.msk [vmem:[#allocation2 + $0x160] sm:$0xff] %vm5232, %v5129
    %5278 = vst.msk [vmem:[#allocation2 + $0x168] sm:$0xff] %vm5232, %v5131
    %5279 = vst.msk [vmem:[#allocation2 + $0x170] sm:$0xff] %vm5232, %v5133
    %5280 = vst.msk [vmem:[#allocation2 + $0x178] sm:$0xff] %vm5232, %v5135
    %5281 = vst.msk [vmem:[#allocation2 + $0x180] sm:$0xff] %vm5232, %v5137
    %5282 = vst.msk [vmem:[#allocation2 + $0x188] sm:$0xff] %vm5232, %v5139
    %5283 = vst.msk [vmem:[#allocation2 + $0x190] sm:$0xff] %vm5232, %v5141
    %5284 = vst.msk [vmem:[#allocation2 + $0x198] sm:$0xff] %vm5232, %v5143
    %5285 = vst.msk [vmem:[#allocation2 + $0x1a0] sm:$0xff] %vm5232, %v5145
    %5286 = vst.msk [vmem:[#allocation2 + $0x1a8] sm:$0xff] %vm5232, %v5147
    %5287 = vst.msk [vmem:[#allocation2 + $0x1b0] sm:$0xff] %vm5232, %v5149
    %5288 = vst.msk [vmem:[#allocation2 + $0x1b8] sm:$0xff] %vm5232, %v5151
    %5289 = vst.msk [vmem:[#allocation2 + $0x1c0] sm:$0xff] %vm5232, %v5153
    %5290 = vst.msk [vmem:[#allocation2 + $0x1c8] sm:$0xff] %vm5232, %v5155
    %5291 = vst.msk [vmem:[#allocation2 + $0x1d0] sm:$0xff] %vm5232, %v5157
    %5292 = vst.msk [vmem:[#allocation2 + $0x1d8] sm:$0xff] %vm5232, %v5159
    %5293 = vst.msk [vmem:[#allocation2 + $0x1e0] sm:$0xff] %vm5232, %v5161
    %5294 = vst.msk [vmem:[#allocation2 + $0x1e8] sm:$0xff] %vm5232, %v5163
    %5295 = vst.msk [vmem:[#allocation2 + $0x1f0] sm:$0xff] %vm5232, %v5165
    %5296 = vst.msk [vmem:[#allocation2 + $0x1f8] sm:$0xff] %vm5232, %v5167
    %vm5297 = vcmask 48168
    %5298 = vst.msk [vmem:[#allocation2] sm:$0xff] %vm5297, %v5041
    %5299 = vst.msk [vmem:[#allocation2 + $0x8] sm:$0xff] %vm5297, %v5043
    %5300 = vst.msk [vmem:[#allocation2 + $0x10] sm:$0xff] %vm5297, %v5045
    %5301 = vst.msk [vmem:[#allocation2 + $0x18] sm:$0xff] %vm5297, %v5047
    %5302 = vst.msk [vmem:[#allocation2 + $0x20] sm:$0xff] %vm5297, %v5049
    %5303 = vst.msk [vmem:[#allocation2 + $0x28] sm:$0xff] %vm5297, %v5051
    %5304 = vst.msk [vmem:[#allocation2 + $0x30] sm:$0xff] %vm5297, %v5053
    %5305 = vst.msk [vmem:[#allocation2 + $0x38] sm:$0xff] %vm5297, %v5055
    %5306 = vst.msk [vmem:[#allocation2 + $0x40] sm:$0xff] %vm5297, %v5057
    %5307 = vst.msk [vmem:[#allocation2 + $0x48] sm:$0xff] %vm5297, %v5059
    %5308 = vst.msk [vmem:[#allocation2 + $0x50] sm:$0xff] %vm5297, %v5061
    %5309 = vst.msk [vmem:[#allocation2 + $0x58] sm:$0xff] %vm5297, %v5063
    %5310 = vst.msk [vmem:[#allocation2 + $0x60] sm:$0xff] %vm5297, %v5065
    %5311 = vst.msk [vmem:[#allocation2 + $0x68] sm:$0xff] %vm5297, %v5067
    %5312 = vst.msk [vmem:[#allocation2 + $0x70] sm:$0xff] %vm5297, %v5069
    %5313 = vst.msk [vmem:[#allocation2 + $0x78] sm:$0xff] %vm5297, %v5071
    %5314 = vst.msk [vmem:[#allocation2 + $0x80] sm:$0xff] %vm5297, %v5073
    %5315 = vst.msk [vmem:[#allocation2 + $0x88] sm:$0xff] %vm5297, %v5075
    %5316 = vst.msk [vmem:[#allocation2 + $0x90] sm:$0xff] %vm5297, %v5077
    %5317 = vst.msk [vmem:[#allocation2 + $0x98] sm:$0xff] %vm5297, %v5079
    %5318 = vst.msk [vmem:[#allocation2 + $0xa0] sm:$0xff] %vm5297, %v5081
    %5319 = vst.msk [vmem:[#allocation2 + $0xa8] sm:$0xff] %vm5297, %v5083
    %5320 = vst.msk [vmem:[#allocation2 + $0xb0] sm:$0xff] %vm5297, %v5085
    %5321 = vst.msk [vmem:[#allocation2 + $0xb8] sm:$0xff] %vm5297, %v5087
    %5322 = vst.msk [vmem:[#allocation2 + $0xc0] sm:$0xff] %vm5297, %v5089
    %5323 = vst.msk [vmem:[#allocation2 + $0xc8] sm:$0xff] %vm5297, %v5091
    %5324 = vst.msk [vmem:[#allocation2 + $0xd0] sm:$0xff] %vm5297, %v5093
    %5325 = vst.msk [vmem:[#allocation2 + $0xd8] sm:$0xff] %vm5297, %v5095
    %5326 = vst.msk [vmem:[#allocation2 + $0xe0] sm:$0xff] %vm5297, %v5097
    %5327 = vst.msk [vmem:[#allocation2 + $0xe8] sm:$0xff] %vm5297, %v5099
    %5328 = vst.msk [vmem:[#allocation2 + $0xf0] sm:$0xff] %vm5297, %v5101
    %5329 = vst.msk [vmem:[#allocation2 + $0xf8] sm:$0xff] %vm5297, %v5103
    %5330 = vst.msk [vmem:[#allocation2 + $0x100] sm:$0xff] %vm5297, %v5105
    %5331 = vst.msk [vmem:[#allocation2 + $0x108] sm:$0xff] %vm5297, %v5107
    %5332 = vst.msk [vmem:[#allocation2 + $0x110] sm:$0xff] %vm5297, %v5109
    %5333 = vst.msk [vmem:[#allocation2 + $0x118] sm:$0xff] %vm5297, %v5111
    %5334 = vst.msk [vmem:[#allocation2 + $0x120] sm:$0xff] %vm5297, %v5113
    %5335 = vst.msk [vmem:[#allocation2 + $0x128] sm:$0xff] %vm5297, %v5115
    %5336 = vst.msk [vmem:[#allocation2 + $0x130] sm:$0xff] %vm5297, %v5117
    %5337 = vst.msk [vmem:[#allocation2 + $0x138] sm:$0xff] %vm5297, %v5119
    %5338 = vst.msk [vmem:[#allocation2 + $0x140] sm:$0xff] %vm5297, %v5121
    %5339 = vst.msk [vmem:[#allocation2 + $0x148] sm:$0xff] %vm5297, %v5123
    %5340 = vst.msk [vmem:[#allocation2 + $0x150] sm:$0xff] %vm5297, %v5125
    %5341 = vst.msk [vmem:[#allocation2 + $0x158] sm:$0xff] %vm5297, %v5127
    %5342 = vst.msk [vmem:[#allocation2 + $0x160] sm:$0xff] %vm5297, %v5129
    %5343 = vst.msk [vmem:[#allocation2 + $0x168] sm:$0xff] %vm5297, %v5131
    %5344 = vst.msk [vmem:[#allocation2 + $0x170] sm:$0xff] %vm5297, %v5133
    %5345 = vst.msk [vmem:[#allocation2 + $0x178] sm:$0xff] %vm5297, %v5135
    %5346 = vst.msk [vmem:[#allocation2 + $0x180] sm:$0xff] %vm5297, %v5137
    %5347 = vst.msk [vmem:[#allocation2 + $0x188] sm:$0xff] %vm5297, %v5139
    %5348 = vst.msk [vmem:[#allocation2 + $0x190] sm:$0xff] %vm5297, %v5141
    %5349 = vst.msk [vmem:[#allocation2 + $0x198] sm:$0xff] %vm5297, %v5143
    %5350 = vst.msk [vmem:[#allocation2 + $0x1a0] sm:$0xff] %vm5297, %v5145
    %5351 = vst.msk [vmem:[#allocation2 + $0x1a8] sm:$0xff] %vm5297, %v5147
    %5352 = vst.msk [vmem:[#allocation2 + $0x1b0] sm:$0xff] %vm5297, %v5149
    %5353 = vst.msk [vmem:[#allocation2 + $0x1b8] sm:$0xff] %vm5297, %v5151
    %5354 = vst.msk [vmem:[#allocation2 + $0x1c0] sm:$0xff] %vm5297, %v5153
    %5355 = vst.msk [vmem:[#allocation2 + $0x1c8] sm:$0xff] %vm5297, %v5155
    %5356 = vst.msk [vmem:[#allocation2 + $0x1d0] sm:$0xff] %vm5297, %v5157
    %5357 = vst.msk [vmem:[#allocation2 + $0x1d8] sm:$0xff] %vm5297, %v5159
    %5358 = vst.msk [vmem:[#allocation2 + $0x1e0] sm:$0xff] %vm5297, %v5161
    %5359 = vst.msk [vmem:[#allocation2 + $0x1e8] sm:$0xff] %vm5297, %v5163
    %5360 = vst.msk [vmem:[#allocation2 + $0x1f0] sm:$0xff] %vm5297, %v5165
    %5361 = vst.msk [vmem:[#allocation2 + $0x1f8] sm:$0xff] %vm5297, %v5167
    %v5362 = vadd.f32 %v4268, %v3820
    %v5363 = vadd.f32 %v4269, %v3821
    %v5364 = vadd.f32 %v4270, %v3822
    %v5365 = vadd.f32 %v4271, %v3823
    %v5366 = vadd.f32 %v4272, %v3824
    %v5367 = vadd.f32 %v4273, %v3825
    %v5368 = vadd.f32 %v4274, %v3826
    %v5369 = vadd.f32 %v4275, %v3827
    %v5370 = vadd.f32 %v4276, %v3828
    %v5371 = vadd.f32 %v4277, %v3829
    %v5372 = vadd.f32 %v4278, %v3830
    %v5373 = vadd.f32 %v4279, %v3831
    %v5374 = vadd.f32 %v4280, %v3832
    %v5375 = vadd.f32 %v4281, %v3833
    %v5376 = vadd.f32 %v4282, %v3834
    %v5377 = vadd.f32 %v4283, %v3835
    %v5378 = vadd.f32 %v4284, %v3836
    %v5379 = vadd.f32 %v4285, %v3837
    %v5380 = vadd.f32 %v4286, %v3838
    %v5381 = vadd.f32 %v4287, %v3839
    %v5382 = vadd.f32 %v4288, %v3840
    %v5383 = vadd.f32 %v4289, %v3841
    %v5384 = vadd.f32 %v4290, %v3842
    %v5385 = vadd.f32 %v4291, %v3843
    %v5386 = vadd.f32 %v4292, %v3844
    %v5387 = vadd.f32 %v4293, %v3845
    %v5388 = vadd.f32 %v4294, %v3846
    %v5389 = vadd.f32 %v4295, %v3847
    %v5390 = vadd.f32 %v4296, %v3848
    %v5391 = vadd.f32 %v4297, %v3849
    %v5392 = vadd.f32 %v4298, %v3850
    %v5393 = vadd.f32 %v4299, %v3851
    %v5394 = vadd.f32 %v4300, %v3852
    %v5395 = vadd.f32 %v4301, %v3853
    %v5396 = vadd.f32 %v4302, %v3854
    %v5397 = vadd.f32 %v4303, %v3855
    %v5398 = vadd.f32 %v4304, %v3856
    %v5399 = vadd.f32 %v4305, %v3857
    %v5400 = vadd.f32 %v4306, %v3858
    %v5401 = vadd.f32 %v4307, %v3859
    %v5402 = vadd.f32 %v4308, %v3860
    %v5403 = vadd.f32 %v4309, %v3861
    %v5404 = vadd.f32 %v4310, %v3862
    %v5405 = vadd.f32 %v4311, %v3863
    %v5406 = vadd.f32 %v4312, %v3864
    %v5407 = vadd.f32 %v4313, %v3865
    %v5408 = vadd.f32 %v4314, %v3866
    %v5409 = vadd.f32 %v4315, %v3867
    %v5410 = vadd.f32 %v4316, %v3868
    %v5411 = vadd.f32 %v4317, %v3869
    %v5412 = vadd.f32 %v4318, %v3870
    %v5413 = vadd.f32 %v4319, %v3871
    %v5414 = vadd.f32 %v4320, %v3872
    %v5415 = vadd.f32 %v4321, %v3873
    %v5416 = vadd.f32 %v4322, %v3874
    %v5417 = vadd.f32 %v4323, %v3875
    %v5418 = vadd.f32 %v4324, %v3876
    %v5419 = vadd.f32 %v4325, %v3877
    %v5420 = vadd.f32 %v4326, %v3878
    %v5421 = vadd.f32 %v4327, %v3879
    %v5422 = vadd.f32 %v4328, %v3880
    %v5423 = vadd.f32 %v4329, %v3881
    %v5424 = vadd.f32 %v4330, %v3882
    %v5425 = vadd.f32 %v4331, %v3883
    %5490 = vrot.lane.b32.xlu0 %v5362, 6
    %v5491 = vpop.permute.xlu0 %5490
    %5492 = vrot.lane.b32.xlu0 %v5363, 6
    %v5493 = vpop.permute.xlu0 %5492
    %5494 = vrot.lane.b32.xlu0 %v5364, 6
    %v5495 = vpop.permute.xlu0 %5494
    %5496 = vrot.lane.b32.xlu0 %v5365, 6
    %v5497 = vpop.permute.xlu0 %5496
    %5498 = vrot.lane.b32.xlu0 %v5366, 6
    %v5499 = vpop.permute.xlu0 %5498
    %5500 = vrot.lane.b32.xlu0 %v5367, 6
    %v5501 = vpop.permute.xlu0 %5500
    %5502 = vrot.lane.b32.xlu0 %v5368, 6
    %v5503 = vpop.permute.xlu0 %5502
    %5504 = vrot.lane.b32.xlu0 %v5369, 6
    %v5505 = vpop.permute.xlu0 %5504
    %5506 = vrot.lane.b32.xlu0 %v5370, 6
    %v5507 = vpop.permute.xlu0 %5506
    %5508 = vrot.lane.b32.xlu0 %v5371, 6
    %v5509 = vpop.permute.xlu0 %5508
    %5510 = vrot.lane.b32.xlu0 %v5372, 6
    %v5511 = vpop.permute.xlu0 %5510
    %5512 = vrot.lane.b32.xlu0 %v5373, 6
    %v5513 = vpop.permute.xlu0 %5512
    %5514 = vrot.lane.b32.xlu0 %v5374, 6
    %v5515 = vpop.permute.xlu0 %5514
    %5516 = vrot.lane.b32.xlu0 %v5375, 6
    %v5517 = vpop.permute.xlu0 %5516
    %5518 = vrot.lane.b32.xlu0 %v5376, 6
    %v5519 = vpop.permute.xlu0 %5518
    %5520 = vrot.lane.b32.xlu0 %v5377, 6
    %v5521 = vpop.permute.xlu0 %5520
    %5522 = vrot.lane.b32.xlu0 %v5378, 6
    %v5523 = vpop.permute.xlu0 %5522
    %5524 = vrot.lane.b32.xlu0 %v5379, 6
    %v5525 = vpop.permute.xlu0 %5524
    %5526 = vrot.lane.b32.xlu0 %v5380, 6
    %v5527 = vpop.permute.xlu0 %5526
    %5528 = vrot.lane.b32.xlu0 %v5381, 6
    %v5529 = vpop.permute.xlu0 %5528
    %5530 = vrot.lane.b32.xlu0 %v5382, 6
    %v5531 = vpop.permute.xlu0 %5530
    %5532 = vrot.lane.b32.xlu0 %v5383, 6
    %v5533 = vpop.permute.xlu0 %5532
    %5534 = vrot.lane.b32.xlu0 %v5384, 6
    %v5535 = vpop.permute.xlu0 %5534
    %5536 = vrot.lane.b32.xlu0 %v5385, 6
    %v5537 = vpop.permute.xlu0 %5536
    %5538 = vrot.lane.b32.xlu0 %v5386, 6
    %v5539 = vpop.permute.xlu0 %5538
    %5540 = vrot.lane.b32.xlu0 %v5387, 6
    %v5541 = vpop.permute.xlu0 %5540
    %5542 = vrot.lane.b32.xlu0 %v5388, 6
    %v5543 = vpop.permute.xlu0 %5542
    %5544 = vrot.lane.b32.xlu0 %v5389, 6
    %v5545 = vpop.permute.xlu0 %5544
    %5546 = vrot.lane.b32.xlu0 %v5390, 6
    %v5547 = vpop.permute.xlu0 %5546
    %5548 = vrot.lane.b32.xlu0 %v5391, 6
    %v5549 = vpop.permute.xlu0 %5548
    %5550 = vrot.lane.b32.xlu0 %v5392, 6
    %v5551 = vpop.permute.xlu0 %5550
    %5552 = vrot.lane.b32.xlu0 %v5393, 6
    %v5553 = vpop.permute.xlu0 %5552
    %5554 = vrot.lane.b32.xlu0 %v5394, 6
    %v5555 = vpop.permute.xlu0 %5554
    %5556 = vrot.lane.b32.xlu0 %v5395, 6
    %v5557 = vpop.permute.xlu0 %5556
    %5558 = vrot.lane.b32.xlu0 %v5396, 6
    %v5559 = vpop.permute.xlu0 %5558
    %5560 = vrot.lane.b32.xlu0 %v5397, 6
    %v5561 = vpop.permute.xlu0 %5560
    %5562 = vrot.lane.b32.xlu0 %v5398, 6
    %v5563 = vpop.permute.xlu0 %5562
    %5564 = vrot.lane.b32.xlu0 %v5399, 6
    %v5565 = vpop.permute.xlu0 %5564
    %5566 = vrot.lane.b32.xlu0 %v5400, 6
    %v5567 = vpop.permute.xlu0 %5566
    %5568 = vrot.lane.b32.xlu0 %v5401, 6
    %v5569 = vpop.permute.xlu0 %5568
    %5570 = vrot.lane.b32.xlu0 %v5402, 6
    %v5571 = vpop.permute.xlu0 %5570
    %5572 = vrot.lane.b32.xlu0 %v5403, 6
    %v5573 = vpop.permute.xlu0 %5572
    %5574 = vrot.lane.b32.xlu0 %v5404, 6
    %v5575 = vpop.permute.xlu0 %5574
    %5576 = vrot.lane.b32.xlu0 %v5405, 6
    %v5577 = vpop.permute.xlu0 %5576
    %5578 = vrot.lane.b32.xlu0 %v5406, 6
    %v5579 = vpop.permute.xlu0 %5578
    %5580 = vrot.lane.b32.xlu0 %v5407, 6
    %v5581 = vpop.permute.xlu0 %5580
    %5582 = vrot.lane.b32.xlu0 %v5408, 6
    %v5583 = vpop.permute.xlu0 %5582
    %5584 = vrot.lane.b32.xlu0 %v5409, 6
    %v5585 = vpop.permute.xlu0 %5584
    %5586 = vrot.lane.b32.xlu0 %v5410, 6
    %v5587 = vpop.permute.xlu0 %5586
    %5588 = vrot.lane.b32.xlu0 %v5411, 6
    %v5589 = vpop.permute.xlu0 %5588
    %5590 = vrot.lane.b32.xlu0 %v5412, 6
    %v5591 = vpop.permute.xlu0 %5590
    %5592 = vrot.lane.b32.xlu0 %v5413, 6
    %v5593 = vpop.permute.xlu0 %5592
    %5594 = vrot.lane.b32.xlu0 %v5414, 6
    %v5595 = vpop.permute.xlu0 %5594
    %5596 = vrot.lane.b32.xlu0 %v5415, 6
    %v5597 = vpop.permute.xlu0 %5596
    %5598 = vrot.lane.b32.xlu0 %v5416, 6
    %v5599 = vpop.permute.xlu0 %5598
    %5600 = vrot.lane.b32.xlu0 %v5417, 6
    %v5601 = vpop.permute.xlu0 %5600
    %5602 = vrot.lane.b32.xlu0 %v5418, 6
    %v5603 = vpop.permute.xlu0 %5602
    %5604 = vrot.lane.b32.xlu0 %v5419, 6
    %v5605 = vpop.permute.xlu0 %5604
    %5606 = vrot.lane.b32.xlu0 %v5420, 6
    %v5607 = vpop.permute.xlu0 %5606
    %5608 = vrot.lane.b32.xlu0 %v5421, 6
    %v5609 = vpop.permute.xlu0 %5608
    %5610 = vrot.lane.b32.xlu0 %v5422, 6
    %v5611 = vpop.permute.xlu0 %5610
    %5612 = vrot.lane.b32.xlu0 %v5423, 6
    %v5613 = vpop.permute.xlu0 %5612
    %5614 = vrot.lane.b32.xlu0 %v5424, 6
    %v5615 = vpop.permute.xlu0 %5614
    %5616 = vrot.lane.b32.xlu0 %v5425, 6
    %v5617 = vpop.permute.xlu0 %5616
    %vm5682 = vcmask 56368
    %5683 = vst.msk [vmem:[#allocation2] sm:$0xff] %vm5682, %v5491
    %5684 = vst.msk [vmem:[#allocation2 + $0x8] sm:$0xff] %vm5682, %v5493
    %5685 = vst.msk [vmem:[#allocation2 + $0x10] sm:$0xff] %vm5682, %v5495
    %5686 = vst.msk [vmem:[#allocation2 + $0x18] sm:$0xff] %vm5682, %v5497
    %5687 = vst.msk [vmem:[#allocation2 + $0x20] sm:$0xff] %vm5682, %v5499
    %5688 = vst.msk [vmem:[#allocation2 + $0x28] sm:$0xff] %vm5682, %v5501
    %5689 = vst.msk [vmem:[#allocation2 + $0x30] sm:$0xff] %vm5682, %v5503
    %5690 = vst.msk [vmem:[#allocation2 + $0x38] sm:$0xff] %vm5682, %v5505
    %5691 = vst.msk [vmem:[#allocation2 + $0x40] sm:$0xff] %vm5682, %v5507
    %5692 = vst.msk [vmem:[#allocation2 + $0x48] sm:$0xff] %vm5682, %v5509
    %5693 = vst.msk [vmem:[#allocation2 + $0x50] sm:$0xff] %vm5682, %v5511
    %5694 = vst.msk [vmem:[#allocation2 + $0x58] sm:$0xff] %vm5682, %v5513
    %5695 = vst.msk [vmem:[#allocation2 + $0x60] sm:$0xff] %vm5682, %v5515
    %5696 = vst.msk [vmem:[#allocation2 + $0x68] sm:$0xff] %vm5682, %v5517
    %5697 = vst.msk [vmem:[#allocation2 + $0x70] sm:$0xff] %vm5682, %v5519
    %5698 = vst.msk [vmem:[#allocation2 + $0x78] sm:$0xff] %vm5682, %v5521
    %5699 = vst.msk [vmem:[#allocation2 + $0x80] sm:$0xff] %vm5682, %v5523
    %5700 = vst.msk [vmem:[#allocation2 + $0x88] sm:$0xff] %vm5682, %v5525
    %5701 = vst.msk [vmem:[#allocation2 + $0x90] sm:$0xff] %vm5682, %v5527
    %5702 = vst.msk [vmem:[#allocation2 + $0x98] sm:$0xff] %vm5682, %v5529
    %5703 = vst.msk [vmem:[#allocation2 + $0xa0] sm:$0xff] %vm5682, %v5531
    %5704 = vst.msk [vmem:[#allocation2 + $0xa8] sm:$0xff] %vm5682, %v5533
    %5705 = vst.msk [vmem:[#allocation2 + $0xb0] sm:$0xff] %vm5682, %v5535
    %5706 = vst.msk [vmem:[#allocation2 + $0xb8] sm:$0xff] %vm5682, %v5537
    %5707 = vst.msk [vmem:[#allocation2 + $0xc0] sm:$0xff] %vm5682, %v5539
    %5708 = vst.msk [vmem:[#allocation2 + $0xc8] sm:$0xff] %vm5682, %v5541
    %5709 = vst.msk [vmem:[#allocation2 + $0xd0] sm:$0xff] %vm5682, %v5543
    %5710 = vst.msk [vmem:[#allocation2 + $0xd8] sm:$0xff] %vm5682, %v5545
    %5711 = vst.msk [vmem:[#allocation2 + $0xe0] sm:$0xff] %vm5682, %v5547
    %5712 = vst.msk [vmem:[#allocation2 + $0xe8] sm:$0xff] %vm5682, %v5549
    %5713 = vst.msk [vmem:[#allocation2 + $0xf0] sm:$0xff] %vm5682, %v5551
    %5714 = vst.msk [vmem:[#allocation2 + $0xf8] sm:$0xff] %vm5682, %v5553
    %5715 = vst.msk [vmem:[#allocation2 + $0x100] sm:$0xff] %vm5682, %v5555
    %5716 = vst.msk [vmem:[#allocation2 + $0x108] sm:$0xff] %vm5682, %v5557
    %5717 = vst.msk [vmem:[#allocation2 + $0x110] sm:$0xff] %vm5682, %v5559
    %5718 = vst.msk [vmem:[#allocation2 + $0x118] sm:$0xff] %vm5682, %v5561
    %5719 = vst.msk [vmem:[#allocation2 + $0x120] sm:$0xff] %vm5682, %v5563
    %5720 = vst.msk [vmem:[#allocation2 + $0x128] sm:$0xff] %vm5682, %v5565
    %5721 = vst.msk [vmem:[#allocation2 + $0x130] sm:$0xff] %vm5682, %v5567
    %5722 = vst.msk [vmem:[#allocation2 + $0x138] sm:$0xff] %vm5682, %v5569
    %5723 = vst.msk [vmem:[#allocation2 + $0x140] sm:$0xff] %vm5682, %v5571
    %5724 = vst.msk [vmem:[#allocation2 + $0x148] sm:$0xff] %vm5682, %v5573
    %5725 = vst.msk [vmem:[#allocation2 + $0x150] sm:$0xff] %vm5682, %v5575
    %5726 = vst.msk [vmem:[#allocation2 + $0x158] sm:$0xff] %vm5682, %v5577
    %5727 = vst.msk [vmem:[#allocation2 + $0x160] sm:$0xff] %vm5682, %v5579
    %5728 = vst.msk [vmem:[#allocation2 + $0x168] sm:$0xff] %vm5682, %v5581
    %5729 = vst.msk [vmem:[#allocation2 + $0x170] sm:$0xff] %vm5682, %v5583
    %5730 = vst.msk [vmem:[#allocation2 + $0x178] sm:$0xff] %vm5682, %v5585
    %5731 = vst.msk [vmem:[#allocation2 + $0x180] sm:$0xff] %vm5682, %v5587
    %5732 = vst.msk [vmem:[#allocation2 + $0x188] sm:$0xff] %vm5682, %v5589
    %5733 = vst.msk [vmem:[#allocation2 + $0x190] sm:$0xff] %vm5682, %v5591
    %5734 = vst.msk [vmem:[#allocation2 + $0x198] sm:$0xff] %vm5682, %v5593
    %5735 = vst.msk [vmem:[#allocation2 + $0x1a0] sm:$0xff] %vm5682, %v5595
    %5736 = vst.msk [vmem:[#allocation2 + $0x1a8] sm:$0xff] %vm5682, %v5597
    %5737 = vst.msk [vmem:[#allocation2 + $0x1b0] sm:$0xff] %vm5682, %v5599
    %5738 = vst.msk [vmem:[#allocation2 + $0x1b8] sm:$0xff] %vm5682, %v5601
    %5739 = vst.msk [vmem:[#allocation2 + $0x1c0] sm:$0xff] %vm5682, %v5603
    %5740 = vst.msk [vmem:[#allocation2 + $0x1c8] sm:$0xff] %vm5682, %v5605
    %5741 = vst.msk [vmem:[#allocation2 + $0x1d0] sm:$0xff] %vm5682, %v5607
    %5742 = vst.msk [vmem:[#allocation2 + $0x1d8] sm:$0xff] %vm5682, %v5609
    %5743 = vst.msk [vmem:[#allocation2 + $0x1e0] sm:$0xff] %vm5682, %v5611
    %5744 = vst.msk [vmem:[#allocation2 + $0x1e8] sm:$0xff] %vm5682, %v5613
    %5745 = vst.msk [vmem:[#allocation2 + $0x1f0] sm:$0xff] %vm5682, %v5615
    %5746 = vst.msk [vmem:[#allocation2 + $0x1f8] sm:$0xff] %vm5682, %v5617
    %vm5747 = vcmask 64568
    %5748 = vst.msk [vmem:[#allocation2] sm:$0xff] %vm5747, %v5491
    %5749 = vst.msk [vmem:[#allocation2 + $0x8] sm:$0xff] %vm5747, %v5493
    %5750 = vst.msk [vmem:[#allocation2 + $0x10] sm:$0xff] %vm5747, %v5495
    %5751 = vst.msk [vmem:[#allocation2 + $0x18] sm:$0xff] %vm5747, %v5497
    %5752 = vst.msk [vmem:[#allocation2 + $0x20] sm:$0xff] %vm5747, %v5499
    %5753 = vst.msk [vmem:[#allocation2 + $0x28] sm:$0xff] %vm5747, %v5501
    %5754 = vst.msk [vmem:[#allocation2 + $0x30] sm:$0xff] %vm5747, %v5503
    %5755 = vst.msk [vmem:[#allocation2 + $0x38] sm:$0xff] %vm5747, %v5505
    %5756 = vst.msk [vmem:[#allocation2 + $0x40] sm:$0xff] %vm5747, %v5507
    %5757 = vst.msk [vmem:[#allocation2 + $0x48] sm:$0xff] %vm5747, %v5509
    %5758 = vst.msk [vmem:[#allocation2 + $0x50] sm:$0xff] %vm5747, %v5511
    %5759 = vst.msk [vmem:[#allocation2 + $0x58] sm:$0xff] %vm5747, %v5513
    %5760 = vst.msk [vmem:[#allocation2 + $0x60] sm:$0xff] %vm5747, %v5515
    %5761 = vst.msk [vmem:[#allocation2 + $0x68] sm:$0xff] %vm5747, %v5517
    %5762 = vst.msk [vmem:[#allocation2 + $0x70] sm:$0xff] %vm5747, %v5519
    %5763 = vst.msk [vmem:[#allocation2 + $0x78] sm:$0xff] %vm5747, %v5521
    %5764 = vst.msk [vmem:[#allocation2 + $0x80] sm:$0xff] %vm5747, %v5523
    %5765 = vst.msk [vmem:[#allocation2 + $0x88] sm:$0xff] %vm5747, %v5525
    %5766 = vst.msk [vmem:[#allocation2 + $0x90] sm:$0xff] %vm5747, %v5527
    %5767 = vst.msk [vmem:[#allocation2 + $0x98] sm:$0xff] %vm5747, %v5529
    %5768 = vst.msk [vmem:[#allocation2 + $0xa0] sm:$0xff] %vm5747, %v5531
    %5769 = vst.msk [vmem:[#allocation2 + $0xa8] sm:$0xff] %vm5747, %v5533
    %5770 = vst.msk [vmem:[#allocation2 + $0xb0] sm:$0xff] %vm5747, %v5535
    %5771 = vst.msk [vmem:[#allocation2 + $0xb8] sm:$0xff] %vm5747, %v5537
    %5772 = vst.msk [vmem:[#allocation2 + $0xc0] sm:$0xff] %vm5747, %v5539
    %5773 = vst.msk [vmem:[#allocation2 + $0xc8] sm:$0xff] %vm5747, %v5541
    %5774 = vst.msk [vmem:[#allocation2 + $0xd0] sm:$0xff] %vm5747, %v5543
    %5775 = vst.msk [vmem:[#allocation2 + $0xd8] sm:$0xff] %vm5747, %v5545
    %5776 = vst.msk [vmem:[#allocation2 + $0xe0] sm:$0xff] %vm5747, %v5547
    %5777 = vst.msk [vmem:[#allocation2 + $0xe8] sm:$0xff] %vm5747, %v5549
    %5778 = vst.msk [vmem:[#allocation2 + $0xf0] sm:$0xff] %vm5747, %v5551
    %5779 = vst.msk [vmem:[#allocation2 + $0xf8] sm:$0xff] %vm5747, %v5553
    %5780 = vst.msk [vmem:[#allocation2 + $0x100] sm:$0xff] %vm5747, %v5555
    %5781 = vst.msk [vmem:[#allocation2 + $0x108] sm:$0xff] %vm5747, %v5557
    %5782 = vst.msk [vmem:[#allocation2 + $0x110] sm:$0xff] %vm5747, %v5559
    %5783 = vst.msk [vmem:[#allocation2 + $0x118] sm:$0xff] %vm5747, %v5561
    %5784 = vst.msk [vmem:[#allocation2 + $0x120] sm:$0xff] %vm5747, %v5563
    %5785 = vst.msk [vmem:[#allocation2 + $0x128] sm:$0xff] %vm5747, %v5565
    %5786 = vst.msk [vmem:[#allocation2 + $0x130] sm:$0xff] %vm5747, %v5567
    %5787 = vst.msk [vmem:[#allocation2 + $0x138] sm:$0xff] %vm5747, %v5569
    %5788 = vst.msk [vmem:[#allocation2 + $0x140] sm:$0xff] %vm5747, %v5571
    %5789 = vst.msk [vmem:[#allocation2 + $0x148] sm:$0xff] %vm5747, %v5573
    %5790 = vst.msk [vmem:[#allocation2 + $0x150] sm:$0xff] %vm5747, %v5575
    %5791 = vst.msk [vmem:[#allocation2 + $0x158] sm:$0xff] %vm5747, %v5577
    %5792 = vst.msk [vmem:[#allocation2 + $0x160] sm:$0xff] %vm5747, %v5579
    %5793 = vst.msk [vmem:[#allocation2 + $0x168] sm:$0xff] %vm5747, %v5581
    %5794 = vst.msk [vmem:[#allocation2 + $0x170] sm:$0xff] %vm5747, %v5583
    %5795 = vst.msk [vmem:[#allocation2 + $0x178] sm:$0xff] %vm5747, %v5585
    %5796 = vst.msk [vmem:[#allocation2 + $0x180] sm:$0xff] %vm5747, %v5587
    %5797 = vst.msk [vmem:[#allocation2 + $0x188] sm:$0xff] %vm5747, %v5589
    %5798 = vst.msk [vmem:[#allocation2 + $0x190] sm:$0xff] %vm5747, %v5591
    %5799 = vst.msk [vmem:[#allocation2 + $0x198] sm:$0xff] %vm5747, %v5593
    %5800 = vst.msk [vmem:[#allocation2 + $0x1a0] sm:$0xff] %vm5747, %v5595
    %5801 = vst.msk [vmem:[#allocation2 + $0x1a8] sm:$0xff] %vm5747, %v5597
    %5802 = vst.msk [vmem:[#allocation2 + $0x1b0] sm:$0xff] %vm5747, %v5599
    %5803 = vst.msk [vmem:[#allocation2 + $0x1b8] sm:$0xff] %vm5747, %v5601
    %5804 = vst.msk [vmem:[#allocation2 + $0x1c0] sm:$0xff] %vm5747, %v5603
    %5805 = vst.msk [vmem:[#allocation2 + $0x1c8] sm:$0xff] %vm5747, %v5605
    %5806 = vst.msk [vmem:[#allocation2 + $0x1d0] sm:$0xff] %vm5747, %v5607
    %5807 = vst.msk [vmem:[#allocation2 + $0x1d8] sm:$0xff] %vm5747, %v5609
    %5808 = vst.msk [vmem:[#allocation2 + $0x1e0] sm:$0xff] %vm5747, %v5611
    %5809 = vst.msk [vmem:[#allocation2 + $0x1e8] sm:$0xff] %vm5747, %v5613
    %5810 = vst.msk [vmem:[#allocation2 + $0x1f0] sm:$0xff] %vm5747, %v5615
    %5811 = vst.msk [vmem:[#allocation2 + $0x1f8] sm:$0xff] %vm5747, %v5617
    %vm5812 = vcmask 72768
    %5813 = vst.msk [vmem:[#allocation2] sm:$0xff] %vm5812, %v2541
    %5814 = vst.msk [vmem:[#allocation2 + $0x8] sm:$0xff] %vm5812, %v2543
    %5815 = vst.msk [vmem:[#allocation2 + $0x10] sm:$0xff] %vm5812, %v2545
    %5816 = vst.msk [vmem:[#allocation2 + $0x18] sm:$0xff] %vm5812, %v2547
    %5817 = vst.msk [vmem:[#allocation2 + $0x20] sm:$0xff] %vm5812, %v2549
    %5818 = vst.msk [vmem:[#allocation2 + $0x28] sm:$0xff] %vm5812, %v2551
    %5819 = vst.msk [vmem:[#allocation2 + $0x30] sm:$0xff] %vm5812, %v2553
    %5820 = vst.msk [vmem:[#allocation2 + $0x38] sm:$0xff] %vm5812, %v2555
    %5821 = vst.msk [vmem:[#allocation2 + $0x40] sm:$0xff] %vm5812, %v2557
    %5822 = vst.msk [vmem:[#allocation2 + $0x48] sm:$0xff] %vm5812, %v2559
    %5823 = vst.msk [vmem:[#allocation2 + $0x50] sm:$0xff] %vm5812, %v2561
    %5824 = vst.msk [vmem:[#allocation2 + $0x58] sm:$0xff] %vm5812, %v2563
    %5825 = vst.msk [vmem:[#allocation2 + $0x60] sm:$0xff] %vm5812, %v2565
    %5826 = vst.msk [vmem:[#allocation2 + $0x68] sm:$0xff] %vm5812, %v2567
    %5827 = vst.msk [vmem:[#allocation2 + $0x70] sm:$0xff] %vm5812, %v2569
    %5828 = vst.msk [vmem:[#allocation2 + $0x78] sm:$0xff] %vm5812, %v2571
    %5829 = vst.msk [vmem:[#allocation2 + $0x80] sm:$0xff] %vm5812, %v2573
    %5830 = vst.msk [vmem:[#allocation2 + $0x88] sm:$0xff] %vm5812, %v2575
    %5831 = vst.msk [vmem:[#allocation2 + $0x90] sm:$0xff] %vm5812, %v2577
    %5832 = vst.msk [vmem:[#allocation2 + $0x98] sm:$0xff] %vm5812, %v2579
    %5833 = vst.msk [vmem:[#allocation2 + $0xa0] sm:$0xff] %vm5812, %v2581
    %5834 = vst.msk [vmem:[#allocation2 + $0xa8] sm:$0xff] %vm5812, %v2583
    %5835 = vst.msk [vmem:[#allocation2 + $0xb0] sm:$0xff] %vm5812, %v2585
    %5836 = vst.msk [vmem:[#allocation2 + $0xb8] sm:$0xff] %vm5812, %v2587
    %5837 = vst.msk [vmem:[#allocation2 + $0xc0] sm:$0xff] %vm5812, %v2589
    %5838 = vst.msk [vmem:[#allocation2 + $0xc8] sm:$0xff] %vm5812, %v2591
    %5839 = vst.msk [vmem:[#allocation2 + $0xd0] sm:$0xff] %vm5812, %v2593
    %5840 = vst.msk [vmem:[#allocation2 + $0xd8] sm:$0xff] %vm5812, %v2595
    %5841 = vst.msk [vmem:[#allocation2 + $0xe0] sm:$0xff] %vm5812, %v2597
    %5842 = vst.msk [vmem:[#allocation2 + $0xe8] sm:$0xff] %vm5812, %v2599
    %5843 = vst.msk [vmem:[#allocation2 + $0xf0] sm:$0xff] %vm5812, %v2601
    %5844 = vst.msk [vmem:[#allocation2 + $0xf8] sm:$0xff] %vm5812, %v2603
    %5845 = vst.msk [vmem:[#allocation2 + $0x100] sm:$0xff] %vm5812, %v2605
    %5846 = vst.msk [vmem:[#allocation2 + $0x108] sm:$0xff] %vm5812, %v2607
    %5847 = vst.msk [vmem:[#allocation2 + $0x110] sm:$0xff] %vm5812, %v2609
    %5848 = vst.msk [vmem:[#allocation2 + $0x118] sm:$0xff] %vm5812, %v2611
    %5849 = vst.msk [vmem:[#allocation2 + $0x120] sm:$0xff] %vm5812, %v2613
    %5850 = vst.msk [vmem:[#allocation2 + $0x128] sm:$0xff] %vm5812, %v2615
    %5851 = vst.msk [vmem:[#allocation2 + $0x130] sm:$0xff] %vm5812, %v2617
    %5852 = vst.msk [vmem:[#allocation2 + $0x138] sm:$0xff] %vm5812, %v2619
    %5853 = vst.msk [vmem:[#allocation2 + $0x140] sm:$0xff] %vm5812, %v2621
    %5854 = vst.msk [vmem:[#allocation2 + $0x148] sm:$0xff] %vm5812, %v2623
    %5855 = vst.msk [vmem:[#allocation2 + $0x150] sm:$0xff] %vm5812, %v2625
    %5856 = vst.msk [vmem:[#allocation2 + $0x158] sm:$0xff] %vm5812, %v2627
    %5857 = vst.msk [vmem:[#allocation2 + $0x160] sm:$0xff] %vm5812, %v2629
    %5858 = vst.msk [vmem:[#allocation2 + $0x168] sm:$0xff] %vm5812, %v2631
    %5859 = vst.msk [vmem:[#allocation2 + $0x170] sm:$0xff] %vm5812, %v2633
    %5860 = vst.msk [vmem:[#allocation2 + $0x178] sm:$0xff] %vm5812, %v2635
    %5861 = vst.msk [vmem:[#allocation2 + $0x180] sm:$0xff] %vm5812, %v2637
    %5862 = vst.msk [vmem:[#allocation2 + $0x188] sm:$0xff] %vm5812, %v2639
    %5863 = vst.msk [vmem:[#allocation2 + $0x190] sm:$0xff] %vm5812, %v2641
    %5864 = vst.msk [vmem:[#allocation2 + $0x198] sm:$0xff] %vm5812, %v2643
    %5865 = vst.msk [vmem:[#allocation2 + $0x1a0] sm:$0xff] %vm5812, %v2645
    %5866 = vst.msk [vmem:[#allocation2 + $0x1a8] sm:$0xff] %vm5812, %v2647
    %5867 = vst.msk [vmem:[#allocation2 + $0x1b0] sm:$0xff] %vm5812, %v2649
    %5868 = vst.msk [vmem:[#allocation2 + $0x1b8] sm:$0xff] %vm5812, %v2651
    %5869 = vst.msk [vmem:[#allocation2 + $0x1c0] sm:$0xff] %vm5812, %v2653
    %5870 = vst.msk [vmem:[#allocation2 + $0x1c8] sm:$0xff] %vm5812, %v2655
    %5871 = vst.msk [vmem:[#allocation2 + $0x1d0] sm:$0xff] %vm5812, %v2657
    %5872 = vst.msk [vmem:[#allocation2 + $0x1d8] sm:$0xff] %vm5812, %v2659
    %5873 = vst.msk [vmem:[#allocation2 + $0x1e0] sm:$0xff] %vm5812, %v2661
    %5874 = vst.msk [vmem:[#allocation2 + $0x1e8] sm:$0xff] %vm5812, %v2663
    %5875 = vst.msk [vmem:[#allocation2 + $0x1f0] sm:$0xff] %vm5812, %v2665
    %5876 = vst.msk [vmem:[#allocation2 + $0x1f8] sm:$0xff] %vm5812, %v2667
    %vm5877 = vcmask 80968
    %5878 = vst.msk [vmem:[#allocation2] sm:$0xff] %vm5877, %v3756
    %5879 = vst.msk [vmem:[#allocation2 + $0x8] sm:$0xff] %vm5877, %v3757
    %5880 = vst.msk [vmem:[#allocation2 + $0x10] sm:$0xff] %vm5877, %v3758
    %5881 = vst.msk [vmem:[#allocation2 + $0x18] sm:$0xff] %vm5877, %v3759
    %5882 = vst.msk [vmem:[#allocation2 + $0x20] sm:$0xff] %vm5877, %v3760
    %5883 = vst.msk [vmem:[#allocation2 + $0x28] sm:$0xff] %vm5877, %v3761
    %5884 = vst.msk [vmem:[#allocation2 + $0x30] sm:$0xff] %vm5877, %v3762
    %5885 = vst.msk [vmem:[#allocation2 + $0x38] sm:$0xff] %vm5877, %v3763
    %5886 = vst.msk [vmem:[#allocation2 + $0x40] sm:$0xff] %vm5877, %v3764
    %5887 = vst.msk [vmem:[#allocation2 + $0x48] sm:$0xff] %vm5877, %v3765
    %5888 = vst.msk [vmem:[#allocation2 + $0x50] sm:$0xff] %vm5877, %v3766
    %5889 = vst.msk [vmem:[#allocation2 + $0x58] sm:$0xff] %vm5877, %v3767
    %5890 = vst.msk [vmem:[#allocation2 + $0x60] sm:$0xff] %vm5877, %v3768
    %5891 = vst.msk [vmem:[#allocation2 + $0x68] sm:$0xff] %vm5877, %v3769
    %5892 = vst.msk [vmem:[#allocation2 + $0x70] sm:$0xff] %vm5877, %v3770
    %5893 = vst.msk [vmem:[#allocation2 + $0x78] sm:$0xff] %vm5877, %v3771
    %5894 = vst.msk [vmem:[#allocation2 + $0x80] sm:$0xff] %vm5877, %v3772
    %5895 = vst.msk [vmem:[#allocation2 + $0x88] sm:$0xff] %vm5877, %v3773
    %5896 = vst.msk [vmem:[#allocation2 + $0x90] sm:$0xff] %vm5877, %v3774
    %5897 = vst.msk [vmem:[#allocation2 + $0x98] sm:$0xff] %vm5877, %v3775
    %5898 = vst.msk [vmem:[#allocation2 + $0xa0] sm:$0xff] %vm5877, %v3776
    %5899 = vst.msk [vmem:[#allocation2 + $0xa8] sm:$0xff] %vm5877, %v3777
    %5900 = vst.msk [vmem:[#allocation2 + $0xb0] sm:$0xff] %vm5877, %v3778
    %5901 = vst.msk [vmem:[#allocation2 + $0xb8] sm:$0xff] %vm5877, %v3779
    %5902 = vst.msk [vmem:[#allocation2 + $0xc0] sm:$0xff] %vm5877, %v3780
    %5903 = vst.msk [vmem:[#allocation2 + $0xc8] sm:$0xff] %vm5877, %v3781
    %5904 = vst.msk [vmem:[#allocation2 + $0xd0] sm:$0xff] %vm5877, %v3782
    %5905 = vst.msk [vmem:[#allocation2 + $0xd8] sm:$0xff] %vm5877, %v3783
    %5906 = vst.msk [vmem:[#allocation2 + $0xe0] sm:$0xff] %vm5877, %v3784
    %5907 = vst.msk [vmem:[#allocation2 + $0xe8] sm:$0xff] %vm5877, %v3785
    %5908 = vst.msk [vmem:[#allocation2 + $0xf0] sm:$0xff] %vm5877, %v3786
    %5909 = vst.msk [vmem:[#allocation2 + $0xf8] sm:$0xff] %vm5877, %v3787
    %5910 = vst.msk [vmem:[#allocation2 + $0x100] sm:$0xff] %vm5877, %v3788
    %5911 = vst.msk [vmem:[#allocation2 + $0x108] sm:$0xff] %vm5877, %v3789
    %5912 = vst.msk [vmem:[#allocation2 + $0x110] sm:$0xff] %vm5877, %v3790
    %5913 = vst.msk [vmem:[#allocation2 + $0x118] sm:$0xff] %vm5877, %v3791
    %5914 = vst.msk [vmem:[#allocation2 + $0x120] sm:$0xff] %vm5877, %v3792
    %5915 = vst.msk [vmem:[#allocation2 + $0x128] sm:$0xff] %vm5877, %v3793
    %5916 = vst.msk [vmem:[#allocation2 + $0x130] sm:$0xff] %vm5877, %v3794
    %5917 = vst.msk [vmem:[#allocation2 + $0x138] sm:$0xff] %vm5877, %v3795
    %5918 = vst.msk [vmem:[#allocation2 + $0x140] sm:$0xff] %vm5877, %v3796
    %5919 = vst.msk [vmem:[#allocation2 + $0x148] sm:$0xff] %vm5877, %v3797
    %5920 = vst.msk [vmem:[#allocation2 + $0x150] sm:$0xff] %vm5877, %v3798
    %5921 = vst.msk [vmem:[#allocation2 + $0x158] sm:$0xff] %vm5877, %v3799
    %5922 = vst.msk [vmem:[#allocation2 + $0x160] sm:$0xff] %vm5877, %v3800
    %5923 = vst.msk [vmem:[#allocation2 + $0x168] sm:$0xff] %vm5877, %v3801
    %5924 = vst.msk [vmem:[#allocation2 + $0x170] sm:$0xff] %vm5877, %v3802
    %5925 = vst.msk [vmem:[#allocation2 + $0x178] sm:$0xff] %vm5877, %v3803
    %5926 = vst.msk [vmem:[#allocation2 + $0x180] sm:$0xff] %vm5877, %v3804
    %5927 = vst.msk [vmem:[#allocation2 + $0x188] sm:$0xff] %vm5877, %v3805
    %5928 = vst.msk [vmem:[#allocation2 + $0x190] sm:$0xff] %vm5877, %v3806
    %5929 = vst.msk [vmem:[#allocation2 + $0x198] sm:$0xff] %vm5877, %v3807
    %5930 = vst.msk [vmem:[#allocation2 + $0x1a0] sm:$0xff] %vm5877, %v3808
    %5931 = vst.msk [vmem:[#allocation2 + $0x1a8] sm:$0xff] %vm5877, %v3809
    %5932 = vst.msk [vmem:[#allocation2 + $0x1b0] sm:$0xff] %vm5877, %v3810
    %5933 = vst.msk [vmem:[#allocation2 + $0x1b8] sm:$0xff] %vm5877, %v3811
    %5934 = vst.msk [vmem:[#allocation2 + $0x1c0] sm:$0xff] %vm5877, %v3812
    %5935 = vst.msk [vmem:[#allocation2 + $0x1c8] sm:$0xff] %vm5877, %v3813
    %5936 = vst.msk [vmem:[#allocation2 + $0x1d0] sm:$0xff] %vm5877, %v3814
    %5937 = vst.msk [vmem:[#allocation2 + $0x1d8] sm:$0xff] %vm5877, %v3815
    %5938 = vst.msk [vmem:[#allocation2 + $0x1e0] sm:$0xff] %vm5877, %v3816
    %5939 = vst.msk [vmem:[#allocation2 + $0x1e8] sm:$0xff] %vm5877, %v3817
    %5940 = vst.msk [vmem:[#allocation2 + $0x1f0] sm:$0xff] %vm5877, %v3818
    %5941 = vst.msk [vmem:[#allocation2 + $0x1f8] sm:$0xff] %vm5877, %v3819
    // Predicated region
    $region14: #{tpu_custom_call.1} parent=1 // pred_check
      _
    $region15: #{tpu_custom_call.1} parent=1 // pred_check_branch
      %5943 = sbr.rel (0) target = $region17
    $region16: #{tpu_custom_call.1} parent=1 // pred_region
      %s5945 = ssub.s32 8192, 8192
      %5946 = vsyncadd [#allocation3], %s5945
      %s5947 = sshll.u32 [#allocation2], 4
      %s5948 = int_to_ptr.vmem [resolvable:$true] %s5947
      %5953 = dma.vmem_to_hbm [thread:$0]  %s5948, 8192, %s3, [#allocation3], 128, 128, 8
    $region17: #{tpu_custom_call.1} parent=1 // pred_fallthru
      _
    // Predicated region
    $region18: #{tpu_custom_call.1} parent=1 // pred_check
      _
    $region19: #{tpu_custom_call.1} parent=1 // pred_check_branch
      %5955 = sbr.rel (0) target = $region21
    $region20: #{tpu_custom_call.1} parent=1 // pred_region
      %5956 = dma.done [#allocation3], 8192
    $region21: #{tpu_custom_call.1} parent=1 // pred_fallthru
      _
    %5957 = vsyncpa [#allocation3], 1

</llo_original>
